<compile_context>
chip_gen: v5e
topology: v5e:2x2
jax: 0.10.0
libtpu: 0.0.40
codegen_flags: <defaults>
</compile_context>

<pallas_src>
import numpy as np
import jax
import jax.numpy as jnp
from jax import lax
from jax.experimental import pallas as pl
from jax.experimental.pallas import tpu as pltpu

H = W = 16                      # small spatial size consistent with the module
C_IN, C1, C2, C3 = 32, 64, 64, 128
K1, K2 = 3, 7
HO = H - (K2 - 1)               # 10
WO = W - (K2 - 1)               # 10
HP = WP = H + 2                 # 18  (conv1 input, pad=1 applied in wrapper)
M1 = H * W                      # 256 conv1 output rows (h*W + w)
M2 = HO * W                     # 160 conv2/conv3 rows computed (h<10, all 16 w)


def model_kernel(xp_ref, w1_ref, b1_ref, w2_ref, b2_ref, w3_ref, b3_ref, o_ref):
    # xp_ref : (HP, WP, C_IN)      bf16  (zero-padded conv1 input)
    # w1_ref : (K1, K1*C_IN, C1)   bf16    b1_ref: (1, C1) f32  (bias - 500)
    # w2_ref : (K2, K2*C1, C2)     bf16    b2_ref: (1, C2) f32  (bias - 120 - 150*sum(w2))
    # w3_ref : (C2, C3)            bf16    b3_ref: (1, C3) f32  (bias - 300)
    # o_ref  : (M2, C3)            f32   rows = h*W + w  (h in 0..9, w in 0..15)

    # ---- conv1: 3x3 pad=1 -> 3 accumulated K=96 dots ----
    xp = xp_ref[...]                                                   # (18, 18, 32)
    # cols1[hp, w, kw*C_IN + c] = xp[hp, w + kw, c]
    cols1 = jnp.concatenate([xp[:, kw:kw + W, :] for kw in range(K1)], axis=-1)  # (18,16,96)
    cols1 = cols1.reshape(HP * W, K1 * C_IN)                           # (288, 96), free relabel
    acc1 = jnp.dot(cols1[0:M1, :], w1_ref[0], preferred_element_type=jnp.float32)
    for kh in range(1, K1):                                            # free 8-aligned row slices
        acc1 = acc1 + jnp.dot(cols1[kh * W:kh * W + M1, :], w1_ref[kh],
                              preferred_element_type=jnp.float32)
    v2 = jnp.maximum(acc1 + b1_ref[...], 0.0)                          # relu(conv1(x) - 500), (256,64) f32
    conv2_in = v2.astype(jnp.bfloat16).reshape(H, W, C1)               # (16, 16, 64)

    # ---- conv2: 7x7 valid -> 7 accumulated K=448 dots ----
    # Extend W by 6 zero columns so every kw window is full width; the extra
    # columns only feed output columns >= WO, which the wrapper discards.
    ext = jnp.concatenate(
        [conv2_in, jnp.zeros((H, K2 - 1, C1), jnp.bfloat16)], axis=1)  # (16, 22, 64)
    pieces = [ext[:, kw:kw + W, :] for kw in range(K2)]                # 7 x (16, 16, 64)
    # concat kw in pairs so lane-chunk boundaries land on 128 (one vreg)
    pairs = [jnp.concatenate(pieces[i:i + 2], axis=-1) for i in range(0, K2 - 1, 2)]
    cols2 = jnp.concatenate(pairs + [pieces[K2 - 1]], axis=-1)         # (16, 16, 448)
    cols2 = cols2.reshape(H * W, K2 * C1)                              # (256, 448), free relabel
    acc2 = jnp.dot(cols2[0:M2, :], w2_ref[0], preferred_element_type=jnp.float32)
    for kh in range(1, K2):                                            # free 16-aligned row slices
        acc2 = acc2 + jnp.dot(cols2[kh * W:kh * W + M2, :], w2_ref[kh],
                              preferred_element_type=jnp.float32)
    v4 = jnp.maximum(acc2 + b2_ref[...], 0.0)                          # (160, 64) f32

    # ---- conv3: 1x1 channel matmul ----
    v5 = jnp.dot(v4.astype(jnp.bfloat16), w3_ref[...],
                 preferred_element_type=jnp.float32) + b3_ref[...]
    o_ref[...] = v5                                                    # (160, 128) f32, dense slab


def init_params(key):
    k1, k2, k3, k4, k5, k6 = jax.random.split(key, 6)
    w1 = jax.random.normal(k1, (K1, K1, C_IN, C1), jnp.float32) / np.sqrt(K1 * K1 * C_IN)
    b1 = jax.random.normal(k2, (1, C1), jnp.float32) * 0.1
    w2 = jax.random.normal(k3, (K2, K2, C1, C2), jnp.float32) / np.sqrt(K2 * K2 * C1)
    b2 = jax.random.normal(k4, (1, C2), jnp.float32) * 0.1
    w3 = jax.random.normal(k5, (C2, C3), jnp.float32) / np.sqrt(C2)
    b3 = jax.random.normal(k6, (1, C3), jnp.float32) * 0.1
    return w1, b1, w2, b2, w3, b3


@jax.jit
def run_model(x_nchw, params):
    w1, b1, w2, b2, w3, b3 = params
    B = x_nchw.shape[0]

    # Host-side weight plumbing: per-kh im2col layout, bf16 matmul operands.
    w1r = w1.reshape(K1, K1 * C_IN, C1).astype(jnp.bfloat16)
    w2r = w2.reshape(K2, K2 * C1, C2).astype(jnp.bfloat16)
    w3r = w3.astype(jnp.bfloat16)
    # Fold constants into biases (exact: conv2 is VALID so every window is full).
    b1f = b1 - 500.0
    b2f = b2 - 120.0 - 150.0 * w2.sum(axis=(0, 1, 2))[None, :]
    b3f = b3 - 300.0

    # NCHW -> NHWC, bf16, and the conv1 pad=1 done here (pure layout plumbing).
    x = jnp.transpose(x_nchw, (0, 2, 3, 1)).astype(jnp.bfloat16)
    xp = jnp.pad(x, ((0, 0), (1, 1), (1, 1), (0, 0)))                  # (B, 18, 18, 32)

    out = pl.pallas_call(
        model_kernel,
        out_shape=jax.ShapeDtypeStruct((B, M2, C3), jnp.float32),
        grid_spec=pltpu.PrefetchScalarGridSpec(
            num_scalar_prefetch=0,
            grid=(B,),
            in_specs=[
                pl.BlockSpec((None, HP, WP, C_IN), lambda b: (b, 0, 0, 0)),
                # weights / biases: constant block index -> stay VMEM-resident
                pl.BlockSpec((K1, K1 * C_IN, C1), lambda b: (0, 0, 0)),
                pl.BlockSpec((1, C1), lambda b: (0, 0)),
                pl.BlockSpec((K2, K2 * C1, C2), lambda b: (0, 0, 0)),
                pl.BlockSpec((1, C2), lambda b: (0, 0)),
                pl.BlockSpec((C2, C3), lambda b: (0, 0)),
                pl.BlockSpec((1, C3), lambda b: (0, 0)),
            ],
            out_specs=pl.BlockSpec((None, M2, C3), lambda b: (b, 0, 0)),
        ),
        compiler_params=pltpu.CompilerParams(
            dimension_semantics=("parallel",)),
    )(xp, w1r, b1f, w2r, b2f, w3r, b3f)

    # (B, 160, 128) -> (B, 10, 16, 128) -> drop w>=10 -> NCHW
    out = out.reshape(B, HO, W, C3)[:, :, :WO, :]
    return jnp.transpose(out, (0, 3, 1, 2))                            # (B, 128, 10, 10)


def ref_model(x_nchw, params):
    # Pure-JAX f32 reference mirroring the PyTorch forward.
    w1, b1, w2, b2, w3, b3 = params
    dn = ('NHWC', 'HWIO', 'NHWC')
    x = jnp.transpose(x_nchw, (0, 2, 3, 1))
    v1 = lax.conv_general_dilated(x, w1, (1, 1), ((1, 1), (1, 1)),
                                  dimension_numbers=dn) + b1.reshape(1, 1, 1, -1) - 500.0
    v2 = jnp.maximum(v1, 0.0)
    v3 = lax.conv_general_dilated(v2 - 150.0, w2, (1, 1), 'VALID',
                                  dimension_numbers=dn) + b2.reshape(1, 1, 1, -1) - 120.0
    v4 = jnp.maximum(v3, 0.0)
    v5 = lax.conv_general_dilated(v4, w3.reshape(1, 1, C2, C3), (1, 1), 'VALID',
                                  dimension_numbers=dn) + b3.reshape(1, 1, 1, -1) - 300.0
    return jnp.transpose(v5, (0, 3, 1, 2))


if __name__ == "__main__":
    key = jax.random.PRNGKey(0)
    kx, kp = jax.random.split(key)
    # Batch of 2 exercises the batched "parallel" grid (2nd TC on v7x).
    # Scale the input so the conv1 "- 500" / relu path is exercised non-trivially.
    x = jax.random.normal(kx, (2, C_IN, H, W), jnp.float32) * 600.0
    params = init_params(kp)

    out = jax.block_until_ready(run_model(x, params))
    assert out.shape == (2, C3, HO, WO), out.shape

    ref = jax.block_until_ready(ref_model(x, params))
    # bf16 matmul operands with f32 accumulation vs f32 reference -> ~1% tolerance
    # (outputs are O(hundreds); observed error is a few units).
    np.testing.assert_allclose(np.asarray(out), np.asarray(ref), rtol=2e-2, atol=10.0)

    print("KERNEL_OK")
</pallas_src>

<mosaic_0001>
module attributes {stable_mosaic.version = 11 : i64} {
  func.func @model_kernel(%arg0: i32, %arg1: memref<1x18x18x32xbf16, #tpu.memory_space<vmem>>, %arg2: memref<3x96x64xbf16, #tpu.memory_space<vmem>>, %arg3: memref<1x64xf32, #tpu.memory_space<vmem>>, %arg4: memref<7x448x64xbf16, #tpu.memory_space<vmem>>, %arg5: memref<1x64xf32, #tpu.memory_space<vmem>>, %arg6: memref<64x128xbf16, #tpu.memory_space<vmem>>, %arg7: memref<1x128xf32, #tpu.memory_space<vmem>>, %arg8: memref<1x160x128xf32, #tpu.memory_space<vmem>>) attributes {dimension_semantics = [#tpu.dimension_semantics<parallel>], iteration_bounds = array<i64: 2>, scalar_prefetch = 0 : i64, scratch_operands = 0 : i64, tpu.core_type = #tpu.core_type<tc>, window_params = [{transform_indices = @transform_0, window_bounds = array<i64: 1, 18, 18, 32>}, {pipeline_mode = #tpu.pipeline_mode<synchronous>, transform_indices = @transform_1, window_bounds = array<i64: 3, 96, 64>}, {pipeline_mode = #tpu.pipeline_mode<synchronous>, transform_indices = @transform_2, window_bounds = array<i64: 1, 64>}, {pipeline_mode = #tpu.pipeline_mode<synchronous>, transform_indices = @transform_3, window_bounds = array<i64: 7, 448, 64>}, {pipeline_mode = #tpu.pipeline_mode<synchronous>, transform_indices = @transform_4, window_bounds = array<i64: 1, 64>}, {pipeline_mode = #tpu.pipeline_mode<synchronous>, transform_indices = @transform_5, window_bounds = array<i64: 64, 128>}, {pipeline_mode = #tpu.pipeline_mode<synchronous>, transform_indices = @transform_6, window_bounds = array<i64: 1, 128>}, {transform_indices = @transform_7, window_bounds = array<i64: 1, 160, 128>}]} {
    %c0 = arith.constant 0 : index
    %c0_0 = arith.constant 0 : index
    %c0_1 = arith.constant 0 : index
    %c0_2 = arith.constant 0 : index
    %0 = vector.load %arg1[%c0, %c0_0, %c0_1, %c0_2] : memref<1x18x18x32xbf16, #tpu.memory_space<vmem>>, vector<1x18x18x32xbf16>
    %1 = vector.shape_cast %0 : vector<1x18x18x32xbf16> to vector<18x18x32xbf16>
    %2 = vector.extract_strided_slice %1 {offsets = [0, 0, 0], sizes = [18, 16, 32], strides = [1, 1, 1]} : vector<18x18x32xbf16> to vector<18x16x32xbf16>
    %3 = vector.extract_strided_slice %1 {offsets = [0, 1, 0], sizes = [18, 16, 32], strides = [1, 1, 1]} : vector<18x18x32xbf16> to vector<18x16x32xbf16>
    %4 = vector.extract_strided_slice %1 {offsets = [0, 2, 0], sizes = [18, 16, 32], strides = [1, 1, 1]} : vector<18x18x32xbf16> to vector<18x16x32xbf16>
    %5 = tpu.concatenate %2, %3, %4 in 2 : vector<18x16x32xbf16>, vector<18x16x32xbf16>, vector<18x16x32xbf16> -> vector<18x16x96xbf16>
    %6 = vector.shape_cast %5 : vector<18x16x96xbf16> to vector<288x96xbf16>
    %7 = vector.extract_strided_slice %6 {offsets = [0, 0], sizes = [256, 96], strides = [1, 1]} : vector<288x96xbf16> to vector<256x96xbf16>
    %c0_3 = arith.constant 0 : index
    %c0_4 = arith.constant 0 : index
    %c0_5 = arith.constant 0 : index
    %8 = vector.load %arg2[%c0_3, %c0_4, %c0_5] : memref<3x96x64xbf16, #tpu.memory_space<vmem>>, vector<1x96x64xbf16>
    %9 = vector.shape_cast %8 : vector<1x96x64xbf16> to vector<96x64xbf16>
    %cst = arith.constant dense<0.000000e+00> : vector<256x64xf32>
    %10 = tpu.matmul %7, %9, %cst {dimension_numbers = #tpu.dot_dimension_numbers<[1], [0], [0], [1], [0, 0, 1, 1], [], []>} : vector<256x96xbf16>, vector<96x64xbf16>, vector<256x64xf32> -> vector<256x64xf32>
    %11 = vector.extract_strided_slice %6 {offsets = [16, 0], sizes = [256, 96], strides = [1, 1]} : vector<288x96xbf16> to vector<256x96xbf16>
    %c1 = arith.constant 1 : index
    %c0_6 = arith.constant 0 : index
    %c0_7 = arith.constant 0 : index
    %12 = vector.load %arg2[%c1, %c0_6, %c0_7] : memref<3x96x64xbf16, #tpu.memory_space<vmem>>, vector<1x96x64xbf16>
    %13 = vector.shape_cast %12 : vector<1x96x64xbf16> to vector<96x64xbf16>
    %cst_8 = arith.constant dense<0.000000e+00> : vector<256x64xf32>
    %14 = tpu.matmul %11, %13, %cst_8 {dimension_numbers = #tpu.dot_dimension_numbers<[1], [0], [0], [1], [0, 0, 1, 1], [], []>} : vector<256x96xbf16>, vector<96x64xbf16>, vector<256x64xf32> -> vector<256x64xf32>
    %15 = arith.addf %10, %14 : vector<256x64xf32>
    %16 = vector.extract_strided_slice %6 {offsets = [32, 0], sizes = [256, 96], strides = [1, 1]} : vector<288x96xbf16> to vector<256x96xbf16>
    %c2 = arith.constant 2 : index
    %c0_9 = arith.constant 0 : index
    %c0_10 = arith.constant 0 : index
    %17 = vector.load %arg2[%c2, %c0_9, %c0_10] : memref<3x96x64xbf16, #tpu.memory_space<vmem>>, vector<1x96x64xbf16>
    %18 = vector.shape_cast %17 : vector<1x96x64xbf16> to vector<96x64xbf16>
    %cst_11 = arith.constant dense<0.000000e+00> : vector<256x64xf32>
    %19 = tpu.matmul %16, %18, %cst_11 {dimension_numbers = #tpu.dot_dimension_numbers<[1], [0], [0], [1], [0, 0, 1, 1], [], []>} : vector<256x96xbf16>, vector<96x64xbf16>, vector<256x64xf32> -> vector<256x64xf32>
    %20 = arith.addf %15, %19 : vector<256x64xf32>
    %c0_12 = arith.constant 0 : index
    %c0_13 = arith.constant 0 : index
    %21 = vector.load %arg3[%c0_12, %c0_13] : memref<1x64xf32, #tpu.memory_space<vmem>>, vector<1x64xf32>
    %22 = vector.broadcast %21 : vector<1x64xf32> to vector<256x64xf32>
    %23 = arith.addf %20, %22 : vector<256x64xf32>
    %cst_14 = arith.constant 0.000000e+00 : f32
    %24 = vector.broadcast %cst_14 : f32 to vector<256x64xf32>
    %25 = arith.maximumf %23, %24 : vector<256x64xf32>
    %26 = arith.truncf %25 : vector<256x64xf32> to vector<256x64xbf16>
    %27 = vector.shape_cast %26 : vector<256x64xbf16> to vector<16x16x64xbf16>
    %cst_15 = arith.constant 0.000000e+00 : bf16
    %28 = vector.broadcast %cst_15 : bf16 to vector<16x6x64xbf16>
    %29 = tpu.concatenate %27, %28 in 1 : vector<16x16x64xbf16>, vector<16x6x64xbf16> -> vector<16x22x64xbf16>
    %30 = vector.extract_strided_slice %29 {offsets = [0, 0, 0], sizes = [16, 16, 64], strides = [1, 1, 1]} : vector<16x22x64xbf16> to vector<16x16x64xbf16>
    %31 = vector.extract_strided_slice %29 {offsets = [0, 1, 0], sizes = [16, 16, 64], strides = [1, 1, 1]} : vector<16x22x64xbf16> to vector<16x16x64xbf16>
    %32 = vector.extract_strided_slice %29 {offsets = [0, 2, 0], sizes = [16, 16, 64], strides = [1, 1, 1]} : vector<16x22x64xbf16> to vector<16x16x64xbf16>
    %33 = vector.extract_strided_slice %29 {offsets = [0, 3, 0], sizes = [16, 16, 64], strides = [1, 1, 1]} : vector<16x22x64xbf16> to vector<16x16x64xbf16>
    %34 = vector.extract_strided_slice %29 {offsets = [0, 4, 0], sizes = [16, 16, 64], strides = [1, 1, 1]} : vector<16x22x64xbf16> to vector<16x16x64xbf16>
    %35 = vector.extract_strided_slice %29 {offsets = [0, 5, 0], sizes = [16, 16, 64], strides = [1, 1, 1]} : vector<16x22x64xbf16> to vector<16x16x64xbf16>
    %36 = vector.extract_strided_slice %29 {offsets = [0, 6, 0], sizes = [16, 16, 64], strides = [1, 1, 1]} : vector<16x22x64xbf16> to vector<16x16x64xbf16>
    %37 = tpu.concatenate %30, %31 in 2 : vector<16x16x64xbf16>, vector<16x16x64xbf16> -> vector<16x16x128xbf16>
    %38 = tpu.concatenate %32, %33 in 2 : vector<16x16x64xbf16>, vector<16x16x64xbf16> -> vector<16x16x128xbf16>
    %39 = tpu.concatenate %34, %35 in 2 : vector<16x16x64xbf16>, vector<16x16x64xbf16> -> vector<16x16x128xbf16>
    %40 = tpu.concatenate %37, %38, %39, %36 in 2 : vector<16x16x128xbf16>, vector<16x16x128xbf16>, vector<16x16x128xbf16>, vector<16x16x64xbf16> -> vector<16x16x448xbf16>
    %41 = vector.shape_cast %40 : vector<16x16x448xbf16> to vector<256x448xbf16>
    %42 = vector.extract_strided_slice %41 {offsets = [0, 0], sizes = [160, 448], strides = [1, 1]} : vector<256x448xbf16> to vector<160x448xbf16>
    %c0_16 = arith.constant 0 : index
    %c0_17 = arith.constant 0 : index
    %c0_18 = arith.constant 0 : index
    %43 = vector.load %arg4[%c0_16, %c0_17, %c0_18] : memref<7x448x64xbf16, #tpu.memory_space<vmem>>, vector<1x448x64xbf16>
    %44 = vector.shape_cast %43 : vector<1x448x64xbf16> to vector<448x64xbf16>
    %cst_19 = arith.constant dense<0.000000e+00> : vector<160x64xf32>
    %45 = tpu.matmul %42, %44, %cst_19 {dimension_numbers = #tpu.dot_dimension_numbers<[1], [0], [0], [1], [0, 0, 1, 1], [], []>} : vector<160x448xbf16>, vector<448x64xbf16>, vector<160x64xf32> -> vector<160x64xf32>
    %46 = vector.extract_strided_slice %41 {offsets = [16, 0], sizes = [160, 448], strides = [1, 1]} : vector<256x448xbf16> to vector<160x448xbf16>
    %c1_20 = arith.constant 1 : index
    %c0_21 = arith.constant 0 : index
    %c0_22 = arith.constant 0 : index
    %47 = vector.load %arg4[%c1_20, %c0_21, %c0_22] : memref<7x448x64xbf16, #tpu.memory_space<vmem>>, vector<1x448x64xbf16>
    %48 = vector.shape_cast %47 : vector<1x448x64xbf16> to vector<448x64xbf16>
    %cst_23 = arith.constant dense<0.000000e+00> : vector<160x64xf32>
    %49 = tpu.matmul %46, %48, %cst_23 {dimension_numbers = #tpu.dot_dimension_numbers<[1], [0], [0], [1], [0, 0, 1, 1], [], []>} : vector<160x448xbf16>, vector<448x64xbf16>, vector<160x64xf32> -> vector<160x64xf32>
    %50 = arith.addf %45, %49 : vector<160x64xf32>
    %51 = vector.extract_strided_slice %41 {offsets = [32, 0], sizes = [160, 448], strides = [1, 1]} : vector<256x448xbf16> to vector<160x448xbf16>
    %c2_24 = arith.constant 2 : index
    %c0_25 = arith.constant 0 : index
    %c0_26 = arith.constant 0 : index
    %52 = vector.load %arg4[%c2_24, %c0_25, %c0_26] : memref<7x448x64xbf16, #tpu.memory_space<vmem>>, vector<1x448x64xbf16>
    %53 = vector.shape_cast %52 : vector<1x448x64xbf16> to vector<448x64xbf16>
    %cst_27 = arith.constant dense<0.000000e+00> : vector<160x64xf32>
    %54 = tpu.matmul %51, %53, %cst_27 {dimension_numbers = #tpu.dot_dimension_numbers<[1], [0], [0], [1], [0, 0, 1, 1], [], []>} : vector<160x448xbf16>, vector<448x64xbf16>, vector<160x64xf32> -> vector<160x64xf32>
    %55 = arith.addf %50, %54 : vector<160x64xf32>
    %56 = vector.extract_strided_slice %41 {offsets = [48, 0], sizes = [160, 448], strides = [1, 1]} : vector<256x448xbf16> to vector<160x448xbf16>
    %c3 = arith.constant 3 : index
    %c0_28 = arith.constant 0 : index
    %c0_29 = arith.constant 0 : index
    %57 = vector.load %arg4[%c3, %c0_28, %c0_29] : memref<7x448x64xbf16, #tpu.memory_space<vmem>>, vector<1x448x64xbf16>
    %58 = vector.shape_cast %57 : vector<1x448x64xbf16> to vector<448x64xbf16>
    %cst_30 = arith.constant dense<0.000000e+00> : vector<160x64xf32>
    %59 = tpu.matmul %56, %58, %cst_30 {dimension_numbers = #tpu.dot_dimension_numbers<[1], [0], [0], [1], [0, 0, 1, 1], [], []>} : vector<160x448xbf16>, vector<448x64xbf16>, vector<160x64xf32> -> vector<160x64xf32>
    %60 = arith.addf %55, %59 : vector<160x64xf32>
    %61 = vector.extract_strided_slice %41 {offsets = [64, 0], sizes = [160, 448], strides = [1, 1]} : vector<256x448xbf16> to vector<160x448xbf16>
    %c4 = arith.constant 4 : index
    %c0_31 = arith.constant 0 : index
    %c0_32 = arith.constant 0 : index
    %62 = vector.load %arg4[%c4, %c0_31, %c0_32] : memref<7x448x64xbf16, #tpu.memory_space<vmem>>, vector<1x448x64xbf16>
    %63 = vector.shape_cast %62 : vector<1x448x64xbf16> to vector<448x64xbf16>
    %cst_33 = arith.constant dense<0.000000e+00> : vector<160x64xf32>
    %64 = tpu.matmul %61, %63, %cst_33 {dimension_numbers = #tpu.dot_dimension_numbers<[1], [0], [0], [1], [0, 0, 1, 1], [], []>} : vector<160x448xbf16>, vector<448x64xbf16>, vector<160x64xf32> -> vector<160x64xf32>
    %65 = arith.addf %60, %64 : vector<160x64xf32>
    %66 = vector.extract_strided_slice %41 {offsets = [80, 0], sizes = [160, 448], strides = [1, 1]} : vector<256x448xbf16> to vector<160x448xbf16>
    %c5 = arith.constant 5 : index
    %c0_34 = arith.constant 0 : index
    %c0_35 = arith.constant 0 : index
    %67 = vector.load %arg4[%c5, %c0_34, %c0_35] : memref<7x448x64xbf16, #tpu.memory_space<vmem>>, vector<1x448x64xbf16>
    %68 = vector.shape_cast %67 : vector<1x448x64xbf16> to vector<448x64xbf16>
    %cst_36 = arith.constant dense<0.000000e+00> : vector<160x64xf32>
    %69 = tpu.matmul %66, %68, %cst_36 {dimension_numbers = #tpu.dot_dimension_numbers<[1], [0], [0], [1], [0, 0, 1, 1], [], []>} : vector<160x448xbf16>, vector<448x64xbf16>, vector<160x64xf32> -> vector<160x64xf32>
    %70 = arith.addf %65, %69 : vector<160x64xf32>
    %71 = vector.extract_strided_slice %41 {offsets = [96, 0], sizes = [160, 448], strides = [1, 1]} : vector<256x448xbf16> to vector<160x448xbf16>
    %c6 = arith.constant 6 : index
    %c0_37 = arith.constant 0 : index
    %c0_38 = arith.constant 0 : index
    %72 = vector.load %arg4[%c6, %c0_37, %c0_38] : memref<7x448x64xbf16, #tpu.memory_space<vmem>>, vector<1x448x64xbf16>
    %73 = vector.shape_cast %72 : vector<1x448x64xbf16> to vector<448x64xbf16>
    %cst_39 = arith.constant dense<0.000000e+00> : vector<160x64xf32>
    %74 = tpu.matmul %71, %73, %cst_39 {dimension_numbers = #tpu.dot_dimension_numbers<[1], [0], [0], [1], [0, 0, 1, 1], [], []>} : vector<160x448xbf16>, vector<448x64xbf16>, vector<160x64xf32> -> vector<160x64xf32>
    %75 = arith.addf %70, %74 : vector<160x64xf32>
    %c0_40 = arith.constant 0 : index
    %c0_41 = arith.constant 0 : index
    %76 = vector.load %arg5[%c0_40, %c0_41] : memref<1x64xf32, #tpu.memory_space<vmem>>, vector<1x64xf32>
    %77 = vector.broadcast %76 : vector<1x64xf32> to vector<160x64xf32>
    %78 = arith.addf %75, %77 : vector<160x64xf32>
    %cst_42 = arith.constant 0.000000e+00 : f32
    %79 = vector.broadcast %cst_42 : f32 to vector<160x64xf32>
    %80 = arith.maximumf %78, %79 : vector<160x64xf32>
    %81 = arith.truncf %80 : vector<160x64xf32> to vector<160x64xbf16>
    %c0_43 = arith.constant 0 : index
    %c0_44 = arith.constant 0 : index
    %82 = vector.load %arg6[%c0_43, %c0_44] : memref<64x128xbf16, #tpu.memory_space<vmem>>, vector<64x128xbf16>
    %cst_45 = arith.constant dense<0.000000e+00> : vector<160x128xf32>
    %83 = tpu.matmul %81, %82, %cst_45 {dimension_numbers = #tpu.dot_dimension_numbers<[1], [0], [0], [1], [0, 0, 1, 1], [], []>} : vector<160x64xbf16>, vector<64x128xbf16>, vector<160x128xf32> -> vector<160x128xf32>
    %c0_46 = arith.constant 0 : index
    %c0_47 = arith.constant 0 : index
    %84 = vector.load %arg7[%c0_46, %c0_47] : memref<1x128xf32, #tpu.memory_space<vmem>>, vector<1x128xf32>
    %85 = vector.broadcast %84 : vector<1x128xf32> to vector<160x128xf32>
    %86 = arith.addf %83, %85 : vector<160x128xf32>
    %c0_48 = arith.constant 0 : index
    %c0_49 = arith.constant 0 : index
    %c0_50 = arith.constant 0 : index
    %87 = vector.load %arg8[%c0_48, %c0_49, %c0_50] : memref<1x160x128xf32, #tpu.memory_space<vmem>>, vector<1x160x128xf32>
    %88 = vector.shape_cast %87 : vector<1x160x128xf32> to vector<160x128xf32>
    %89 = vector.shape_cast %86 : vector<160x128xf32> to vector<1x160x128xf32>
    tpu.vector_store %arg8[%c0_48, %c0_49, %c0_50], %89 {strides = array<i32>} : memref<1x160x128xf32, #tpu.memory_space<vmem>>, vector<1x160x128xf32>,
    return
  }
  func.func @transform_0(%arg0: i32) -> (i32, i32, i32, i32) {
    %c0_i32 = arith.constant 0 : i32
    %c0_i32_0 = arith.constant 0 : i32
    %c0_i32_1 = arith.constant 0 : i32
    %c0_i32_2 = arith.constant 0 : i32
    return %arg0, %c0_i32, %c0_i32_0, %c0_i32_1 : i32, i32, i32, i32
  }
  func.func @transform_1(%arg0: i32) -> (i32, i32, i32) {
    %c0_i32 = arith.constant 0 : i32
    %c0_i32_0 = arith.constant 0 : i32
    %c0_i32_1 = arith.constant 0 : i32
    %c0_i32_2 = arith.constant 0 : i32
    return %c0_i32, %c0_i32_0, %c0_i32_1 : i32, i32, i32
  }
  func.func @transform_2(%arg0: i32) -> (i32, i32) {
    %c0_i32 = arith.constant 0 : i32
    %c0_i32_0 = arith.constant 0 : i32
    %c0_i32_1 = arith.constant 0 : i32
    return %c0_i32, %c0_i32_0 : i32, i32
  }
  func.func @transform_3(%arg0: i32) -> (i32, i32, i32) {
    %c0_i32 = arith.constant 0 : i32
    %c0_i32_0 = arith.constant 0 : i32
    %c0_i32_1 = arith.constant 0 : i32
    %c0_i32_2 = arith.constant 0 : i32
    return %c0_i32, %c0_i32_0, %c0_i32_1 : i32, i32, i32
  }
  func.func @transform_4(%arg0: i32) -> (i32, i32) {
    %c0_i32 = arith.constant 0 : i32
    %c0_i32_0 = arith.constant 0 : i32
    %c0_i32_1 = arith.constant 0 : i32
    return %c0_i32, %c0_i32_0 : i32, i32
  }
  func.func @transform_5(%arg0: i32) -> (i32, i32) {
    %c0_i32 = arith.constant 0 : i32
    %c0_i32_0 = arith.constant 0 : i32
    %c0_i32_1 = arith.constant 0 : i32
    return %c0_i32, %c0_i32_0 : i32, i32
  }
  func.func @transform_6(%arg0: i32) -> (i32, i32) {
    %c0_i32 = arith.constant 0 : i32
    %c0_i32_0 = arith.constant 0 : i32
    %c0_i32_1 = arith.constant 0 : i32
    return %c0_i32, %c0_i32_0 : i32, i32
  }
  func.func @transform_7(%arg0: i32) -> (i32, i32, i32) {
    %c0_i32 = arith.constant 0 : i32
    %c0_i32_0 = arith.constant 0 : i32
    %c0_i32_1 = arith.constant 0 : i32
    return %arg0, %c0_i32, %c0_i32_0 : i32, i32, i32
  }
}

</mosaic_0001>

<llo_original>
// kernel: run_model.1
$region0: #{run_model.1}
  #allocation0 [shape = 'u32[]', space=smem, size = 0x4, offset = 0x4, fixed_abs, tag = 'smem constant byte address 0x4 - core index']
  #allocation1 [shape = 'u32[72,128]{1,0:T(1,128)}', space=vmem, size = 0x9000, scoped, tag = 'internal scratch']
  %s0 = inlined_call_operand.vmem [shape: bf16[2,18,18,32], index: 0, kind: input, shape index: {}]
  %s1 = inlined_call_operand.vmem [shape: bf16[3,96,64], index: 1, kind: input, shape index: {}]
  %s2 = inlined_call_operand.vmem [shape: f32[1,64], index: 2, kind: input, shape index: {}]
  %s3 = inlined_call_operand.vmem [shape: bf16[7,448,64], index: 3, kind: input, shape index: {}]
  %s4 = inlined_call_operand.vmem [shape: f32[1,64], index: 4, kind: input, shape index: {}]
  %s5 = inlined_call_operand.vmem [shape: bf16[64,128], index: 5, kind: input, shape index: {}]
  %s6 = inlined_call_operand.vmem [shape: f32[1,128], index: 6, kind: input, shape index: {}]
  %s7 = inlined_call_operand.vmem [shape: f32[2,160,128], index: 7, kind: output, shape index: {}]
  %s8 = sld [smem:[#allocation0]]
  $region61: #{run_model.1} parent=0
    _
  %s10 = ssub.s32 1, %s8
  %s11 = scalar_select 0, %s10, %s8
  loop: start=0, step=1, limit=4
  $region2: #{run_model.1} parent=0 // loop_pre_header
    _
  $region3: #{run_model.1} parent=0 // loop_header
    %s13 = sphi 0, %s17
    %p14 = scmp.ge.s32.totalorder %s13, 4
    %s23 = sphi 0, %s25
    %s26 = sphi 0, %s23
    %s27 = sphi 0, %s26
    %s43 = sphi 0, %s27
    %s47 = sphi 0, %s47
    %s49 = sphi 0, %s47
    %s50 = sphi 0, %s49
    %s64 = sphi 0, %s50
    %s68 = sphi 0, %s68
    %s70 = sphi 0, %s68
    %s71 = sphi 0, %s70
    %s85 = sphi 0, %s71
    %s89 = sphi 0, %s89
    %s91 = sphi 0, %s89
    %s92 = sphi 0, %s91
    %s106 = sphi 0, %s92
    %s110 = sphi 0, %s110
    %s112 = sphi 0, %s110
    %s113 = sphi 0, %s112
    %s127 = sphi 0, %s113
    %s131 = sphi 0, %s131
    %s133 = sphi 0, %s131
    %s134 = sphi 0, %s133
    %s148 = sphi 0, %s134
    %s152 = sphi 0, %s152
    %s154 = sphi 0, %s152
    %s155 = sphi 0, %s154
    %s169 = sphi 0, %s155
    %s175 = sphi 0, %s177
    %s178 = sphi 0, %s175
    %s179 = sphi 0, %s178
    %s195 = sphi 0, %s179
  $region4: #{run_model.1} parent=0 // loop_header_branch
    %16 = sbr.rel (%p14) target = $region8
  $region5: #{run_model.1} parent=0 // loop_body
    %s18 = ssub.s32 %s13, 1
    %s19 = ssub.s32 %s13, 2
    %s20 = sadd.s32 %s13, 1
    %s21 = ssub.s32 %s13, %s20
    %p22 = scmp.eq.s32.totalorder %s21, 0
    %s24 = sadd.s32 %s23, 1
    %s25 = scalar_select %p22, %s23, %s24
    %p28 = pneg %p22
    %p29 = scmp.eq.s32.totalorder %s13, 1
    %p30 = por %p28, %p29
    %p31 = scmp.ne.s32.totalorder %s23, %s26
    %p32 = scmp.eq.s32.totalorder %s13, 0
    %p33 = por %p31, %p32
    %p34 = scmp.ne.s32.totalorder %s23, %s26
    %p35 = scmp.eq.s32.totalorder %s18, 1
    %p36 = por %p34, %p35
    %p37 = scmp.ne.s32.totalorder %s26, %s27
    %p38 = scmp.eq.s32.totalorder %s18, 0
    %p39 = por %p37, %p38
    %p40 = scmp.ne.s32.totalorder %s26, %s27
    %p41 = scmp.eq.s32.totalorder %s19, 1
    %p42 = por %p40, %p41
    %p44 = scmp.ne.s32.totalorder %s27, %s43
    %p45 = scmp.eq.s32.totalorder %s19, 0
    %p46 = por %p44, %p45
    %s48 = sadd.s32 %s47, 1
    %p51 = scmp.eq.s32.totalorder %s13, 1
    %p52 = scmp.ne.s32.totalorder %s47, %s49
    %p53 = scmp.eq.s32.totalorder %s13, 0
    %p54 = por %p52, %p53
    %p55 = scmp.ne.s32.totalorder %s47, %s49
    %p56 = scmp.eq.s32.totalorder %s18, 1
    %p57 = por %p55, %p56
    %p58 = scmp.ne.s32.totalorder %s49, %s50
    %p59 = scmp.eq.s32.totalorder %s18, 0
    %p60 = por %p58, %p59
    %p61 = scmp.ne.s32.totalorder %s49, %s50
    %p62 = scmp.eq.s32.totalorder %s19, 1
    %p63 = por %p61, %p62
    %p65 = scmp.ne.s32.totalorder %s50, %s64
    %p66 = scmp.eq.s32.totalorder %s19, 0
    %p67 = por %p65, %p66
    %s69 = sadd.s32 %s68, 1
    %p72 = scmp.eq.s32.totalorder %s13, 1
    %p73 = scmp.ne.s32.totalorder %s68, %s70
    %p74 = scmp.eq.s32.totalorder %s13, 0
    %p75 = por %p73, %p74
    %p76 = scmp.ne.s32.totalorder %s68, %s70
    %p77 = scmp.eq.s32.totalorder %s18, 1
    %p78 = por %p76, %p77
    %p79 = scmp.ne.s32.totalorder %s70, %s71
    %p80 = scmp.eq.s32.totalorder %s18, 0
    %p81 = por %p79, %p80
    %p82 = scmp.ne.s32.totalorder %s70, %s71
    %p83 = scmp.eq.s32.totalorder %s19, 1
    %p84 = por %p82, %p83
    %p86 = scmp.ne.s32.totalorder %s71, %s85
    %p87 = scmp.eq.s32.totalorder %s19, 0
    %p88 = por %p86, %p87
    %s90 = sadd.s32 %s89, 1
    %p93 = scmp.eq.s32.totalorder %s13, 1
    %p94 = scmp.ne.s32.totalorder %s89, %s91
    %p95 = scmp.eq.s32.totalorder %s13, 0
    %p96 = por %p94, %p95
    %p97 = scmp.ne.s32.totalorder %s89, %s91
    %p98 = scmp.eq.s32.totalorder %s18, 1
    %p99 = por %p97, %p98
    %p100 = scmp.ne.s32.totalorder %s91, %s92
    %p101 = scmp.eq.s32.totalorder %s18, 0
    %p102 = por %p100, %p101
    %p103 = scmp.ne.s32.totalorder %s91, %s92
    %p104 = scmp.eq.s32.totalorder %s19, 1
    %p105 = por %p103, %p104
    %p107 = scmp.ne.s32.totalorder %s92, %s106
    %p108 = scmp.eq.s32.totalorder %s19, 0
    %p109 = por %p107, %p108
    %s111 = sadd.s32 %s110, 1
    %p114 = scmp.eq.s32.totalorder %s13, 1
    %p115 = scmp.ne.s32.totalorder %s110, %s112
    %p116 = scmp.eq.s32.totalorder %s13, 0
    %p117 = por %p115, %p116
    %p118 = scmp.ne.s32.totalorder %s110, %s112
    %p119 = scmp.eq.s32.totalorder %s18, 1
    %p120 = por %p118, %p119
    %p121 = scmp.ne.s32.totalorder %s112, %s113
    %p122 = scmp.eq.s32.totalorder %s18, 0
    %p123 = por %p121, %p122
    %p124 = scmp.ne.s32.totalorder %s112, %s113
    %p125 = scmp.eq.s32.totalorder %s19, 1
    %p126 = por %p124, %p125
    %p128 = scmp.ne.s32.totalorder %s113, %s127
    %p129 = scmp.eq.s32.totalorder %s19, 0
    %p130 = por %p128, %p129
    %s132 = sadd.s32 %s131, 1
    %p135 = scmp.eq.s32.totalorder %s13, 1
    %p136 = scmp.ne.s32.totalorder %s131, %s133
    %p137 = scmp.eq.s32.totalorder %s13, 0
    %p138 = por %p136, %p137
    %p139 = scmp.ne.s32.totalorder %s131, %s133
    %p140 = scmp.eq.s32.totalorder %s18, 1
    %p141 = por %p139, %p140
    %p142 = scmp.ne.s32.totalorder %s133, %s134
    %p143 = scmp.eq.s32.totalorder %s18, 0
    %p144 = por %p142, %p143
    %p145 = scmp.ne.s32.totalorder %s133, %s134
    %p146 = scmp.eq.s32.totalorder %s19, 1
    %p147 = por %p145, %p146
    %p149 = scmp.ne.s32.totalorder %s134, %s148
    %p150 = scmp.eq.s32.totalorder %s19, 0
    %p151 = por %p149, %p150
    %s153 = sadd.s32 %s152, 1
    %p156 = scmp.eq.s32.totalorder %s13, 1
    %p157 = scmp.ne.s32.totalorder %s152, %s154
    %p158 = scmp.eq.s32.totalorder %s13, 0
    %p159 = por %p157, %p158
    %p160 = scmp.ne.s32.totalorder %s152, %s154
    %p161 = scmp.eq.s32.totalorder %s18, 1
    %p162 = por %p160, %p161
    %p163 = scmp.ne.s32.totalorder %s154, %s155
    %p164 = scmp.eq.s32.totalorder %s18, 0
    %p165 = por %p163, %p164
    %p166 = scmp.ne.s32.totalorder %s154, %s155
    %p167 = scmp.eq.s32.totalorder %s19, 1
    %p168 = por %p166, %p167
    %p170 = scmp.ne.s32.totalorder %s155, %s169
    %p171 = scmp.eq.s32.totalorder %s19, 0
    %p172 = por %p170, %p171
    %s173 = ssub.s32 %s13, %s20
    %p174 = scmp.eq.s32.totalorder %s173, 0
    %s176 = sadd.s32 %s175, 1
    %s177 = scalar_select %p174, %s175, %s176
    %p180 = pneg %p174
    %p181 = scmp.eq.s32.totalorder %s13, 1
    %p182 = por %p180, %p181
    %p183 = scmp.ne.s32.totalorder %s175, %s178
    %p184 = scmp.eq.s32.totalorder %s13, 0
    %p185 = por %p183, %p184
    %p186 = scmp.ne.s32.totalorder %s175, %s178
    %p187 = scmp.eq.s32.totalorder %s18, 1
    %p188 = por %p186, %p187
    %p189 = scmp.ne.s32.totalorder %s178, %s179
    %p190 = scmp.eq.s32.totalorder %s18, 0
    %p191 = por %p189, %p190
    %p192 = scmp.ne.s32.totalorder %s178, %s179
    %p193 = scmp.eq.s32.totalorder %s19, 1
    %p194 = por %p192, %p193
    %p196 = scmp.ne.s32.totalorder %s179, %s195
    %p197 = scmp.eq.s32.totalorder %s19, 0
    %p198 = por %p196, %p197
    %p199 = scmp.le.s32.totalorder 1, %s13
    %p200 = scmp.lt.s32.totalorder %s13, 3
    %p201 = pnand %p199, %p200
    %p202 = pneg %p201
    // Predicated region
    $region9: #{run_model.1} parent=5 // pred_check
      _
    $region10: #{run_model.1} parent=5 // pred_check_branch
      %204 = sbr.rel (%p201) target = $region12
    $region11: #{run_model.1} parent=5 // pred_region
      %s205 = ssub.s32 %s13, 1
      // Predicated region
      $region13: #{run_model.1} parent=11 // pred_check
        %p206 = pneg %p60
      $region14: #{run_model.1} parent=11 // pred_check_branch
        %208 = sbr.rel (%p206) target = $region16
      $region15: #{run_model.1} parent=11 // pred_region
        _
      $region16: #{run_model.1} parent=11 // pred_fallthru
        _
      // Predicated region
      $region17: #{run_model.1} parent=11 // pred_check
        %p209 = pneg %p81
      $region18: #{run_model.1} parent=11 // pred_check_branch
        %211 = sbr.rel (%p209) target = $region20
      $region19: #{run_model.1} parent=11 // pred_region
        _
      $region20: #{run_model.1} parent=11 // pred_fallthru
        _
      // Predicated region
      $region21: #{run_model.1} parent=11 // pred_check
        %p212 = pneg %p102
      $region22: #{run_model.1} parent=11 // pred_check_branch
        %214 = sbr.rel (%p212) target = $region24
      $region23: #{run_model.1} parent=11 // pred_region
        _
      $region24: #{run_model.1} parent=11 // pred_fallthru
        _
      // Predicated region
      $region25: #{run_model.1} parent=11 // pred_check
        %p215 = pneg %p123
      $region26: #{run_model.1} parent=11 // pred_check_branch
        %217 = sbr.rel (%p215) target = $region28
      $region27: #{run_model.1} parent=11 // pred_region
        _
      $region28: #{run_model.1} parent=11 // pred_fallthru
        _
      // Predicated region
      $region29: #{run_model.1} parent=11 // pred_check
        %p218 = pneg %p144
      $region30: #{run_model.1} parent=11 // pred_check_branch
        %220 = sbr.rel (%p218) target = $region32
      $region31: #{run_model.1} parent=11 // pred_region
        _
      $region32: #{run_model.1} parent=11 // pred_fallthru
        _
      // Predicated region
      $region33: #{run_model.1} parent=11 // pred_check
        %p221 = pneg %p165
      $region34: #{run_model.1} parent=11 // pred_check_branch
        %223 = sbr.rel (%p221) target = $region36
      $region35: #{run_model.1} parent=11 // pred_region
        _
      $region36: #{run_model.1} parent=11 // pred_fallthru
        _
    $region12: #{run_model.1} parent=5 // pred_fallthru
      _
    %p224 = scmp.lt.s32.totalorder %s13, 2
    // Predicated region
    $region37: #{run_model.1} parent=5 // pred_check
      %p225 = pneg %p224
    $region38: #{run_model.1} parent=5 // pred_check_branch
      %227 = sbr.rel (%p225) target = $region40
    $region39: #{run_model.1} parent=5 // pred_region
      // Predicated region
      $region41: #{run_model.1} parent=39 // pred_check
        %p228 = pneg %p33
      $region42: #{run_model.1} parent=39 // pred_check_branch
        %230 = sbr.rel (%p228) target = $region44
      $region43: #{run_model.1} parent=39 // pred_region
        %p231 = scmp.lt.s32.totalorder %s13, 1
        %s232 = scalar_select %p231, %s13, 1
        %s233 = smul.addr %s232, 54
        %s234 = smul.addr %s233, 4
        %s235 = scalar_lea.vmem %s0, %s234
      $region44: #{run_model.1} parent=39 // pred_fallthru
        _
    $region40: #{run_model.1} parent=5 // pred_fallthru
      _
    %p236 = scmp.le.s32.totalorder 1, %s13
    %p237 = scmp.lt.s32.totalorder %s13, 3
    %p238 = pnand %p236, %p237
    %p239 = pneg %p238
    // Predicated region
    $region45: #{run_model.1} parent=5 // pred_check
      _
    $region46: #{run_model.1} parent=5 // pred_check_branch
      %241 = sbr.rel (%p238) target = $region48
    $region47: #{run_model.1} parent=5 // pred_region
      %s242 = ssub.s32 %s13, 1
      %p243 = scmp.lt.s32.totalorder %s18, 1
      %s244 = scalar_select %p243, %s18, 1
      %s245 = smul.addr %s244, 54
      %s246 = smul.addr %s245, 4
      %s247 = scalar_lea.vmem %s0, %s246
      %p248 = pneg %p39
      %p249 = pneg %p36
      %p250 = pneg %p60
      %p251 = pneg %p57
      %p252 = pneg %p81
      %p253 = pneg %p78
      %p254 = pneg %p102
      %p255 = pneg %p99
      %p256 = pneg %p123
      %p257 = pneg %p120
      %p258 = pneg %p144
      %p259 = pneg %p141
      %p260 = pneg %p165
      %p261 = pneg %p162
      %p262 = pneg %p191
      %p263 = pneg %p188
      %p264 = scmp.lt.s32.totalorder %s18, 1
      %s265 = scalar_select %p264, %s18, 1
      %s266 = smul.addr %s265, 20
      %s267 = smul.addr %s266, 8
      %s268 = scalar_lea.vmem %s7, %s267
      %p269 = scmp.lt.s32.totalorder %s18, 1
      %s270 = scalar_select %p269, %s18, 1
      %s271 = smul.addr %s270, 54
      %s272 = smul.addr %s271, 4
      %s273 = scalar_lea.vmem %s0, %s272
      %p274 = scmp.lt.s32.totalorder %s18, 1
      %s275 = scalar_select %p274, %s18, 1
      %s276 = smul.addr %s275, 20
      %s277 = smul.addr %s276, 8
      %s278 = scalar_lea.vmem %s7, %s277
      %v280 = vld [vmem:[%s273] sm:$0xf]
      %v281 = vld [vmem:[%s273 + $0x4] sm:$0xf]
      %v282 = vld [vmem:[%s273 + $0x8] sm:$0x1]
      %v283 = vld [vmem:[%s273 + $0xc] sm:$0xf]
      %v284 = vld [vmem:[%s273 + $0x10] sm:$0xf]
      %v285 = vld [vmem:[%s273 + $0x14] sm:$0x1]
      %v286 = vld [vmem:[%s273 + $0x18] sm:$0xf]
      %v287 = vld [vmem:[%s273 + $0x1c] sm:$0xf]
      %v288 = vld [vmem:[%s273 + $0x20] sm:$0x1]
      %v289 = vld [vmem:[%s273 + $0x24] sm:$0xf]
      %v290 = vld [vmem:[%s273 + $0x28] sm:$0xf]
      %v291 = vld [vmem:[%s273 + $0x2c] sm:$0x1]
      %v292 = vld [vmem:[%s273 + $0x30] sm:$0xf]
      %v293 = vld [vmem:[%s273 + $0x34] sm:$0xf]
      %v294 = vld [vmem:[%s273 + $0x38] sm:$0x1]
      %v295 = vld [vmem:[%s273 + $0x3c] sm:$0xf]
      %v296 = vld [vmem:[%s273 + $0x40] sm:$0xf]
      %v297 = vld [vmem:[%s273 + $0x44] sm:$0x1]
      %v298 = vld [vmem:[%s273 + $0x48] sm:$0xf]
      %v299 = vld [vmem:[%s273 + $0x4c] sm:$0xf]
      %v300 = vld [vmem:[%s273 + $0x50] sm:$0x1]
      %v301 = vld [vmem:[%s273 + $0x54] sm:$0xf]
      %v302 = vld [vmem:[%s273 + $0x58] sm:$0xf]
      %v303 = vld [vmem:[%s273 + $0x5c] sm:$0x1]
      %v304 = vld [vmem:[%s273 + $0x60] sm:$0xf]
      %v305 = vld [vmem:[%s273 + $0x64] sm:$0xf]
      %v306 = vld [vmem:[%s273 + $0x68] sm:$0x1]
      %v307 = vld [vmem:[%s273 + $0x6c] sm:$0xf]
      %v308 = vld [vmem:[%s273 + $0x70] sm:$0xf]
      %v309 = vld [vmem:[%s273 + $0x74] sm:$0x1]
      %v310 = vld [vmem:[%s273 + $0x78] sm:$0xf]
      %v311 = vld [vmem:[%s273 + $0x7c] sm:$0xf]
      %v312 = vld [vmem:[%s273 + $0x80] sm:$0x1]
      %v313 = vld [vmem:[%s273 + $0x84] sm:$0xf]
      %v314 = vld [vmem:[%s273 + $0x88] sm:$0xf]
      %v315 = vld [vmem:[%s273 + $0x8c] sm:$0x1]
      %v316 = vld [vmem:[%s273 + $0x90] sm:$0xf]
      %v317 = vld [vmem:[%s273 + $0x94] sm:$0xf]
      %v318 = vld [vmem:[%s273 + $0x98] sm:$0x1]
      %v319 = vld [vmem:[%s273 + $0x9c] sm:$0xf]
      %v320 = vld [vmem:[%s273 + $0xa0] sm:$0xf]
      %v321 = vld [vmem:[%s273 + $0xa4] sm:$0x1]
      %v322 = vld [vmem:[%s273 + $0xa8] sm:$0xf]
      %v323 = vld [vmem:[%s273 + $0xac] sm:$0xf]
      %v324 = vld [vmem:[%s273 + $0xb0] sm:$0x1]
      %v325 = vld [vmem:[%s273 + $0xb4] sm:$0xf]
      %v326 = vld [vmem:[%s273 + $0xb8] sm:$0xf]
      %v327 = vld [vmem:[%s273 + $0xbc] sm:$0x1]
      %v328 = vld [vmem:[%s273 + $0xc0] sm:$0xf]
      %v329 = vld [vmem:[%s273 + $0xc4] sm:$0xf]
      %v330 = vld [vmem:[%s273 + $0xc8] sm:$0x1]
      %v331 = vld [vmem:[%s273 + $0xcc] sm:$0xf]
      %v332 = vld [vmem:[%s273 + $0xd0] sm:$0xf]
      %v333 = vld [vmem:[%s273 + $0xd4] sm:$0x1]
      %v370 = vunpack.c.l.b16 %v280
      %v371 = vunpack.c.l.b16 %v281
      %v372 = vunpack.c.l.b16 %v283
      %v373 = vunpack.c.l.b16 %v284
      %v374 = vunpack.c.l.b16 %v286
      %v375 = vunpack.c.l.b16 %v287
      %v376 = vunpack.c.l.b16 %v289
      %v377 = vunpack.c.l.b16 %v290
      %v378 = vunpack.c.l.b16 %v292
      %v379 = vunpack.c.l.b16 %v293
      %v380 = vunpack.c.l.b16 %v295
      %v381 = vunpack.c.l.b16 %v296
      %v382 = vunpack.c.l.b16 %v298
      %v383 = vunpack.c.l.b16 %v299
      %v384 = vunpack.c.l.b16 %v301
      %v385 = vunpack.c.l.b16 %v302
      %v386 = vunpack.c.l.b16 %v304
      %v387 = vunpack.c.l.b16 %v305
      %v388 = vunpack.c.l.b16 %v307
      %v389 = vunpack.c.l.b16 %v308
      %v390 = vunpack.c.l.b16 %v310
      %v391 = vunpack.c.l.b16 %v311
      %v392 = vunpack.c.l.b16 %v313
      %v393 = vunpack.c.l.b16 %v314
      %v394 = vunpack.c.l.b16 %v316
      %v395 = vunpack.c.l.b16 %v317
      %v396 = vunpack.c.l.b16 %v319
      %v397 = vunpack.c.l.b16 %v320
      %v398 = vunpack.c.l.b16 %v322
      %v399 = vunpack.c.l.b16 %v323
      %v400 = vunpack.c.l.b16 %v325
      %v401 = vunpack.c.l.b16 %v326
      %v402 = vunpack.c.l.b16 %v328
      %v403 = vunpack.c.l.b16 %v329
      %v404 = vunpack.c.l.b16 %v331
      %v405 = vunpack.c.l.b16 %v332
      %v406 = vpack.c.b16 %v371, %v370
      %v407 = vpack.c.b16 %v373, %v372
      %v408 = vpack.c.b16 %v375, %v374
      %v409 = vpack.c.b16 %v377, %v376
      %v410 = vpack.c.b16 %v379, %v378
      %v411 = vpack.c.b16 %v381, %v380
      %v412 = vpack.c.b16 %v383, %v382
      %v413 = vpack.c.b16 %v385, %v384
      %v414 = vpack.c.b16 %v387, %v386
      %v415 = vpack.c.b16 %v389, %v388
      %v416 = vpack.c.b16 %v391, %v390
      %v417 = vpack.c.b16 %v393, %v392
      %v418 = vpack.c.b16 %v395, %v394
      %v419 = vpack.c.b16 %v397, %v396
      %v420 = vpack.c.b16 %v399, %v398
      %v421 = vpack.c.b16 %v401, %v400
      %v422 = vpack.c.b16 %v403, %v402
      %v423 = vpack.c.b16 %v405, %v404
      %v442 = vunpack.c.l.b16 %v282
      %v443 = vunpack.c.l.b16 %v285
      %v444 = vunpack.c.l.b16 %v288
      %v445 = vunpack.c.l.b16 %v291
      %v446 = vunpack.c.l.b16 %v294
      %v447 = vunpack.c.l.b16 %v297
      %v448 = vunpack.c.l.b16 %v300
      %v449 = vunpack.c.l.b16 %v303
      %v450 = vunpack.c.l.b16 %v306
      %v451 = vunpack.c.l.b16 %v309
      %v452 = vunpack.c.l.b16 %v312
      %v453 = vunpack.c.l.b16 %v315
      %v454 = vunpack.c.l.b16 %v318
      %v455 = vunpack.c.l.b16 %v321
      %v456 = vunpack.c.l.b16 %v324
      %v457 = vunpack.c.l.b16 %v327
      %v458 = vunpack.c.l.b16 %v330
      %v459 = vunpack.c.l.b16 %v333
      %v460 = vpack.c.b16 %v442, %v442
      %v461 = vpack.c.b16 %v443, %v443
      %v462 = vpack.c.b16 %v444, %v444
      %v463 = vpack.c.b16 %v445, %v445
      %v464 = vpack.c.b16 %v446, %v446
      %v465 = vpack.c.b16 %v447, %v447
      %v466 = vpack.c.b16 %v448, %v448
      %v467 = vpack.c.b16 %v449, %v449
      %v468 = vpack.c.b16 %v450, %v450
      %v469 = vpack.c.b16 %v451, %v451
      %v470 = vpack.c.b16 %v452, %v452
      %v471 = vpack.c.b16 %v453, %v453
      %v472 = vpack.c.b16 %v454, %v454
      %v473 = vpack.c.b16 %v455, %v455
      %v474 = vpack.c.b16 %v456, %v456
      %v475 = vpack.c.b16 %v457, %v457
      %v476 = vpack.c.b16 %v458, %v458
      %v477 = vpack.c.b16 %v459, %v459
      %vm478 = vsmask.f32 7424
      %v480 = vshrl.u32 %v406, 16
      %v482 = vshll.u32 %v406, 16
      %v484 = vrot.slane %v482, 1
      %v485 = vor.u32 %v480, %v484
      %v487 = vshll.u32 %v460, 16
      %v489 = vrot.slane %v487, 1
      %v490 = vsel %vm478, %v485, %v489
      %v492 = vshrl.u32 %v407, 16
      %v494 = vshll.u32 %v407, 16
      %v496 = vrot.slane %v494, 1
      %v497 = vor.u32 %v492, %v496
      %v499 = vshll.u32 %v461, 16
      %v501 = vrot.slane %v499, 1
      %v502 = vsel %vm478, %v497, %v501
      %v504 = vshrl.u32 %v408, 16
      %v506 = vshll.u32 %v408, 16
      %v508 = vrot.slane %v506, 1
      %v509 = vor.u32 %v504, %v508
      %v511 = vshll.u32 %v462, 16
      %v513 = vrot.slane %v511, 1
      %v514 = vsel %vm478, %v509, %v513
      %v516 = vshrl.u32 %v409, 16
      %v518 = vshll.u32 %v409, 16
      %v520 = vrot.slane %v518, 1
      %v521 = vor.u32 %v516, %v520
      %v523 = vshll.u32 %v463, 16
      %v525 = vrot.slane %v523, 1
      %v526 = vsel %vm478, %v521, %v525
      %v528 = vshrl.u32 %v410, 16
      %v530 = vshll.u32 %v410, 16
      %v532 = vrot.slane %v530, 1
      %v533 = vor.u32 %v528, %v532
      %v535 = vshll.u32 %v464, 16
      %v537 = vrot.slane %v535, 1
      %v538 = vsel %vm478, %v533, %v537
      %v540 = vshrl.u32 %v411, 16
      %v542 = vshll.u32 %v411, 16
      %v544 = vrot.slane %v542, 1
      %v545 = vor.u32 %v540, %v544
      %v547 = vshll.u32 %v465, 16
      %v549 = vrot.slane %v547, 1
      %v550 = vsel %vm478, %v545, %v549
      %v552 = vshrl.u32 %v412, 16
      %v554 = vshll.u32 %v412, 16
      %v556 = vrot.slane %v554, 1
      %v557 = vor.u32 %v552, %v556
      %v559 = vshll.u32 %v466, 16
      %v561 = vrot.slane %v559, 1
      %v562 = vsel %vm478, %v557, %v561
      %v564 = vshrl.u32 %v413, 16
      %v566 = vshll.u32 %v413, 16
      %v568 = vrot.slane %v566, 1
      %v569 = vor.u32 %v564, %v568
      %v571 = vshll.u32 %v467, 16
      %v573 = vrot.slane %v571, 1
      %v574 = vsel %vm478, %v569, %v573
      %v576 = vshrl.u32 %v414, 16
      %v578 = vshll.u32 %v414, 16
      %v580 = vrot.slane %v578, 1
      %v581 = vor.u32 %v576, %v580
      %v583 = vshll.u32 %v468, 16
      %v585 = vrot.slane %v583, 1
      %v586 = vsel %vm478, %v581, %v585
      %v588 = vshrl.u32 %v415, 16
      %v590 = vshll.u32 %v415, 16
      %v592 = vrot.slane %v590, 1
      %v593 = vor.u32 %v588, %v592
      %v595 = vshll.u32 %v469, 16
      %v597 = vrot.slane %v595, 1
      %v598 = vsel %vm478, %v593, %v597
      %v600 = vshrl.u32 %v416, 16
      %v602 = vshll.u32 %v416, 16
      %v604 = vrot.slane %v602, 1
      %v605 = vor.u32 %v600, %v604
      %v607 = vshll.u32 %v470, 16
      %v609 = vrot.slane %v607, 1
      %v610 = vsel %vm478, %v605, %v609
      %v612 = vshrl.u32 %v417, 16
      %v614 = vshll.u32 %v417, 16
      %v616 = vrot.slane %v614, 1
      %v617 = vor.u32 %v612, %v616
      %v619 = vshll.u32 %v471, 16
      %v621 = vrot.slane %v619, 1
      %v622 = vsel %vm478, %v617, %v621
      %v624 = vshrl.u32 %v418, 16
      %v626 = vshll.u32 %v418, 16
      %v628 = vrot.slane %v626, 1
      %v629 = vor.u32 %v624, %v628
      %v631 = vshll.u32 %v472, 16
      %v633 = vrot.slane %v631, 1
      %v634 = vsel %vm478, %v629, %v633
      %v636 = vshrl.u32 %v419, 16
      %v638 = vshll.u32 %v419, 16
      %v640 = vrot.slane %v638, 1
      %v641 = vor.u32 %v636, %v640
      %v643 = vshll.u32 %v473, 16
      %v645 = vrot.slane %v643, 1
      %v646 = vsel %vm478, %v641, %v645
      %v648 = vshrl.u32 %v420, 16
      %v650 = vshll.u32 %v420, 16
      %v652 = vrot.slane %v650, 1
      %v653 = vor.u32 %v648, %v652
      %v655 = vshll.u32 %v474, 16
      %v657 = vrot.slane %v655, 1
      %v658 = vsel %vm478, %v653, %v657
      %v660 = vshrl.u32 %v421, 16
      %v662 = vshll.u32 %v421, 16
      %v664 = vrot.slane %v662, 1
      %v665 = vor.u32 %v660, %v664
      %v667 = vshll.u32 %v475, 16
      %v669 = vrot.slane %v667, 1
      %v670 = vsel %vm478, %v665, %v669
      %v672 = vshrl.u32 %v422, 16
      %v674 = vshll.u32 %v422, 16
      %v676 = vrot.slane %v674, 1
      %v677 = vor.u32 %v672, %v676
      %v679 = vshll.u32 %v476, 16
      %v681 = vrot.slane %v679, 1
      %v682 = vsel %vm478, %v677, %v681
      %v684 = vshrl.u32 %v423, 16
      %v686 = vshll.u32 %v423, 16
      %v688 = vrot.slane %v686, 1
      %v689 = vor.u32 %v684, %v688
      %v691 = vshll.u32 %v477, 16
      %v693 = vrot.slane %v691, 1
      %v694 = vsel %vm478, %v689, %v693
      %695 = vrot.lane.b32.xlu0 %v490, 32
      %v696 = vpop.permute.xlu0 %695
      %697 = vrot.lane.b32.xlu0 %v502, 32
      %v698 = vpop.permute.xlu0 %697
      %699 = vrot.lane.b32.xlu0 %v514, 32
      %v700 = vpop.permute.xlu0 %699
      %701 = vrot.lane.b32.xlu0 %v526, 32
      %v702 = vpop.permute.xlu0 %701
      %703 = vrot.lane.b32.xlu0 %v538, 32
      %v704 = vpop.permute.xlu0 %703
      %705 = vrot.lane.b32.xlu0 %v550, 32
      %v706 = vpop.permute.xlu0 %705
      %707 = vrot.lane.b32.xlu0 %v562, 32
      %v708 = vpop.permute.xlu0 %707
      %709 = vrot.lane.b32.xlu0 %v574, 32
      %v710 = vpop.permute.xlu0 %709
      %711 = vrot.lane.b32.xlu0 %v586, 32
      %v712 = vpop.permute.xlu0 %711
      %713 = vrot.lane.b32.xlu0 %v598, 32
      %v714 = vpop.permute.xlu0 %713
      %715 = vrot.lane.b32.xlu0 %v610, 32
      %v716 = vpop.permute.xlu0 %715
      %717 = vrot.lane.b32.xlu0 %v622, 32
      %v718 = vpop.permute.xlu0 %717
      %719 = vrot.lane.b32.xlu0 %v634, 32
      %v720 = vpop.permute.xlu0 %719
      %721 = vrot.lane.b32.xlu0 %v646, 32
      %v722 = vpop.permute.xlu0 %721
      %723 = vrot.lane.b32.xlu0 %v658, 32
      %v724 = vpop.permute.xlu0 %723
      %725 = vrot.lane.b32.xlu0 %v670, 32
      %v726 = vpop.permute.xlu0 %725
      %727 = vrot.lane.b32.xlu0 %v682, 32
      %v728 = vpop.permute.xlu0 %727
      %729 = vrot.lane.b32.xlu0 %v694, 32
      %v730 = vpop.permute.xlu0 %729
      %vm731 = vcmask 1046528
      %v732 = vrot.slane %v406, 1
      %v733 = vrot.slane %v460, 1
      %v734 = vsel %vm731, %v732, %v733
      %v735 = vrot.slane %v407, 1
      %v736 = vrot.slane %v461, 1
      %v737 = vsel %vm731, %v735, %v736
      %v738 = vrot.slane %v408, 1
      %v739 = vrot.slane %v462, 1
      %v740 = vsel %vm731, %v738, %v739
      %v741 = vrot.slane %v409, 1
      %v742 = vrot.slane %v463, 1
      %v743 = vsel %vm731, %v741, %v742
      %v744 = vrot.slane %v410, 1
      %v745 = vrot.slane %v464, 1
      %v746 = vsel %vm731, %v744, %v745
      %v747 = vrot.slane %v411, 1
      %v748 = vrot.slane %v465, 1
      %v749 = vsel %vm731, %v747, %v748
      %v750 = vrot.slane %v412, 1
      %v751 = vrot.slane %v466, 1
      %v752 = vsel %vm731, %v750, %v751
      %v753 = vrot.slane %v413, 1
      %v754 = vrot.slane %v467, 1
      %v755 = vsel %vm731, %v753, %v754
      %v756 = vrot.slane %v414, 1
      %v757 = vrot.slane %v468, 1
      %v758 = vsel %vm731, %v756, %v757
      %v759 = vrot.slane %v415, 1
      %v760 = vrot.slane %v469, 1
      %v761 = vsel %vm731, %v759, %v760
      %v762 = vrot.slane %v416, 1
      %v763 = vrot.slane %v470, 1
      %v764 = vsel %vm731, %v762, %v763
      %v765 = vrot.slane %v417, 1
      %v766 = vrot.slane %v471, 1
      %v767 = vsel %vm731, %v765, %v766
      %v768 = vrot.slane %v418, 1
      %v769 = vrot.slane %v472, 1
      %v770 = vsel %vm731, %v768, %v769
      %v771 = vrot.slane %v419, 1
      %v772 = vrot.slane %v473, 1
      %v773 = vsel %vm731, %v771, %v772
      %v774 = vrot.slane %v420, 1
      %v775 = vrot.slane %v474, 1
      %v776 = vsel %vm731, %v774, %v775
      %v777 = vrot.slane %v421, 1
      %v778 = vrot.slane %v475, 1
      %v779 = vsel %vm731, %v777, %v778
      %v780 = vrot.slane %v422, 1
      %v781 = vrot.slane %v476, 1
      %v782 = vsel %vm731, %v780, %v781
      %v783 = vrot.slane %v423, 1
      %v784 = vrot.slane %v477, 1
      %v785 = vsel %vm731, %v783, %v784
      %786 = vrot.lane.b32.xlu0 %v734, 64
      %v787 = vpop.permute.xlu0 %786
      %788 = vrot.lane.b32.xlu0 %v737, 64
      %v789 = vpop.permute.xlu0 %788
      %790 = vrot.lane.b32.xlu0 %v740, 64
      %v791 = vpop.permute.xlu0 %790
      %792 = vrot.lane.b32.xlu0 %v743, 64
      %v793 = vpop.permute.xlu0 %792
      %794 = vrot.lane.b32.xlu0 %v746, 64
      %v795 = vpop.permute.xlu0 %794
      %796 = vrot.lane.b32.xlu0 %v749, 64
      %v797 = vpop.permute.xlu0 %796
      %798 = vrot.lane.b32.xlu0 %v752, 64
      %v799 = vpop.permute.xlu0 %798
      %800 = vrot.lane.b32.xlu0 %v755, 64
      %v801 = vpop.permute.xlu0 %800
      %802 = vrot.lane.b32.xlu0 %v758, 64
      %v803 = vpop.permute.xlu0 %802
      %804 = vrot.lane.b32.xlu0 %v761, 64
      %v805 = vpop.permute.xlu0 %804
      %806 = vrot.lane.b32.xlu0 %v764, 64
      %v807 = vpop.permute.xlu0 %806
      %808 = vrot.lane.b32.xlu0 %v767, 64
      %v809 = vpop.permute.xlu0 %808
      %810 = vrot.lane.b32.xlu0 %v770, 64
      %v811 = vpop.permute.xlu0 %810
      %812 = vrot.lane.b32.xlu0 %v773, 64
      %v813 = vpop.permute.xlu0 %812
      %814 = vrot.lane.b32.xlu0 %v776, 64
      %v815 = vpop.permute.xlu0 %814
      %816 = vrot.lane.b32.xlu0 %v779, 64
      %v817 = vpop.permute.xlu0 %816
      %818 = vrot.lane.b32.xlu0 %v782, 64
      %v819 = vpop.permute.xlu0 %818
      %820 = vrot.lane.b32.xlu0 %v785, 64
      %v821 = vpop.permute.xlu0 %820
      %vm822 = vcmask 261120
      %v824 = vsel %vm822, %v406, %v696
      %v826 = vsel %vm822, %v407, %v698
      %v828 = vsel %vm822, %v408, %v700
      %v830 = vsel %vm822, %v409, %v702
      %v832 = vsel %vm822, %v410, %v704
      %v834 = vsel %vm822, %v411, %v706
      %v836 = vsel %vm822, %v412, %v708
      %v838 = vsel %vm822, %v413, %v710
      %v840 = vsel %vm822, %v414, %v712
      %v842 = vsel %vm822, %v415, %v714
      %v844 = vsel %vm822, %v416, %v716
      %v846 = vsel %vm822, %v417, %v718
      %v848 = vsel %vm822, %v418, %v720
      %v850 = vsel %vm822, %v419, %v722
      %v852 = vsel %vm822, %v420, %v724
      %v854 = vsel %vm822, %v421, %v726
      %v856 = vsel %vm822, %v422, %v728
      %v858 = vsel %vm822, %v423, %v730
      %vm859 = vcmask 523264
      %v861 = vsel %vm859, %v824, %v787
      %v863 = vsel %vm859, %v826, %v789
      %v865 = vsel %vm859, %v828, %v791
      %v867 = vsel %vm859, %v830, %v793
      %v869 = vsel %vm859, %v832, %v795
      %v871 = vsel %vm859, %v834, %v797
      %v873 = vsel %vm859, %v836, %v799
      %v875 = vsel %vm859, %v838, %v801
      %v877 = vsel %vm859, %v840, %v803
      %v879 = vsel %vm859, %v842, %v805
      %v881 = vsel %vm859, %v844, %v807
      %v883 = vsel %vm859, %v846, %v809
      %v885 = vsel %vm859, %v848, %v811
      %v887 = vsel %vm859, %v850, %v813
      %v889 = vsel %vm859, %v852, %v815
      %v891 = vsel %vm859, %v854, %v817
      %v893 = vsel %vm859, %v856, %v819
      %v895 = vsel %vm859, %v858, %v821
      %v896 = vld [vmem:[%s1] sm:$0xf]
      %v897 = vld [vmem:[%s1 + $0x4] sm:$0xf]
      %v898 = vld [vmem:[%s1 + $0x8] sm:$0xf]
      %v899 = vld [vmem:[%s1 + $0xc] sm:$0xf]
      %v900 = vld [vmem:[%s1 + $0x10] sm:$0xf]
      %v901 = vld [vmem:[%s1 + $0x14] sm:$0xf]
      %v902 = vld [vmem:[%s1 + $0x18] sm:$0xf]
      %v903 = vld [vmem:[%s1 + $0x1c] sm:$0xf]
      %v904 = vld [vmem:[%s1 + $0x20] sm:$0xf]
      %v905 = vld [vmem:[%s1 + $0x24] sm:$0xf]
      %v906 = vld [vmem:[%s1 + $0x28] sm:$0xf]
      %v907 = vld [vmem:[%s1 + $0x2c] sm:$0xf]
      %s908 = scalar_lea.vmem %s1, 48
      %v909 = vld [vmem:[%s908] sm:$0xf]
      %v910 = vld [vmem:[%s908 + $0x4] sm:$0xf]
      %v911 = vld [vmem:[%s908 + $0x8] sm:$0xf]
      %v912 = vld [vmem:[%s908 + $0xc] sm:$0xf]
      %v913 = vld [vmem:[%s908 + $0x10] sm:$0xf]
      %v914 = vld [vmem:[%s908 + $0x14] sm:$0xf]
      %v915 = vld [vmem:[%s908 + $0x18] sm:$0xf]
      %v916 = vld [vmem:[%s908 + $0x1c] sm:$0xf]
      %v917 = vld [vmem:[%s908 + $0x20] sm:$0xf]
      %v918 = vld [vmem:[%s908 + $0x24] sm:$0xf]
      %v919 = vld [vmem:[%s908 + $0x28] sm:$0xf]
      %v920 = vld [vmem:[%s908 + $0x2c] sm:$0xf]
      %v933 = vunpack.c.l.b16 %v909
      %v934 = vunpack.c.l.b16 %v910
      %v935 = vunpack.c.l.b16 %v911
      %v936 = vunpack.c.l.b16 %v912
      %v937 = vunpack.c.l.b16 %v913
      %v938 = vunpack.c.l.b16 %v914
      %v939 = vunpack.c.l.b16 %v915
      %v940 = vunpack.c.l.b16 %v916
      %v941 = vunpack.c.l.b16 %v917
      %v942 = vunpack.c.l.b16 %v918
      %v943 = vunpack.c.l.b16 %v919
      %v944 = vunpack.c.l.b16 %v920
      %v945 = vpack.c.b16 %v934, %v933
      %v946 = vpack.c.b16 %v936, %v935
      %v947 = vpack.c.b16 %v938, %v937
      %v948 = vpack.c.b16 %v940, %v939
      %v949 = vpack.c.b16 %v942, %v941
      %v950 = vpack.c.b16 %v944, %v943
      %vm957 = vcmask 785408
      %v958 = vsel %vm957, %v863, 0
      %v960 = vsel %vm957, %v865, 0
      %v962 = vsel %vm957, %v867, 0
      %v964 = vsel %vm957, %v869, 0
      %v966 = vsel %vm957, %v871, 0
      %v968 = vsel %vm957, %v873, 0
      %v970 = vsel %vm957, %v875, 0
      %v972 = vsel %vm957, %v877, 0
      %v974 = vsel %vm957, %v879, 0
      %v976 = vsel %vm957, %v881, 0
      %v978 = vsel %vm957, %v883, 0
      %v980 = vsel %vm957, %v885, 0
      %v982 = vsel %vm957, %v887, 0
      %v984 = vsel %vm957, %v889, 0
      %v986 = vsel %vm957, %v891, 0
      %v988 = vsel %vm957, %v893, 0
      %990 = vmatpush.bf16.msra.mxu0 0
      %991 = vmatpush.bf16.msra.mxu0 0
      %992 = vmatpush.bf16.msra.mxu0 %v950
      %993 = vmatpush.bf16.msra.mxu0 %v949
      %994 = vmatpush.bf16.msra.mxu0 %v948
      %995 = vmatpush.bf16.msra.mxu0 %v947
      %996 = vmatpush.bf16.msra.mxu0 %v946
      %997 = vmatpush.bf16.msra.mxu0 %v945
      %998 = vmatmul.bf16.gmra.mxu0 %v958
      %v999 = vpop.f32.mrf.mxu0
      %v1000 = vadd.f32 0.0, %v999
      %v1001 = vpop.f32.mrf.mxu0
      %v1002 = vadd.f32 0.0, %v1001
      %1003 = vmatmul.bf16.gmra.mxu0 %v960
      %v1004 = vpop.f32.mrf.mxu0
      %v1005 = vadd.f32 0.0, %v1004
      %v1006 = vpop.f32.mrf.mxu0
      %v1007 = vadd.f32 0.0, %v1006
      %1008 = vmatmul.bf16.gmra.mxu0 %v962
      %v1009 = vpop.f32.mrf.mxu0
      %v1010 = vadd.f32 0.0, %v1009
      %v1011 = vpop.f32.mrf.mxu0
      %v1012 = vadd.f32 0.0, %v1011
      %1013 = vmatmul.bf16.gmra.mxu0 %v964
      %v1014 = vpop.f32.mrf.mxu0
      %v1015 = vadd.f32 0.0, %v1014
      %v1016 = vpop.f32.mrf.mxu0
      %v1017 = vadd.f32 0.0, %v1016
      %1018 = vmatmul.bf16.gmra.mxu0 %v966
      %v1019 = vpop.f32.mrf.mxu0
      %v1020 = vadd.f32 0.0, %v1019
      %v1021 = vpop.f32.mrf.mxu0
      %v1022 = vadd.f32 0.0, %v1021
      %1023 = vmatmul.bf16.gmra.mxu0 %v968
      %v1024 = vpop.f32.mrf.mxu0
      %v1025 = vadd.f32 0.0, %v1024
      %v1026 = vpop.f32.mrf.mxu0
      %v1027 = vadd.f32 0.0, %v1026
      %1028 = vmatmul.bf16.gmra.mxu0 %v970
      %v1029 = vpop.f32.mrf.mxu0
      %v1030 = vadd.f32 0.0, %v1029
      %v1031 = vpop.f32.mrf.mxu0
      %v1032 = vadd.f32 0.0, %v1031
      %1033 = vmatmul.bf16.gmra.mxu0 %v972
      %v1034 = vpop.f32.mrf.mxu0
      %v1035 = vadd.f32 0.0, %v1034
      %v1036 = vpop.f32.mrf.mxu0
      %v1037 = vadd.f32 0.0, %v1036
      %1038 = vmatmul.bf16.gmra.mxu0 %v974
      %v1039 = vpop.f32.mrf.mxu0
      %v1040 = vadd.f32 0.0, %v1039
      %v1041 = vpop.f32.mrf.mxu0
      %v1042 = vadd.f32 0.0, %v1041
      %1043 = vmatmul.bf16.gmra.mxu0 %v976
      %v1044 = vpop.f32.mrf.mxu0
      %v1045 = vadd.f32 0.0, %v1044
      %v1046 = vpop.f32.mrf.mxu0
      %v1047 = vadd.f32 0.0, %v1046
      %1048 = vmatmul.bf16.gmra.mxu0 %v978
      %v1049 = vpop.f32.mrf.mxu0
      %v1050 = vadd.f32 0.0, %v1049
      %v1051 = vpop.f32.mrf.mxu0
      %v1052 = vadd.f32 0.0, %v1051
      %1053 = vmatmul.bf16.gmra.mxu0 %v980
      %v1054 = vpop.f32.mrf.mxu0
      %v1055 = vadd.f32 0.0, %v1054
      %v1056 = vpop.f32.mrf.mxu0
      %v1057 = vadd.f32 0.0, %v1056
      %1058 = vmatmul.bf16.gmra.mxu0 %v982
      %v1059 = vpop.f32.mrf.mxu0
      %v1060 = vadd.f32 0.0, %v1059
      %v1061 = vpop.f32.mrf.mxu0
      %v1062 = vadd.f32 0.0, %v1061
      %1063 = vmatmul.bf16.gmra.mxu0 %v984
      %v1064 = vpop.f32.mrf.mxu0
      %v1065 = vadd.f32 0.0, %v1064
      %v1066 = vpop.f32.mrf.mxu0
      %v1067 = vadd.f32 0.0, %v1066
      %1068 = vmatmul.bf16.gmra.mxu0 %v986
      %v1069 = vpop.f32.mrf.mxu0
      %v1070 = vadd.f32 0.0, %v1069
      %v1071 = vpop.f32.mrf.mxu0
      %v1072 = vadd.f32 0.0, %v1071
      %1073 = vmatmul.bf16.gmra.mxu0 %v988
      %v1074 = vpop.f32.mrf.mxu0
      %v1075 = vadd.f32 0.0, %v1074
      %v1076 = vpop.f32.mrf.mxu0
      %v1077 = vadd.f32 0.0, %v1076
      %1078 = vdwg.mxu0
      %v1091 = vunpack.c.l.b16 %v896
      %v1092 = vunpack.c.l.b16 %v897
      %v1093 = vunpack.c.l.b16 %v898
      %v1094 = vunpack.c.l.b16 %v899
      %v1095 = vunpack.c.l.b16 %v900
      %v1096 = vunpack.c.l.b16 %v901
      %v1097 = vunpack.c.l.b16 %v902
      %v1098 = vunpack.c.l.b16 %v903
      %v1099 = vunpack.c.l.b16 %v904
      %v1100 = vunpack.c.l.b16 %v905
      %v1101 = vunpack.c.l.b16 %v906
      %v1102 = vunpack.c.l.b16 %v907
      %v1103 = vpack.c.b16 %v1092, %v1091
      %v1104 = vpack.c.b16 %v1094, %v1093
      %v1105 = vpack.c.b16 %v1096, %v1095
      %v1106 = vpack.c.b16 %v1098, %v1097
      %v1107 = vpack.c.b16 %v1100, %v1099
      %v1108 = vpack.c.b16 %v1102, %v1101
      %v1115 = vsel %vm957, %v861, 0
      %1117 = vmatpush.bf16.msra.mxu0 0
      %1118 = vmatpush.bf16.msra.mxu0 0
      %1119 = vmatpush.bf16.msra.mxu0 %v1108
      %1120 = vmatpush.bf16.msra.mxu0 %v1107
      %1121 = vmatpush.bf16.msra.mxu0 %v1106
      %1122 = vmatpush.bf16.msra.mxu0 %v1105
      %1123 = vmatpush.bf16.msra.mxu0 %v1104
      %1124 = vmatpush.bf16.msra.mxu0 %v1103
      %1125 = vmatmul.bf16.gmra.mxu0 %v1115
      %v1126 = vpop.f32.mrf.mxu0
      %v1127 = vadd.f32 %v1000, %v1126
      %v1128 = vpop.f32.mrf.mxu0
      %v1129 = vadd.f32 %v1002, %v1128
      %1130 = vmatmul.bf16.gmra.mxu0 %v958
      %v1131 = vpop.f32.mrf.mxu0
      %v1132 = vadd.f32 %v1005, %v1131
      %v1133 = vpop.f32.mrf.mxu0
      %v1134 = vadd.f32 %v1007, %v1133
      %1135 = vmatmul.bf16.gmra.mxu0 %v960
      %v1136 = vpop.f32.mrf.mxu0
      %v1137 = vadd.f32 %v1010, %v1136
      %v1138 = vpop.f32.mrf.mxu0
      %v1139 = vadd.f32 %v1012, %v1138
      %1140 = vmatmul.bf16.gmra.mxu0 %v962
      %v1141 = vpop.f32.mrf.mxu0
      %v1142 = vadd.f32 %v1015, %v1141
      %v1143 = vpop.f32.mrf.mxu0
      %v1144 = vadd.f32 %v1017, %v1143
      %1145 = vmatmul.bf16.gmra.mxu0 %v964
      %v1146 = vpop.f32.mrf.mxu0
      %v1147 = vadd.f32 %v1020, %v1146
      %v1148 = vpop.f32.mrf.mxu0
      %v1149 = vadd.f32 %v1022, %v1148
      %1150 = vmatmul.bf16.gmra.mxu0 %v966
      %v1151 = vpop.f32.mrf.mxu0
      %v1152 = vadd.f32 %v1025, %v1151
      %v1153 = vpop.f32.mrf.mxu0
      %v1154 = vadd.f32 %v1027, %v1153
      %1155 = vmatmul.bf16.gmra.mxu0 %v968
      %v1156 = vpop.f32.mrf.mxu0
      %v1157 = vadd.f32 %v1030, %v1156
      %v1158 = vpop.f32.mrf.mxu0
      %v1159 = vadd.f32 %v1032, %v1158
      %1160 = vmatmul.bf16.gmra.mxu0 %v970
      %v1161 = vpop.f32.mrf.mxu0
      %v1162 = vadd.f32 %v1035, %v1161
      %v1163 = vpop.f32.mrf.mxu0
      %v1164 = vadd.f32 %v1037, %v1163
      %1165 = vmatmul.bf16.gmra.mxu0 %v972
      %v1166 = vpop.f32.mrf.mxu0
      %v1167 = vadd.f32 %v1040, %v1166
      %v1168 = vpop.f32.mrf.mxu0
      %v1169 = vadd.f32 %v1042, %v1168
      %1170 = vmatmul.bf16.gmra.mxu0 %v974
      %v1171 = vpop.f32.mrf.mxu0
      %v1172 = vadd.f32 %v1045, %v1171
      %v1173 = vpop.f32.mrf.mxu0
      %v1174 = vadd.f32 %v1047, %v1173
      %1175 = vmatmul.bf16.gmra.mxu0 %v976
      %v1176 = vpop.f32.mrf.mxu0
      %v1177 = vadd.f32 %v1050, %v1176
      %v1178 = vpop.f32.mrf.mxu0
      %v1179 = vadd.f32 %v1052, %v1178
      %1180 = vmatmul.bf16.gmra.mxu0 %v978
      %v1181 = vpop.f32.mrf.mxu0
      %v1182 = vadd.f32 %v1055, %v1181
      %v1183 = vpop.f32.mrf.mxu0
      %v1184 = vadd.f32 %v1057, %v1183
      %1185 = vmatmul.bf16.gmra.mxu0 %v980
      %v1186 = vpop.f32.mrf.mxu0
      %v1187 = vadd.f32 %v1060, %v1186
      %v1188 = vpop.f32.mrf.mxu0
      %v1189 = vadd.f32 %v1062, %v1188
      %1190 = vmatmul.bf16.gmra.mxu0 %v982
      %v1191 = vpop.f32.mrf.mxu0
      %v1192 = vadd.f32 %v1065, %v1191
      %v1193 = vpop.f32.mrf.mxu0
      %v1194 = vadd.f32 %v1067, %v1193
      %1195 = vmatmul.bf16.gmra.mxu0 %v984
      %v1196 = vpop.f32.mrf.mxu0
      %v1197 = vadd.f32 %v1070, %v1196
      %v1198 = vpop.f32.mrf.mxu0
      %v1199 = vadd.f32 %v1072, %v1198
      %1200 = vmatmul.bf16.gmra.mxu0 %v986
      %v1201 = vpop.f32.mrf.mxu0
      %v1202 = vadd.f32 %v1075, %v1201
      %v1203 = vpop.f32.mrf.mxu0
      %v1204 = vadd.f32 %v1077, %v1203
      %1205 = vdwg.mxu0
      %s1206 = scalar_lea.vmem %s1, 96
      %v1207 = vld [vmem:[%s1206] sm:$0xf]
      %v1208 = vld [vmem:[%s1206 + $0x4] sm:$0xf]
      %v1209 = vld [vmem:[%s1206 + $0x8] sm:$0xf]
      %v1210 = vld [vmem:[%s1206 + $0xc] sm:$0xf]
      %v1211 = vld [vmem:[%s1206 + $0x10] sm:$0xf]
      %v1212 = vld [vmem:[%s1206 + $0x14] sm:$0xf]
      %v1213 = vld [vmem:[%s1206 + $0x18] sm:$0xf]
      %v1214 = vld [vmem:[%s1206 + $0x1c] sm:$0xf]
      %v1215 = vld [vmem:[%s1206 + $0x20] sm:$0xf]
      %v1216 = vld [vmem:[%s1206 + $0x24] sm:$0xf]
      %v1217 = vld [vmem:[%s1206 + $0x28] sm:$0xf]
      %v1218 = vld [vmem:[%s1206 + $0x2c] sm:$0xf]
      %v1231 = vunpack.c.l.b16 %v1207
      %v1232 = vunpack.c.l.b16 %v1208
      %v1233 = vunpack.c.l.b16 %v1209
      %v1234 = vunpack.c.l.b16 %v1210
      %v1235 = vunpack.c.l.b16 %v1211
      %v1236 = vunpack.c.l.b16 %v1212
      %v1237 = vunpack.c.l.b16 %v1213
      %v1238 = vunpack.c.l.b16 %v1214
      %v1239 = vunpack.c.l.b16 %v1215
      %v1240 = vunpack.c.l.b16 %v1216
      %v1241 = vunpack.c.l.b16 %v1217
      %v1242 = vunpack.c.l.b16 %v1218
      %v1243 = vpack.c.b16 %v1232, %v1231
      %v1244 = vpack.c.b16 %v1234, %v1233
      %v1245 = vpack.c.b16 %v1236, %v1235
      %v1246 = vpack.c.b16 %v1238, %v1237
      %v1247 = vpack.c.b16 %v1240, %v1239
      %v1248 = vpack.c.b16 %v1242, %v1241
      %v1255 = vsel %vm957, %v895, 0
      %1257 = vmatpush.bf16.msra.mxu0 0
      %1258 = vmatpush.bf16.msra.mxu0 0
      %1259 = vmatpush.bf16.msra.mxu0 %v1248
      %1260 = vmatpush.bf16.msra.mxu0 %v1247
      %1261 = vmatpush.bf16.msra.mxu0 %v1246
      %1262 = vmatpush.bf16.msra.mxu0 %v1245
      %1263 = vmatpush.bf16.msra.mxu0 %v1244
      %1264 = vmatpush.bf16.msra.mxu0 %v1243
      %1265 = vmatmul.bf16.gmra.mxu0 %v960
      %v1266 = vpop.f32.mrf.mxu0
      %v1267 = vadd.f32 0.0, %v1266
      %v1268 = vpop.f32.mrf.mxu0
      %v1269 = vadd.f32 0.0, %v1268
      %1270 = vmatmul.bf16.gmra.mxu0 %v962
      %v1271 = vpop.f32.mrf.mxu0
      %v1272 = vadd.f32 0.0, %v1271
      %v1273 = vpop.f32.mrf.mxu0
      %v1274 = vadd.f32 0.0, %v1273
      %1275 = vmatmul.bf16.gmra.mxu0 %v964
      %v1276 = vpop.f32.mrf.mxu0
      %v1277 = vadd.f32 0.0, %v1276
      %v1278 = vpop.f32.mrf.mxu0
      %v1279 = vadd.f32 0.0, %v1278
      %1280 = vmatmul.bf16.gmra.mxu0 %v966
      %v1281 = vpop.f32.mrf.mxu0
      %v1282 = vadd.f32 0.0, %v1281
      %v1283 = vpop.f32.mrf.mxu0
      %v1284 = vadd.f32 0.0, %v1283
      %1285 = vmatmul.bf16.gmra.mxu0 %v968
      %v1286 = vpop.f32.mrf.mxu0
      %v1287 = vadd.f32 0.0, %v1286
      %v1288 = vpop.f32.mrf.mxu0
      %v1289 = vadd.f32 0.0, %v1288
      %1290 = vmatmul.bf16.gmra.mxu0 %v970
      %v1291 = vpop.f32.mrf.mxu0
      %v1292 = vadd.f32 0.0, %v1291
      %v1293 = vpop.f32.mrf.mxu0
      %v1294 = vadd.f32 0.0, %v1293
      %1295 = vmatmul.bf16.gmra.mxu0 %v972
      %v1296 = vpop.f32.mrf.mxu0
      %v1297 = vadd.f32 0.0, %v1296
      %v1298 = vpop.f32.mrf.mxu0
      %v1299 = vadd.f32 0.0, %v1298
      %1300 = vmatmul.bf16.gmra.mxu0 %v974
      %v1301 = vpop.f32.mrf.mxu0
      %v1302 = vadd.f32 0.0, %v1301
      %v1303 = vpop.f32.mrf.mxu0
      %v1304 = vadd.f32 0.0, %v1303
      %1305 = vmatmul.bf16.gmra.mxu0 %v976
      %v1306 = vpop.f32.mrf.mxu0
      %v1307 = vadd.f32 0.0, %v1306
      %v1308 = vpop.f32.mrf.mxu0
      %v1309 = vadd.f32 0.0, %v1308
      %1310 = vmatmul.bf16.gmra.mxu0 %v978
      %v1311 = vpop.f32.mrf.mxu0
      %v1312 = vadd.f32 0.0, %v1311
      %v1313 = vpop.f32.mrf.mxu0
      %v1314 = vadd.f32 0.0, %v1313
      %1315 = vmatmul.bf16.gmra.mxu0 %v980
      %v1316 = vpop.f32.mrf.mxu0
      %v1317 = vadd.f32 0.0, %v1316
      %v1318 = vpop.f32.mrf.mxu0
      %v1319 = vadd.f32 0.0, %v1318
      %1320 = vmatmul.bf16.gmra.mxu0 %v982
      %v1321 = vpop.f32.mrf.mxu0
      %v1322 = vadd.f32 0.0, %v1321
      %v1323 = vpop.f32.mrf.mxu0
      %v1324 = vadd.f32 0.0, %v1323
      %1325 = vmatmul.bf16.gmra.mxu0 %v984
      %v1326 = vpop.f32.mrf.mxu0
      %v1327 = vadd.f32 0.0, %v1326
      %v1328 = vpop.f32.mrf.mxu0
      %v1329 = vadd.f32 0.0, %v1328
      %1330 = vmatmul.bf16.gmra.mxu0 %v986
      %v1331 = vpop.f32.mrf.mxu0
      %v1332 = vadd.f32 0.0, %v1331
      %v1333 = vpop.f32.mrf.mxu0
      %v1334 = vadd.f32 0.0, %v1333
      %1335 = vmatmul.bf16.gmra.mxu0 %v988
      %v1336 = vpop.f32.mrf.mxu0
      %v1337 = vadd.f32 0.0, %v1336
      %v1338 = vpop.f32.mrf.mxu0
      %v1339 = vadd.f32 0.0, %v1338
      %1340 = vmatmul.bf16.gmra.mxu0 %v1255
      %v1341 = vpop.f32.mrf.mxu0
      %v1342 = vadd.f32 0.0, %v1341
      %v1343 = vpop.f32.mrf.mxu0
      %v1344 = vadd.f32 0.0, %v1343
      %1345 = vdwg.mxu0
      %v1346 = vadd.f32 %v1127, %v1267
      %v1347 = vadd.f32 %v1129, %v1269
      %v1348 = vadd.f32 %v1132, %v1272
      %v1349 = vadd.f32 %v1134, %v1274
      %v1350 = vadd.f32 %v1137, %v1277
      %v1351 = vadd.f32 %v1139, %v1279
      %v1352 = vadd.f32 %v1142, %v1282
      %v1353 = vadd.f32 %v1144, %v1284
      %v1354 = vadd.f32 %v1147, %v1287
      %v1355 = vadd.f32 %v1149, %v1289
      %v1356 = vadd.f32 %v1152, %v1292
      %v1357 = vadd.f32 %v1154, %v1294
      %v1358 = vadd.f32 %v1157, %v1297
      %v1359 = vadd.f32 %v1159, %v1299
      %v1360 = vadd.f32 %v1162, %v1302
      %v1361 = vadd.f32 %v1164, %v1304
      %v1362 = vadd.f32 %v1167, %v1307
      %v1363 = vadd.f32 %v1169, %v1309
      %v1364 = vadd.f32 %v1172, %v1312
      %v1365 = vadd.f32 %v1174, %v1314
      %v1366 = vadd.f32 %v1177, %v1317
      %v1367 = vadd.f32 %v1179, %v1319
      %v1368 = vadd.f32 %v1182, %v1322
      %v1369 = vadd.f32 %v1184, %v1324
      %v1370 = vadd.f32 %v1187, %v1327
      %v1371 = vadd.f32 %v1189, %v1329
      %v1372 = vadd.f32 %v1192, %v1332
      %v1373 = vadd.f32 %v1194, %v1334
      %v1374 = vadd.f32 %v1197, %v1337
      %v1375 = vadd.f32 %v1199, %v1339
      %v1376 = vadd.f32 %v1202, %v1342
      %v1377 = vadd.f32 %v1204, %v1344
      %v1378 = vld [vmem:[%s2] sm:$0x1]
      %v1380 = vperm.slane %v1378, 0
      %v1382 = vadd.f32 %v1346, %v1380
      %v1383 = vadd.f32 %v1347, %v1380
      %v1384 = vadd.f32 %v1348, %v1380
      %v1385 = vadd.f32 %v1349, %v1380
      %v1386 = vadd.f32 %v1350, %v1380
      %v1387 = vadd.f32 %v1351, %v1380
      %v1388 = vadd.f32 %v1352, %v1380
      %v1389 = vadd.f32 %v1353, %v1380
      %v1390 = vadd.f32 %v1354, %v1380
      %v1391 = vadd.f32 %v1355, %v1380
      %v1392 = vadd.f32 %v1356, %v1380
      %v1393 = vadd.f32 %v1357, %v1380
      %v1394 = vadd.f32 %v1358, %v1380
      %v1395 = vadd.f32 %v1359, %v1380
      %v1396 = vadd.f32 %v1360, %v1380
      %v1397 = vadd.f32 %v1361, %v1380
      %v1398 = vadd.f32 %v1362, %v1380
      %v1399 = vadd.f32 %v1363, %v1380
      %v1400 = vadd.f32 %v1364, %v1380
      %v1401 = vadd.f32 %v1365, %v1380
      %v1402 = vadd.f32 %v1366, %v1380
      %v1403 = vadd.f32 %v1367, %v1380
      %v1404 = vadd.f32 %v1368, %v1380
      %v1405 = vadd.f32 %v1369, %v1380
      %v1406 = vadd.f32 %v1370, %v1380
      %v1407 = vadd.f32 %v1371, %v1380
      %v1408 = vadd.f32 %v1372, %v1380
      %v1409 = vadd.f32 %v1373, %v1380
      %v1410 = vadd.f32 %v1374, %v1380
      %v1411 = vadd.f32 %v1375, %v1380
      %v1412 = vadd.f32 %v1376, %v1380
      %v1413 = vadd.f32 %v1377, %v1380
      %v1414 = vmax.f32 %v1382, 0.0
      %v1415 = vmax.f32 %v1383, 0.0
      %v1416 = vmax.f32 %v1384, 0.0
      %v1417 = vmax.f32 %v1385, 0.0
      %v1418 = vmax.f32 %v1386, 0.0
      %v1419 = vmax.f32 %v1387, 0.0
      %v1420 = vmax.f32 %v1388, 0.0
      %v1421 = vmax.f32 %v1389, 0.0
      %v1422 = vmax.f32 %v1390, 0.0
      %v1423 = vmax.f32 %v1391, 0.0
      %v1424 = vmax.f32 %v1392, 0.0
      %v1425 = vmax.f32 %v1393, 0.0
      %v1426 = vmax.f32 %v1394, 0.0
      %v1427 = vmax.f32 %v1395, 0.0
      %v1428 = vmax.f32 %v1396, 0.0
      %v1429 = vmax.f32 %v1397, 0.0
      %v1430 = vmax.f32 %v1398, 0.0
      %v1431 = vmax.f32 %v1399, 0.0
      %v1432 = vmax.f32 %v1400, 0.0
      %v1433 = vmax.f32 %v1401, 0.0
      %v1434 = vmax.f32 %v1402, 0.0
      %v1435 = vmax.f32 %v1403, 0.0
      %v1436 = vmax.f32 %v1404, 0.0
      %v1437 = vmax.f32 %v1405, 0.0
      %v1438 = vmax.f32 %v1406, 0.0
      %v1439 = vmax.f32 %v1407, 0.0
      %v1440 = vmax.f32 %v1408, 0.0
      %v1441 = vmax.f32 %v1409, 0.0
      %v1442 = vmax.f32 %v1410, 0.0
      %v1443 = vmax.f32 %v1411, 0.0
      %v1444 = vmax.f32 %v1412, 0.0
      %v1445 = vmax.f32 %v1413, 0.0
      %v1446 = vpack.c.bf16 %v1414, %v1414
      %v1447 = vpack.c.bf16 %v1415, %v1415
      %v1448 = vpack.c.bf16 %v1416, %v1416
      %v1449 = vpack.c.bf16 %v1417, %v1417
      %v1450 = vpack.c.bf16 %v1418, %v1418
      %v1451 = vpack.c.bf16 %v1419, %v1419
      %v1452 = vpack.c.bf16 %v1420, %v1420
      %v1453 = vpack.c.bf16 %v1421, %v1421
      %v1454 = vpack.c.bf16 %v1422, %v1422
      %v1455 = vpack.c.bf16 %v1423, %v1423
      %v1456 = vpack.c.bf16 %v1424, %v1424
      %v1457 = vpack.c.bf16 %v1425, %v1425
      %v1458 = vpack.c.bf16 %v1426, %v1426
      %v1459 = vpack.c.bf16 %v1427, %v1427
      %v1460 = vpack.c.bf16 %v1428, %v1428
      %v1461 = vpack.c.bf16 %v1429, %v1429
      %v1462 = vpack.c.bf16 %v1430, %v1430
      %v1463 = vpack.c.bf16 %v1431, %v1431
      %v1464 = vpack.c.bf16 %v1432, %v1432
      %v1465 = vpack.c.bf16 %v1433, %v1433
      %v1466 = vpack.c.bf16 %v1434, %v1434
      %v1467 = vpack.c.bf16 %v1435, %v1435
      %v1468 = vpack.c.bf16 %v1436, %v1436
      %v1469 = vpack.c.bf16 %v1437, %v1437
      %v1470 = vpack.c.bf16 %v1438, %v1438
      %v1471 = vpack.c.bf16 %v1439, %v1439
      %v1472 = vpack.c.bf16 %v1440, %v1440
      %v1473 = vpack.c.bf16 %v1441, %v1441
      %v1474 = vpack.c.bf16 %v1442, %v1442
      %v1475 = vpack.c.bf16 %v1443, %v1443
      %v1476 = vpack.c.bf16 %v1444, %v1444
      %v1477 = vpack.c.bf16 %v1445, %v1445
      %v1510 = vunpack.c.l.b16 %v1446
      %v1511 = vunpack.c.l.b16 %v1447
      %v1512 = vunpack.c.l.b16 %v1448
      %v1513 = vunpack.c.l.b16 %v1449
      %v1514 = vunpack.c.l.b16 %v1450
      %v1515 = vunpack.c.l.b16 %v1451
      %v1516 = vunpack.c.l.b16 %v1452
      %v1517 = vunpack.c.l.b16 %v1453
      %v1518 = vunpack.c.l.b16 %v1454
      %v1519 = vunpack.c.l.b16 %v1455
      %v1520 = vunpack.c.l.b16 %v1456
      %v1521 = vunpack.c.l.b16 %v1457
      %v1522 = vunpack.c.l.b16 %v1458
      %v1523 = vunpack.c.l.b16 %v1459
      %v1524 = vunpack.c.l.b16 %v1460
      %v1525 = vunpack.c.l.b16 %v1461
      %v1526 = vunpack.c.l.b16 %v1462
      %v1527 = vunpack.c.l.b16 %v1463
      %v1528 = vunpack.c.l.b16 %v1464
      %v1529 = vunpack.c.l.b16 %v1465
      %v1530 = vunpack.c.l.b16 %v1466
      %v1531 = vunpack.c.l.b16 %v1467
      %v1532 = vunpack.c.l.b16 %v1468
      %v1533 = vunpack.c.l.b16 %v1469
      %v1534 = vunpack.c.l.b16 %v1470
      %v1535 = vunpack.c.l.b16 %v1471
      %v1536 = vunpack.c.l.b16 %v1472
      %v1537 = vunpack.c.l.b16 %v1473
      %v1538 = vunpack.c.l.b16 %v1474
      %v1539 = vunpack.c.l.b16 %v1475
      %v1540 = vunpack.c.l.b16 %v1476
      %v1541 = vunpack.c.l.b16 %v1477
      %v1542 = vpack.c.b16 %v1511, %v1510
      %v1543 = vpack.c.b16 %v1513, %v1512
      %v1544 = vpack.c.b16 %v1515, %v1514
      %v1545 = vpack.c.b16 %v1517, %v1516
      %v1546 = vpack.c.b16 %v1519, %v1518
      %v1547 = vpack.c.b16 %v1521, %v1520
      %v1548 = vpack.c.b16 %v1523, %v1522
      %v1549 = vpack.c.b16 %v1525, %v1524
      %v1550 = vpack.c.b16 %v1527, %v1526
      %v1551 = vpack.c.b16 %v1529, %v1528
      %v1552 = vpack.c.b16 %v1531, %v1530
      %v1553 = vpack.c.b16 %v1533, %v1532
      %v1554 = vpack.c.b16 %v1535, %v1534
      %v1555 = vpack.c.b16 %v1537, %v1536
      %v1556 = vpack.c.b16 %v1539, %v1538
      %v1557 = vpack.c.b16 %v1541, %v1540
      %v1559 = vshrl.u32 %v1542, 16
      %v1561 = vshll.u32 %v1542, 16
      %v1563 = vrot.slane %v1561, 1
      %v1564 = vor.u32 %v1559, %v1563
      %v1566 = vshll.u32 0, 16
      %v1568 = vrot.slane %v1566, 1
      %v1569 = vsel %vm478, %v1564, %v1568
      %v1571 = vshrl.u32 %v1543, 16
      %v1573 = vshll.u32 %v1543, 16
      %v1575 = vrot.slane %v1573, 1
      %v1576 = vor.u32 %v1571, %v1575
      %v1577 = vsel %vm478, %v1576, %v1568
      %v1579 = vshrl.u32 %v1544, 16
      %v1581 = vshll.u32 %v1544, 16
      %v1583 = vrot.slane %v1581, 1
      %v1584 = vor.u32 %v1579, %v1583
      %v1585 = vsel %vm478, %v1584, %v1568
      %v1587 = vshrl.u32 %v1545, 16
      %v1589 = vshll.u32 %v1545, 16
      %v1591 = vrot.slane %v1589, 1
      %v1592 = vor.u32 %v1587, %v1591
      %v1593 = vsel %vm478, %v1592, %v1568
      %v1595 = vshrl.u32 %v1546, 16
      %v1597 = vshll.u32 %v1546, 16
      %v1599 = vrot.slane %v1597, 1
      %v1600 = vor.u32 %v1595, %v1599
      %v1601 = vsel %vm478, %v1600, %v1568
      %v1603 = vshrl.u32 %v1547, 16
      %v1605 = vshll.u32 %v1547, 16
      %v1607 = vrot.slane %v1605, 1
      %v1608 = vor.u32 %v1603, %v1607
      %v1609 = vsel %vm478, %v1608, %v1568
      %v1611 = vshrl.u32 %v1548, 16
      %v1613 = vshll.u32 %v1548, 16
      %v1615 = vrot.slane %v1613, 1
      %v1616 = vor.u32 %v1611, %v1615
      %v1617 = vsel %vm478, %v1616, %v1568
      %v1619 = vshrl.u32 %v1549, 16
      %v1621 = vshll.u32 %v1549, 16
      %v1623 = vrot.slane %v1621, 1
      %v1624 = vor.u32 %v1619, %v1623
      %v1625 = vsel %vm478, %v1624, %v1568
      %v1627 = vshrl.u32 %v1550, 16
      %v1629 = vshll.u32 %v1550, 16
      %v1631 = vrot.slane %v1629, 1
      %v1632 = vor.u32 %v1627, %v1631
      %v1633 = vsel %vm478, %v1632, %v1568
      %v1635 = vshrl.u32 %v1551, 16
      %v1637 = vshll.u32 %v1551, 16
      %v1639 = vrot.slane %v1637, 1
      %v1640 = vor.u32 %v1635, %v1639
      %v1641 = vsel %vm478, %v1640, %v1568
      %v1643 = vshrl.u32 %v1552, 16
      %v1645 = vshll.u32 %v1552, 16
      %v1647 = vrot.slane %v1645, 1
      %v1648 = vor.u32 %v1643, %v1647
      %v1649 = vsel %vm478, %v1648, %v1568
      %v1651 = vshrl.u32 %v1553, 16
      %v1653 = vshll.u32 %v1553, 16
      %v1655 = vrot.slane %v1653, 1
      %v1656 = vor.u32 %v1651, %v1655
      %v1657 = vsel %vm478, %v1656, %v1568
      %v1659 = vshrl.u32 %v1554, 16
      %v1661 = vshll.u32 %v1554, 16
      %v1663 = vrot.slane %v1661, 1
      %v1664 = vor.u32 %v1659, %v1663
      %v1665 = vsel %vm478, %v1664, %v1568
      %v1667 = vshrl.u32 %v1555, 16
      %v1669 = vshll.u32 %v1555, 16
      %v1671 = vrot.slane %v1669, 1
      %v1672 = vor.u32 %v1667, %v1671
      %v1673 = vsel %vm478, %v1672, %v1568
      %v1675 = vshrl.u32 %v1556, 16
      %v1677 = vshll.u32 %v1556, 16
      %v1679 = vrot.slane %v1677, 1
      %v1680 = vor.u32 %v1675, %v1679
      %v1681 = vsel %vm478, %v1680, %v1568
      %v1683 = vshrl.u32 %v1557, 16
      %v1685 = vshll.u32 %v1557, 16
      %v1687 = vrot.slane %v1685, 1
      %v1688 = vor.u32 %v1683, %v1687
      %v1689 = vsel %vm478, %v1688, %v1568
      %1690 = vrot.lane.b32.xlu0 %v1569, 64
      %v1691 = vpop.permute.xlu0 %1690
      %1692 = vrot.lane.b32.xlu0 %v1577, 64
      %v1693 = vpop.permute.xlu0 %1692
      %1694 = vrot.lane.b32.xlu0 %v1585, 64
      %v1695 = vpop.permute.xlu0 %1694
      %1696 = vrot.lane.b32.xlu0 %v1593, 64
      %v1697 = vpop.permute.xlu0 %1696
      %1698 = vrot.lane.b32.xlu0 %v1601, 64
      %v1699 = vpop.permute.xlu0 %1698
      %1700 = vrot.lane.b32.xlu0 %v1609, 64
      %v1701 = vpop.permute.xlu0 %1700
      %1702 = vrot.lane.b32.xlu0 %v1617, 64
      %v1703 = vpop.permute.xlu0 %1702
      %1704 = vrot.lane.b32.xlu0 %v1625, 64
      %v1705 = vpop.permute.xlu0 %1704
      %1706 = vrot.lane.b32.xlu0 %v1633, 64
      %v1707 = vpop.permute.xlu0 %1706
      %1708 = vrot.lane.b32.xlu0 %v1641, 64
      %v1709 = vpop.permute.xlu0 %1708
      %1710 = vrot.lane.b32.xlu0 %v1649, 64
      %v1711 = vpop.permute.xlu0 %1710
      %1712 = vrot.lane.b32.xlu0 %v1657, 64
      %v1713 = vpop.permute.xlu0 %1712
      %1714 = vrot.lane.b32.xlu0 %v1665, 64
      %v1715 = vpop.permute.xlu0 %1714
      %1716 = vrot.lane.b32.xlu0 %v1673, 64
      %v1717 = vpop.permute.xlu0 %1716
      %1718 = vrot.lane.b32.xlu0 %v1681, 64
      %v1719 = vpop.permute.xlu0 %1718
      %1720 = vrot.lane.b32.xlu0 %v1689, 64
      %v1721 = vpop.permute.xlu0 %1720
      %v1723 = vsel %vm859, %v1542, %v1691
      %v1726 = vsel %vm859, %v1543, %v1693
      %v1729 = vsel %vm859, %v1544, %v1695
      %v1732 = vsel %vm859, %v1545, %v1697
      %v1735 = vsel %vm859, %v1546, %v1699
      %v1738 = vsel %vm859, %v1547, %v1701
      %v1741 = vsel %vm859, %v1548, %v1703
      %v1744 = vsel %vm859, %v1549, %v1705
      %v1747 = vsel %vm859, %v1550, %v1707
      %v1750 = vsel %vm859, %v1551, %v1709
      %v1753 = vsel %vm859, %v1552, %v1711
      %v1756 = vsel %vm859, %v1553, %v1713
      %v1759 = vsel %vm859, %v1554, %v1715
      %v1762 = vsel %vm859, %v1555, %v1717
      %v1765 = vsel %vm859, %v1556, %v1719
      %v1768 = vsel %vm859, %v1557, %v1721
      %v1770 = vshrl.u32 0, 16
      %v1772 = vor.u32 %v1770, %v1568
      %1773 = vrot.lane.b32.xlu0 %v1772, 64
      %v1774 = vpop.permute.xlu0 %1773
      %v1776 = vsel %vm859, 0, %v1774
      %v1794 = vrot.slane %v1723, 1
      %v1795 = vrot.slane %v1776, 1
      %v1796 = vsel %vm731, %v1794, %v1795
      %v1797 = vrot.slane %v1726, 1
      %v1798 = vsel %vm731, %v1797, %v1795
      %v1799 = vrot.slane %v1729, 1
      %v1800 = vsel %vm731, %v1799, %v1795
      %v1801 = vrot.slane %v1732, 1
      %v1802 = vsel %vm731, %v1801, %v1795
      %v1803 = vrot.slane %v1735, 1
      %v1804 = vsel %vm731, %v1803, %v1795
      %v1805 = vrot.slane %v1738, 1
      %v1806 = vsel %vm731, %v1805, %v1795
      %v1807 = vrot.slane %v1741, 1
      %v1808 = vsel %vm731, %v1807, %v1795
      %v1809 = vrot.slane %v1744, 1
      %v1810 = vsel %vm731, %v1809, %v1795
      %v1811 = vrot.slane %v1747, 1
      %v1812 = vsel %vm731, %v1811, %v1795
      %v1813 = vrot.slane %v1750, 1
      %v1814 = vsel %vm731, %v1813, %v1795
      %v1815 = vrot.slane %v1753, 1
      %v1816 = vsel %vm731, %v1815, %v1795
      %v1817 = vrot.slane %v1756, 1
      %v1818 = vsel %vm731, %v1817, %v1795
      %v1819 = vrot.slane %v1759, 1
      %v1820 = vsel %vm731, %v1819, %v1795
      %v1821 = vrot.slane %v1762, 1
      %v1822 = vsel %vm731, %v1821, %v1795
      %v1823 = vrot.slane %v1765, 1
      %v1824 = vsel %vm731, %v1823, %v1795
      %v1825 = vrot.slane %v1768, 1
      %v1826 = vsel %vm731, %v1825, %v1795
      %vm1843 = vcmask 1045504
      %v1844 = vrot.slane %v1723, 2
      %v1845 = vrot.slane %v1776, 2
      %v1846 = vsel %vm1843, %v1844, %v1845
      %v1847 = vrot.slane %v1726, 2
      %v1848 = vsel %vm1843, %v1847, %v1845
      %v1849 = vrot.slane %v1729, 2
      %v1850 = vsel %vm1843, %v1849, %v1845
      %v1851 = vrot.slane %v1732, 2
      %v1852 = vsel %vm1843, %v1851, %v1845
      %v1853 = vrot.slane %v1735, 2
      %v1854 = vsel %vm1843, %v1853, %v1845
      %v1855 = vrot.slane %v1738, 2
      %v1856 = vsel %vm1843, %v1855, %v1845
      %v1857 = vrot.slane %v1741, 2
      %v1858 = vsel %vm1843, %v1857, %v1845
      %v1859 = vrot.slane %v1744, 2
      %v1860 = vsel %vm1843, %v1859, %v1845
      %v1861 = vrot.slane %v1747, 2
      %v1862 = vsel %vm1843, %v1861, %v1845
      %v1863 = vrot.slane %v1750, 2
      %v1864 = vsel %vm1843, %v1863, %v1845
      %v1865 = vrot.slane %v1753, 2
      %v1866 = vsel %vm1843, %v1865, %v1845
      %v1867 = vrot.slane %v1756, 2
      %v1868 = vsel %vm1843, %v1867, %v1845
      %v1869 = vrot.slane %v1759, 2
      %v1870 = vsel %vm1843, %v1869, %v1845
      %v1871 = vrot.slane %v1762, 2
      %v1872 = vsel %vm1843, %v1871, %v1845
      %v1873 = vrot.slane %v1765, 2
      %v1874 = vsel %vm1843, %v1873, %v1845
      %v1875 = vrot.slane %v1768, 2
      %v1876 = vsel %vm1843, %v1875, %v1845
      %vm1894 = vcmask 1044480
      %v1895 = vrot.slane %v1542, 3
      %v1896 = vrot.slane 0, 3
      %v1897 = vsel %vm1894, %v1895, %v1896
      %v1898 = vrot.slane %v1543, 3
      %v1899 = vsel %vm1894, %v1898, %v1896
      %v1900 = vrot.slane %v1544, 3
      %v1901 = vsel %vm1894, %v1900, %v1896
      %v1902 = vrot.slane %v1545, 3
      %v1903 = vsel %vm1894, %v1902, %v1896
      %v1904 = vrot.slane %v1546, 3
      %v1905 = vsel %vm1894, %v1904, %v1896
      %v1906 = vrot.slane %v1547, 3
      %v1907 = vsel %vm1894, %v1906, %v1896
      %v1908 = vrot.slane %v1548, 3
      %v1909 = vsel %vm1894, %v1908, %v1896
      %v1910 = vrot.slane %v1549, 3
      %v1911 = vsel %vm1894, %v1910, %v1896
      %v1912 = vrot.slane %v1550, 3
      %v1913 = vsel %vm1894, %v1912, %v1896
      %v1914 = vrot.slane %v1551, 3
      %v1915 = vsel %vm1894, %v1914, %v1896
      %v1916 = vrot.slane %v1552, 3
      %v1917 = vsel %vm1894, %v1916, %v1896
      %v1918 = vrot.slane %v1553, 3
      %v1919 = vsel %vm1894, %v1918, %v1896
      %v1920 = vrot.slane %v1554, 3
      %v1921 = vsel %vm1894, %v1920, %v1896
      %v1922 = vrot.slane %v1555, 3
      %v1923 = vsel %vm1894, %v1922, %v1896
      %v1924 = vrot.slane %v1556, 3
      %v1925 = vsel %vm1894, %v1924, %v1896
      %v1926 = vrot.slane %v1557, 3
      %v1927 = vsel %vm1894, %v1926, %v1896
      %v1928 = vld [vmem:[%s3] sm:$0xf]
      %v1929 = vld [vmem:[%s3 + $0x4] sm:$0xf]
      %v1930 = vld [vmem:[%s3 + $0x8] sm:$0xf]
      %v1931 = vld [vmem:[%s3 + $0xc] sm:$0xf]
      %v1932 = vld [vmem:[%s3 + $0x10] sm:$0xf]
      %v1933 = vld [vmem:[%s3 + $0x14] sm:$0xf]
      %v1934 = vld [vmem:[%s3 + $0x18] sm:$0xf]
      %v1935 = vld [vmem:[%s3 + $0x1c] sm:$0xf]
      %v1936 = vld [vmem:[%s3 + $0x20] sm:$0xf]
      %v1937 = vld [vmem:[%s3 + $0x24] sm:$0xf]
      %v1938 = vld [vmem:[%s3 + $0x28] sm:$0xf]
      %v1939 = vld [vmem:[%s3 + $0x2c] sm:$0xf]
      %v1940 = vld [vmem:[%s3 + $0x30] sm:$0xf]
      %v1941 = vld [vmem:[%s3 + $0x34] sm:$0xf]
      %v1942 = vld [vmem:[%s3 + $0x38] sm:$0xf]
      %v1943 = vld [vmem:[%s3 + $0x3c] sm:$0xf]
      %v1944 = vld [vmem:[%s3 + $0x40] sm:$0xf]
      %v1945 = vld [vmem:[%s3 + $0x44] sm:$0xf]
      %v1946 = vld [vmem:[%s3 + $0x48] sm:$0xf]
      %v1947 = vld [vmem:[%s3 + $0x4c] sm:$0xf]
      %v1948 = vld [vmem:[%s3 + $0x50] sm:$0xf]
      %v1949 = vld [vmem:[%s3 + $0x54] sm:$0xf]
      %v1950 = vld [vmem:[%s3 + $0x58] sm:$0xf]
      %v1951 = vld [vmem:[%s3 + $0x5c] sm:$0xf]
      %v1952 = vld [vmem:[%s3 + $0x60] sm:$0xf]
      %v1953 = vld [vmem:[%s3 + $0x64] sm:$0xf]
      %v1954 = vld [vmem:[%s3 + $0x68] sm:$0xf]
      %v1955 = vld [vmem:[%s3 + $0x6c] sm:$0xf]
      %v1956 = vld [vmem:[%s3 + $0x70] sm:$0xf]
      %v1957 = vld [vmem:[%s3 + $0x74] sm:$0xf]
      %v1958 = vld [vmem:[%s3 + $0x78] sm:$0xf]
      %v1959 = vld [vmem:[%s3 + $0x7c] sm:$0xf]
      %v1960 = vld [vmem:[%s3 + $0x80] sm:$0xf]
      %v1961 = vld [vmem:[%s3 + $0x84] sm:$0xf]
      %v1962 = vld [vmem:[%s3 + $0x88] sm:$0xf]
      %v1963 = vld [vmem:[%s3 + $0x8c] sm:$0xf]
      %v1964 = vld [vmem:[%s3 + $0x90] sm:$0xf]
      %v1965 = vld [vmem:[%s3 + $0x94] sm:$0xf]
      %v1966 = vld [vmem:[%s3 + $0x98] sm:$0xf]
      %v1967 = vld [vmem:[%s3 + $0x9c] sm:$0xf]
      %v1968 = vld [vmem:[%s3 + $0xa0] sm:$0xf]
      %v1969 = vld [vmem:[%s3 + $0xa4] sm:$0xf]
      %v1970 = vld [vmem:[%s3 + $0xa8] sm:$0xf]
      %v1971 = vld [vmem:[%s3 + $0xac] sm:$0xf]
      %v1972 = vld [vmem:[%s3 + $0xb0] sm:$0xf]
      %v1973 = vld [vmem:[%s3 + $0xb4] sm:$0xf]
      %v1974 = vld [vmem:[%s3 + $0xb8] sm:$0xf]
      %v1975 = vld [vmem:[%s3 + $0xbc] sm:$0xf]
      %v1976 = vld [vmem:[%s3 + $0xc0] sm:$0xf]
      %v1977 = vld [vmem:[%s3 + $0xc4] sm:$0xf]
      %v1978 = vld [vmem:[%s3 + $0xc8] sm:$0xf]
      %v1979 = vld [vmem:[%s3 + $0xcc] sm:$0xf]
      %v1980 = vld [vmem:[%s3 + $0xd0] sm:$0xf]
      %v1981 = vld [vmem:[%s3 + $0xd4] sm:$0xf]
      %v1982 = vld [vmem:[%s3 + $0xd8] sm:$0xf]
      %v1983 = vld [vmem:[%s3 + $0xdc] sm:$0xf]
      %s1984 = scalar_lea.vmem %s3, 224
      %v1985 = vld [vmem:[%s1984] sm:$0xf]
      %v1986 = vld [vmem:[%s1984 + $0x4] sm:$0xf]
      %v1987 = vld [vmem:[%s1984 + $0x8] sm:$0xf]
      %v1988 = vld [vmem:[%s1984 + $0xc] sm:$0xf]
      %v1989 = vld [vmem:[%s1984 + $0x10] sm:$0xf]
      %v1990 = vld [vmem:[%s1984 + $0x14] sm:$0xf]
      %v1991 = vld [vmem:[%s1984 + $0x18] sm:$0xf]
      %v1992 = vld [vmem:[%s1984 + $0x1c] sm:$0xf]
      %v1993 = vld [vmem:[%s1984 + $0x20] sm:$0xf]
      %v1994 = vld [vmem:[%s1984 + $0x24] sm:$0xf]
      %v1995 = vld [vmem:[%s1984 + $0x28] sm:$0xf]
      %v1996 = vld [vmem:[%s1984 + $0x2c] sm:$0xf]
      %v1997 = vld [vmem:[%s1984 + $0x30] sm:$0xf]
      %v1998 = vld [vmem:[%s1984 + $0x34] sm:$0xf]
      %v1999 = vld [vmem:[%s1984 + $0x38] sm:$0xf]
      %v2000 = vld [vmem:[%s1984 + $0x3c] sm:$0xf]
      %v2001 = vld [vmem:[%s1984 + $0x40] sm:$0xf]
      %v2002 = vld [vmem:[%s1984 + $0x44] sm:$0xf]
      %v2003 = vld [vmem:[%s1984 + $0x48] sm:$0xf]
      %v2004 = vld [vmem:[%s1984 + $0x4c] sm:$0xf]
      %v2005 = vld [vmem:[%s1984 + $0x50] sm:$0xf]
      %v2006 = vld [vmem:[%s1984 + $0x54] sm:$0xf]
      %v2007 = vld [vmem:[%s1984 + $0x58] sm:$0xf]
      %v2008 = vld [vmem:[%s1984 + $0x5c] sm:$0xf]
      %v2009 = vld [vmem:[%s1984 + $0x60] sm:$0xf]
      %v2010 = vld [vmem:[%s1984 + $0x64] sm:$0xf]
      %v2011 = vld [vmem:[%s1984 + $0x68] sm:$0xf]
      %v2012 = vld [vmem:[%s1984 + $0x6c] sm:$0xf]
      %v2013 = vld [vmem:[%s1984 + $0x70] sm:$0xf]
      %v2014 = vld [vmem:[%s1984 + $0x74] sm:$0xf]
      %v2015 = vld [vmem:[%s1984 + $0x78] sm:$0xf]
      %v2016 = vld [vmem:[%s1984 + $0x7c] sm:$0xf]
      %v2017 = vld [vmem:[%s1984 + $0x80] sm:$0xf]
      %v2018 = vld [vmem:[%s1984 + $0x84] sm:$0xf]
      %v2019 = vld [vmem:[%s1984 + $0x88] sm:$0xf]
      %v2020 = vld [vmem:[%s1984 + $0x8c] sm:$0xf]
      %v2021 = vld [vmem:[%s1984 + $0x90] sm:$0xf]
      %v2022 = vld [vmem:[%s1984 + $0x94] sm:$0xf]
      %v2023 = vld [vmem:[%s1984 + $0x98] sm:$0xf]
      %v2024 = vld [vmem:[%s1984 + $0x9c] sm:$0xf]
      %v2025 = vld [vmem:[%s1984 + $0xa0] sm:$0xf]
      %v2026 = vld [vmem:[%s1984 + $0xa4] sm:$0xf]
      %v2027 = vld [vmem:[%s1984 + $0xa8] sm:$0xf]
      %v2028 = vld [vmem:[%s1984 + $0xac] sm:$0xf]
      %v2029 = vld [vmem:[%s1984 + $0xb0] sm:$0xf]
      %v2030 = vld [vmem:[%s1984 + $0xb4] sm:$0xf]
      %v2031 = vld [vmem:[%s1984 + $0xb8] sm:$0xf]
      %v2032 = vld [vmem:[%s1984 + $0xbc] sm:$0xf]
      %v2033 = vld [vmem:[%s1984 + $0xc0] sm:$0xf]
      %v2034 = vld [vmem:[%s1984 + $0xc4] sm:$0xf]
      %v2035 = vld [vmem:[%s1984 + $0xc8] sm:$0xf]
      %v2036 = vld [vmem:[%s1984 + $0xcc] sm:$0xf]
      %v2037 = vld [vmem:[%s1984 + $0xd0] sm:$0xf]
      %v2038 = vld [vmem:[%s1984 + $0xd4] sm:$0xf]
      %v2039 = vld [vmem:[%s1984 + $0xd8] sm:$0xf]
      %v2040 = vld [vmem:[%s1984 + $0xdc] sm:$0xf]
      %v2097 = vunpack.c.l.b16 %v1985
      %v2098 = vunpack.c.l.b16 %v1986
      %v2099 = vunpack.c.l.b16 %v1987
      %v2100 = vunpack.c.l.b16 %v1988
      %v2101 = vunpack.c.l.b16 %v1989
      %v2102 = vunpack.c.l.b16 %v1990
      %v2103 = vunpack.c.l.b16 %v1991
      %v2104 = vunpack.c.l.b16 %v1992
      %v2105 = vunpack.c.l.b16 %v1993
      %v2106 = vunpack.c.l.b16 %v1994
      %v2107 = vunpack.c.l.b16 %v1995
      %v2108 = vunpack.c.l.b16 %v1996
      %v2109 = vunpack.c.l.b16 %v1997
      %v2110 = vunpack.c.l.b16 %v1998
      %v2111 = vunpack.c.l.b16 %v1999
      %v2112 = vunpack.c.l.b16 %v2000
      %v2113 = vunpack.c.l.b16 %v2001
      %v2114 = vunpack.c.l.b16 %v2002
      %v2115 = vunpack.c.l.b16 %v2003
      %v2116 = vunpack.c.l.b16 %v2004
      %v2117 = vunpack.c.l.b16 %v2005
      %v2118 = vunpack.c.l.b16 %v2006
      %v2119 = vunpack.c.l.b16 %v2007
      %v2120 = vunpack.c.l.b16 %v2008
      %v2121 = vunpack.c.l.b16 %v2009
      %v2122 = vunpack.c.l.b16 %v2010
      %v2123 = vunpack.c.l.b16 %v2011
      %v2124 = vunpack.c.l.b16 %v2012
      %v2125 = vunpack.c.l.b16 %v2013
      %v2126 = vunpack.c.l.b16 %v2014
      %v2127 = vunpack.c.l.b16 %v2015
      %v2128 = vunpack.c.l.b16 %v2016
      %v2129 = vunpack.c.l.b16 %v2017
      %v2130 = vunpack.c.l.b16 %v2018
      %v2131 = vunpack.c.l.b16 %v2019
      %v2132 = vunpack.c.l.b16 %v2020
      %v2133 = vunpack.c.l.b16 %v2021
      %v2134 = vunpack.c.l.b16 %v2022
      %v2135 = vunpack.c.l.b16 %v2023
      %v2136 = vunpack.c.l.b16 %v2024
      %v2137 = vunpack.c.l.b16 %v2025
      %v2138 = vunpack.c.l.b16 %v2026
      %v2139 = vunpack.c.l.b16 %v2027
      %v2140 = vunpack.c.l.b16 %v2028
      %v2141 = vunpack.c.l.b16 %v2029
      %v2142 = vunpack.c.l.b16 %v2030
      %v2143 = vunpack.c.l.b16 %v2031
      %v2144 = vunpack.c.l.b16 %v2032
      %v2145 = vunpack.c.l.b16 %v2033
      %v2146 = vunpack.c.l.b16 %v2034
      %v2147 = vunpack.c.l.b16 %v2035
      %v2148 = vunpack.c.l.b16 %v2036
      %v2149 = vunpack.c.l.b16 %v2037
      %v2150 = vunpack.c.l.b16 %v2038
      %v2151 = vunpack.c.l.b16 %v2039
      %v2152 = vunpack.c.l.b16 %v2040
      %v2153 = vpack.c.b16 %v2098, %v2097
      %v2154 = vpack.c.b16 %v2100, %v2099
      %v2155 = vpack.c.b16 %v2102, %v2101
      %v2156 = vpack.c.b16 %v2104, %v2103
      %v2157 = vpack.c.b16 %v2106, %v2105
      %v2158 = vpack.c.b16 %v2108, %v2107
      %v2159 = vpack.c.b16 %v2110, %v2109
      %v2160 = vpack.c.b16 %v2112, %v2111
      %v2161 = vpack.c.b16 %v2114, %v2113
      %v2162 = vpack.c.b16 %v2116, %v2115
      %v2163 = vpack.c.b16 %v2118, %v2117
      %v2164 = vpack.c.b16 %v2120, %v2119
      %v2165 = vpack.c.b16 %v2122, %v2121
      %v2166 = vpack.c.b16 %v2124, %v2123
      %v2167 = vpack.c.b16 %v2126, %v2125
      %v2168 = vpack.c.b16 %v2128, %v2127
      %v2169 = vpack.c.b16 %v2130, %v2129
      %v2170 = vpack.c.b16 %v2132, %v2131
      %v2171 = vpack.c.b16 %v2134, %v2133
      %v2172 = vpack.c.b16 %v2136, %v2135
      %v2173 = vpack.c.b16 %v2138, %v2137
      %v2174 = vpack.c.b16 %v2140, %v2139
      %v2175 = vpack.c.b16 %v2142, %v2141
      %v2176 = vpack.c.b16 %v2144, %v2143
      %v2177 = vpack.c.b16 %v2146, %v2145
      %v2178 = vpack.c.b16 %v2148, %v2147
      %v2179 = vpack.c.b16 %v2150, %v2149
      %v2180 = vpack.c.b16 %v2152, %v2151
      %v2210 = vsel %vm859, %v1899, 0
      %v2213 = vsel %vm859, %v1901, 0
      %v2216 = vsel %vm859, %v1903, 0
      %v2219 = vsel %vm859, %v1905, 0
      %v2222 = vsel %vm859, %v1907, 0
      %v2225 = vsel %vm859, %v1909, 0
      %v2228 = vsel %vm859, %v1911, 0
      %v2231 = vsel %vm859, %v1913, 0
      %v2234 = vsel %vm859, %v1915, 0
      %v2237 = vsel %vm859, %v1917, 0
      %2239 = vmatpush.bf16.msra.mxu0 %v2160
      %2240 = vmatpush.bf16.msra.mxu0 %v2159
      %2241 = vmatpush.bf16.msra.mxu0 %v2158
      %2242 = vmatpush.bf16.msra.mxu0 %v2157
      %2243 = vmatpush.bf16.msra.mxu0 %v2156
      %2244 = vmatpush.bf16.msra.mxu0 %v2155
      %2245 = vmatpush.bf16.msra.mxu0 %v2154
      %2246 = vmatpush.bf16.msra.mxu0 %v2153
      %2247 = vmatmul.bf16.gmra.mxu0 %v1726
      %v2248 = vpop.f32.mrf.mxu0
      %v2249 = vadd.f32 0.0, %v2248
      %v2250 = vpop.f32.mrf.mxu0
      %v2251 = vadd.f32 0.0, %v2250
      %2252 = vmatmul.bf16.gmra.mxu0 %v1729
      %v2253 = vpop.f32.mrf.mxu0
      %v2254 = vadd.f32 0.0, %v2253
      %v2255 = vpop.f32.mrf.mxu0
      %v2256 = vadd.f32 0.0, %v2255
      %2257 = vmatmul.bf16.gmra.mxu0 %v1732
      %v2258 = vpop.f32.mrf.mxu0
      %v2259 = vadd.f32 0.0, %v2258
      %v2260 = vpop.f32.mrf.mxu0
      %v2261 = vadd.f32 0.0, %v2260
      %2262 = vmatmul.bf16.gmra.mxu0 %v1735
      %v2263 = vpop.f32.mrf.mxu0
      %v2264 = vadd.f32 0.0, %v2263
      %v2265 = vpop.f32.mrf.mxu0
      %v2266 = vadd.f32 0.0, %v2265
      %2267 = vmatmul.bf16.gmra.mxu0 %v1738
      %v2268 = vpop.f32.mrf.mxu0
      %v2269 = vadd.f32 0.0, %v2268
      %v2270 = vpop.f32.mrf.mxu0
      %v2271 = vadd.f32 0.0, %v2270
      %2272 = vmatmul.bf16.gmra.mxu0 %v1741
      %v2273 = vpop.f32.mrf.mxu0
      %v2274 = vadd.f32 0.0, %v2273
      %v2275 = vpop.f32.mrf.mxu0
      %v2276 = vadd.f32 0.0, %v2275
      %2277 = vmatmul.bf16.gmra.mxu0 %v1744
      %v2278 = vpop.f32.mrf.mxu0
      %v2279 = vadd.f32 0.0, %v2278
      %v2280 = vpop.f32.mrf.mxu0
      %v2281 = vadd.f32 0.0, %v2280
      %2282 = vmatmul.bf16.gmra.mxu0 %v1747
      %v2283 = vpop.f32.mrf.mxu0
      %v2284 = vadd.f32 0.0, %v2283
      %v2285 = vpop.f32.mrf.mxu0
      %v2286 = vadd.f32 0.0, %v2285
      %2287 = vmatmul.bf16.gmra.mxu0 %v1750
      %v2288 = vpop.f32.mrf.mxu0
      %v2289 = vadd.f32 0.0, %v2288
      %v2290 = vpop.f32.mrf.mxu0
      %v2291 = vadd.f32 0.0, %v2290
      %2292 = vmatmul.bf16.gmra.mxu0 %v1753
      %v2293 = vpop.f32.mrf.mxu0
      %v2294 = vadd.f32 0.0, %v2293
      %v2295 = vpop.f32.mrf.mxu0
      %v2296 = vadd.f32 0.0, %v2295
      %2297 = vdwg.mxu0
      %2298 = vmatpush.bf16.msra.mxu0 %v2168
      %2299 = vmatpush.bf16.msra.mxu0 %v2167
      %2300 = vmatpush.bf16.msra.mxu0 %v2166
      %2301 = vmatpush.bf16.msra.mxu0 %v2165
      %2302 = vmatpush.bf16.msra.mxu0 %v2164
      %2303 = vmatpush.bf16.msra.mxu0 %v2163
      %2304 = vmatpush.bf16.msra.mxu0 %v2162
      %2305 = vmatpush.bf16.msra.mxu0 %v2161
      %2306 = vmatmul.bf16.gmra.mxu0 %v1798
      %v2307 = vpop.f32.mrf.mxu0
      %v2308 = vadd.f32 %v2249, %v2307
      %v2309 = vpop.f32.mrf.mxu0
      %v2310 = vadd.f32 %v2251, %v2309
      %2311 = vmatmul.bf16.gmra.mxu0 %v1800
      %v2312 = vpop.f32.mrf.mxu0
      %v2313 = vadd.f32 %v2254, %v2312
      %v2314 = vpop.f32.mrf.mxu0
      %v2315 = vadd.f32 %v2256, %v2314
      %2316 = vmatmul.bf16.gmra.mxu0 %v1802
      %v2317 = vpop.f32.mrf.mxu0
      %v2318 = vadd.f32 %v2259, %v2317
      %v2319 = vpop.f32.mrf.mxu0
      %v2320 = vadd.f32 %v2261, %v2319
      %2321 = vmatmul.bf16.gmra.mxu0 %v1804
      %v2322 = vpop.f32.mrf.mxu0
      %v2323 = vadd.f32 %v2264, %v2322
      %v2324 = vpop.f32.mrf.mxu0
      %v2325 = vadd.f32 %v2266, %v2324
      %2326 = vmatmul.bf16.gmra.mxu0 %v1806
      %v2327 = vpop.f32.mrf.mxu0
      %v2328 = vadd.f32 %v2269, %v2327
      %v2329 = vpop.f32.mrf.mxu0
      %v2330 = vadd.f32 %v2271, %v2329
      %2331 = vmatmul.bf16.gmra.mxu0 %v1808
      %v2332 = vpop.f32.mrf.mxu0
      %v2333 = vadd.f32 %v2274, %v2332
      %v2334 = vpop.f32.mrf.mxu0
      %v2335 = vadd.f32 %v2276, %v2334
      %2336 = vmatmul.bf16.gmra.mxu0 %v1810
      %v2337 = vpop.f32.mrf.mxu0
      %v2338 = vadd.f32 %v2279, %v2337
      %v2339 = vpop.f32.mrf.mxu0
      %v2340 = vadd.f32 %v2281, %v2339
      %2341 = vmatmul.bf16.gmra.mxu0 %v1812
      %v2342 = vpop.f32.mrf.mxu0
      %v2343 = vadd.f32 %v2284, %v2342
      %v2344 = vpop.f32.mrf.mxu0
      %v2345 = vadd.f32 %v2286, %v2344
      %2346 = vmatmul.bf16.gmra.mxu0 %v1814
      %v2347 = vpop.f32.mrf.mxu0
      %v2348 = vadd.f32 %v2289, %v2347
      %v2349 = vpop.f32.mrf.mxu0
      %v2350 = vadd.f32 %v2291, %v2349
      %2351 = vmatmul.bf16.gmra.mxu0 %v1816
      %v2352 = vpop.f32.mrf.mxu0
      %v2353 = vadd.f32 %v2294, %v2352
      %v2354 = vpop.f32.mrf.mxu0
      %v2355 = vadd.f32 %v2296, %v2354
      %2356 = vdwg.mxu0
      %2357 = vmatpush.bf16.msra.mxu0 %v2176
      %2358 = vmatpush.bf16.msra.mxu0 %v2175
      %2359 = vmatpush.bf16.msra.mxu0 %v2174
      %2360 = vmatpush.bf16.msra.mxu0 %v2173
      %2361 = vmatpush.bf16.msra.mxu0 %v2172
      %2362 = vmatpush.bf16.msra.mxu0 %v2171
      %2363 = vmatpush.bf16.msra.mxu0 %v2170
      %2364 = vmatpush.bf16.msra.mxu0 %v2169
      %2365 = vmatmul.bf16.gmra.mxu0 %v1848
      %v2366 = vpop.f32.mrf.mxu0
      %v2367 = vadd.f32 %v2308, %v2366
      %v2368 = vpop.f32.mrf.mxu0
      %v2369 = vadd.f32 %v2310, %v2368
      %2370 = vmatmul.bf16.gmra.mxu0 %v1850
      %v2371 = vpop.f32.mrf.mxu0
      %v2372 = vadd.f32 %v2313, %v2371
      %v2373 = vpop.f32.mrf.mxu0
      %v2374 = vadd.f32 %v2315, %v2373
      %2375 = vmatmul.bf16.gmra.mxu0 %v1852
      %v2376 = vpop.f32.mrf.mxu0
      %v2377 = vadd.f32 %v2318, %v2376
      %v2378 = vpop.f32.mrf.mxu0
      %v2379 = vadd.f32 %v2320, %v2378
      %2380 = vmatmul.bf16.gmra.mxu0 %v1854
      %v2381 = vpop.f32.mrf.mxu0
      %v2382 = vadd.f32 %v2323, %v2381
      %v2383 = vpop.f32.mrf.mxu0
      %v2384 = vadd.f32 %v2325, %v2383
      %2385 = vmatmul.bf16.gmra.mxu0 %v1856
      %v2386 = vpop.f32.mrf.mxu0
      %v2387 = vadd.f32 %v2328, %v2386
      %v2388 = vpop.f32.mrf.mxu0
      %v2389 = vadd.f32 %v2330, %v2388
      %2390 = vmatmul.bf16.gmra.mxu0 %v1858
      %v2391 = vpop.f32.mrf.mxu0
      %v2392 = vadd.f32 %v2333, %v2391
      %v2393 = vpop.f32.mrf.mxu0
      %v2394 = vadd.f32 %v2335, %v2393
      %2395 = vmatmul.bf16.gmra.mxu0 %v1860
      %v2396 = vpop.f32.mrf.mxu0
      %v2397 = vadd.f32 %v2338, %v2396
      %v2398 = vpop.f32.mrf.mxu0
      %v2399 = vadd.f32 %v2340, %v2398
      %2400 = vmatmul.bf16.gmra.mxu0 %v1862
      %v2401 = vpop.f32.mrf.mxu0
      %v2402 = vadd.f32 %v2343, %v2401
      %v2403 = vpop.f32.mrf.mxu0
      %v2404 = vadd.f32 %v2345, %v2403
      %2405 = vmatmul.bf16.gmra.mxu0 %v1864
      %v2406 = vpop.f32.mrf.mxu0
      %v2407 = vadd.f32 %v2348, %v2406
      %v2408 = vpop.f32.mrf.mxu0
      %v2409 = vadd.f32 %v2350, %v2408
      %2410 = vmatmul.bf16.gmra.mxu0 %v1866
      %v2411 = vpop.f32.mrf.mxu0
      %v2412 = vadd.f32 %v2353, %v2411
      %v2413 = vpop.f32.mrf.mxu0
      %v2414 = vadd.f32 %v2355, %v2413
      %2415 = vdwg.mxu0
      %2416 = vmatpush.bf16.msra.mxu0 0
      %2417 = vmatpush.bf16.msra.mxu0 0
      %2418 = vmatpush.bf16.msra.mxu0 0
      %2419 = vmatpush.bf16.msra.mxu0 0
      %2420 = vmatpush.bf16.msra.mxu0 %v2180
      %2421 = vmatpush.bf16.msra.mxu0 %v2179
      %2422 = vmatpush.bf16.msra.mxu0 %v2178
      %2423 = vmatpush.bf16.msra.mxu0 %v2177
      %2424 = vmatmul.bf16.gmra.mxu0 %v2210
      %v2425 = vpop.f32.mrf.mxu0
      %v2426 = vadd.f32 %v2367, %v2425
      %v2427 = vpop.f32.mrf.mxu0
      %v2428 = vadd.f32 %v2369, %v2427
      %2429 = vmatmul.bf16.gmra.mxu0 %v2213
      %v2430 = vpop.f32.mrf.mxu0
      %v2431 = vadd.f32 %v2372, %v2430
      %v2432 = vpop.f32.mrf.mxu0
      %v2433 = vadd.f32 %v2374, %v2432
      %2434 = vmatmul.bf16.gmra.mxu0 %v2216
      %v2435 = vpop.f32.mrf.mxu0
      %v2436 = vadd.f32 %v2377, %v2435
      %v2437 = vpop.f32.mrf.mxu0
      %v2438 = vadd.f32 %v2379, %v2437
      %2439 = vmatmul.bf16.gmra.mxu0 %v2219
      %v2440 = vpop.f32.mrf.mxu0
      %v2441 = vadd.f32 %v2382, %v2440
      %v2442 = vpop.f32.mrf.mxu0
      %v2443 = vadd.f32 %v2384, %v2442
      %2444 = vmatmul.bf16.gmra.mxu0 %v2222
      %v2445 = vpop.f32.mrf.mxu0
      %v2446 = vadd.f32 %v2387, %v2445
      %v2447 = vpop.f32.mrf.mxu0
      %v2448 = vadd.f32 %v2389, %v2447
      %2449 = vmatmul.bf16.gmra.mxu0 %v2225
      %v2450 = vpop.f32.mrf.mxu0
      %v2451 = vadd.f32 %v2392, %v2450
      %v2452 = vpop.f32.mrf.mxu0
      %v2453 = vadd.f32 %v2394, %v2452
      %2454 = vmatmul.bf16.gmra.mxu0 %v2228
      %v2455 = vpop.f32.mrf.mxu0
      %v2456 = vadd.f32 %v2397, %v2455
      %v2457 = vpop.f32.mrf.mxu0
      %v2458 = vadd.f32 %v2399, %v2457
      %2459 = vmatmul.bf16.gmra.mxu0 %v2231
      %v2460 = vpop.f32.mrf.mxu0
      %v2461 = vadd.f32 %v2402, %v2460
      %v2462 = vpop.f32.mrf.mxu0
      %v2463 = vadd.f32 %v2404, %v2462
      %2464 = vmatmul.bf16.gmra.mxu0 %v2234
      %v2465 = vpop.f32.mrf.mxu0
      %v2466 = vadd.f32 %v2407, %v2465
      %v2467 = vpop.f32.mrf.mxu0
      %v2468 = vadd.f32 %v2409, %v2467
      %2469 = vmatmul.bf16.gmra.mxu0 %v2237
      %v2470 = vpop.f32.mrf.mxu0
      %v2471 = vadd.f32 %v2412, %v2470
      %v2472 = vpop.f32.mrf.mxu0
      %v2473 = vadd.f32 %v2414, %v2472
      %2474 = vdwg.mxu0
      %v2531 = vunpack.c.l.b16 %v1928
      %v2532 = vunpack.c.l.b16 %v1929
      %v2533 = vunpack.c.l.b16 %v1930
      %v2534 = vunpack.c.l.b16 %v1931
      %v2535 = vunpack.c.l.b16 %v1932
      %v2536 = vunpack.c.l.b16 %v1933
      %v2537 = vunpack.c.l.b16 %v1934
      %v2538 = vunpack.c.l.b16 %v1935
      %v2539 = vunpack.c.l.b16 %v1936
      %v2540 = vunpack.c.l.b16 %v1937
      %v2541 = vunpack.c.l.b16 %v1938
      %v2542 = vunpack.c.l.b16 %v1939
      %v2543 = vunpack.c.l.b16 %v1940
      %v2544 = vunpack.c.l.b16 %v1941
      %v2545 = vunpack.c.l.b16 %v1942
      %v2546 = vunpack.c.l.b16 %v1943
      %v2547 = vunpack.c.l.b16 %v1944
      %v2548 = vunpack.c.l.b16 %v1945
      %v2549 = vunpack.c.l.b16 %v1946
      %v2550 = vunpack.c.l.b16 %v1947
      %v2551 = vunpack.c.l.b16 %v1948
      %v2552 = vunpack.c.l.b16 %v1949
      %v2553 = vunpack.c.l.b16 %v1950
      %v2554 = vunpack.c.l.b16 %v1951
      %v2555 = vunpack.c.l.b16 %v1952
      %v2556 = vunpack.c.l.b16 %v1953
      %v2557 = vunpack.c.l.b16 %v1954
      %v2558 = vunpack.c.l.b16 %v1955
      %v2559 = vunpack.c.l.b16 %v1956
      %v2560 = vunpack.c.l.b16 %v1957
      %v2561 = vunpack.c.l.b16 %v1958
      %v2562 = vunpack.c.l.b16 %v1959
      %v2563 = vunpack.c.l.b16 %v1960
      %v2564 = vunpack.c.l.b16 %v1961
      %v2565 = vunpack.c.l.b16 %v1962
      %v2566 = vunpack.c.l.b16 %v1963
      %v2567 = vunpack.c.l.b16 %v1964
      %v2568 = vunpack.c.l.b16 %v1965
      %v2569 = vunpack.c.l.b16 %v1966
      %v2570 = vunpack.c.l.b16 %v1967
      %v2571 = vunpack.c.l.b16 %v1968
      %v2572 = vunpack.c.l.b16 %v1969
      %v2573 = vunpack.c.l.b16 %v1970
      %v2574 = vunpack.c.l.b16 %v1971
      %v2575 = vunpack.c.l.b16 %v1972
      %v2576 = vunpack.c.l.b16 %v1973
      %v2577 = vunpack.c.l.b16 %v1974
      %v2578 = vunpack.c.l.b16 %v1975
      %v2579 = vunpack.c.l.b16 %v1976
      %v2580 = vunpack.c.l.b16 %v1977
      %v2581 = vunpack.c.l.b16 %v1978
      %v2582 = vunpack.c.l.b16 %v1979
      %v2583 = vunpack.c.l.b16 %v1980
      %v2584 = vunpack.c.l.b16 %v1981
      %v2585 = vunpack.c.l.b16 %v1982
      %v2586 = vunpack.c.l.b16 %v1983
      %v2587 = vpack.c.b16 %v2532, %v2531
      %v2588 = vpack.c.b16 %v2534, %v2533
      %v2589 = vpack.c.b16 %v2536, %v2535
      %v2590 = vpack.c.b16 %v2538, %v2537
      %v2591 = vpack.c.b16 %v2540, %v2539
      %v2592 = vpack.c.b16 %v2542, %v2541
      %v2593 = vpack.c.b16 %v2544, %v2543
      %v2594 = vpack.c.b16 %v2546, %v2545
      %v2595 = vpack.c.b16 %v2548, %v2547
      %v2596 = vpack.c.b16 %v2550, %v2549
      %v2597 = vpack.c.b16 %v2552, %v2551
      %v2598 = vpack.c.b16 %v2554, %v2553
      %v2599 = vpack.c.b16 %v2556, %v2555
      %v2600 = vpack.c.b16 %v2558, %v2557
      %v2601 = vpack.c.b16 %v2560, %v2559
      %v2602 = vpack.c.b16 %v2562, %v2561
      %v2603 = vpack.c.b16 %v2564, %v2563
      %v2604 = vpack.c.b16 %v2566, %v2565
      %v2605 = vpack.c.b16 %v2568, %v2567
      %v2606 = vpack.c.b16 %v2570, %v2569
      %v2607 = vpack.c.b16 %v2572, %v2571
      %v2608 = vpack.c.b16 %v2574, %v2573
      %v2609 = vpack.c.b16 %v2576, %v2575
      %v2610 = vpack.c.b16 %v2578, %v2577
      %v2611 = vpack.c.b16 %v2580, %v2579
      %v2612 = vpack.c.b16 %v2582, %v2581
      %v2613 = vpack.c.b16 %v2584, %v2583
      %v2614 = vpack.c.b16 %v2586, %v2585
      %v2644 = vsel %vm859, %v1897, 0
      %2646 = vmatpush.bf16.msra.mxu0 %v2594
      %2647 = vmatpush.bf16.msra.mxu0 %v2593
      %2648 = vmatpush.bf16.msra.mxu0 %v2592
      %2649 = vmatpush.bf16.msra.mxu0 %v2591
      %2650 = vmatpush.bf16.msra.mxu0 %v2590
      %2651 = vmatpush.bf16.msra.mxu0 %v2589
      %2652 = vmatpush.bf16.msra.mxu0 %v2588
      %2653 = vmatpush.bf16.msra.mxu0 %v2587
      %2654 = vmatmul.bf16.gmra.mxu0 %v1723
      %v2655 = vpop.f32.mrf.mxu0
      %v2656 = vadd.f32 %v2426, %v2655
      %v2657 = vpop.f32.mrf.mxu0
      %v2658 = vadd.f32 %v2428, %v2657
      %2659 = vmatmul.bf16.gmra.mxu0 %v1726
      %v2660 = vpop.f32.mrf.mxu0
      %v2661 = vadd.f32 %v2431, %v2660
      %v2662 = vpop.f32.mrf.mxu0
      %v2663 = vadd.f32 %v2433, %v2662
      %2664 = vmatmul.bf16.gmra.mxu0 %v1729
      %v2665 = vpop.f32.mrf.mxu0
      %v2666 = vadd.f32 %v2436, %v2665
      %v2667 = vpop.f32.mrf.mxu0
      %v2668 = vadd.f32 %v2438, %v2667
      %2669 = vmatmul.bf16.gmra.mxu0 %v1732
      %v2670 = vpop.f32.mrf.mxu0
      %v2671 = vadd.f32 %v2441, %v2670
      %v2672 = vpop.f32.mrf.mxu0
      %v2673 = vadd.f32 %v2443, %v2672
      %2674 = vmatmul.bf16.gmra.mxu0 %v1735
      %v2675 = vpop.f32.mrf.mxu0
      %v2676 = vadd.f32 %v2446, %v2675
      %v2677 = vpop.f32.mrf.mxu0
      %v2678 = vadd.f32 %v2448, %v2677
      %2679 = vmatmul.bf16.gmra.mxu0 %v1738
      %v2680 = vpop.f32.mrf.mxu0
      %v2681 = vadd.f32 %v2451, %v2680
      %v2682 = vpop.f32.mrf.mxu0
      %v2683 = vadd.f32 %v2453, %v2682
      %2684 = vmatmul.bf16.gmra.mxu0 %v1741
      %v2685 = vpop.f32.mrf.mxu0
      %v2686 = vadd.f32 %v2456, %v2685
      %v2687 = vpop.f32.mrf.mxu0
      %v2688 = vadd.f32 %v2458, %v2687
      %2689 = vmatmul.bf16.gmra.mxu0 %v1744
      %v2690 = vpop.f32.mrf.mxu0
      %v2691 = vadd.f32 %v2461, %v2690
      %v2692 = vpop.f32.mrf.mxu0
      %v2693 = vadd.f32 %v2463, %v2692
      %2694 = vmatmul.bf16.gmra.mxu0 %v1747
      %v2695 = vpop.f32.mrf.mxu0
      %v2696 = vadd.f32 %v2466, %v2695
      %v2697 = vpop.f32.mrf.mxu0
      %v2698 = vadd.f32 %v2468, %v2697
      %2699 = vmatmul.bf16.gmra.mxu0 %v1750
      %v2700 = vpop.f32.mrf.mxu0
      %v2701 = vadd.f32 %v2471, %v2700
      %v2702 = vpop.f32.mrf.mxu0
      %v2703 = vadd.f32 %v2473, %v2702
      %2704 = vdwg.mxu0
      %2705 = vmatpush.bf16.msra.mxu0 %v2602
      %2706 = vmatpush.bf16.msra.mxu0 %v2601
      %2707 = vmatpush.bf16.msra.mxu0 %v2600
      %2708 = vmatpush.bf16.msra.mxu0 %v2599
      %2709 = vmatpush.bf16.msra.mxu0 %v2598
      %2710 = vmatpush.bf16.msra.mxu0 %v2597
      %2711 = vmatpush.bf16.msra.mxu0 %v2596
      %2712 = vmatpush.bf16.msra.mxu0 %v2595
      %2713 = vmatmul.bf16.gmra.mxu0 %v1796
      %v2714 = vpop.f32.mrf.mxu0
      %v2715 = vadd.f32 %v2656, %v2714
      %v2716 = vpop.f32.mrf.mxu0
      %v2717 = vadd.f32 %v2658, %v2716
      %2718 = vmatmul.bf16.gmra.mxu0 %v1798
      %v2719 = vpop.f32.mrf.mxu0
      %v2720 = vadd.f32 %v2661, %v2719
      %v2721 = vpop.f32.mrf.mxu0
      %v2722 = vadd.f32 %v2663, %v2721
      %2723 = vmatmul.bf16.gmra.mxu0 %v1800
      %v2724 = vpop.f32.mrf.mxu0
      %v2725 = vadd.f32 %v2666, %v2724
      %v2726 = vpop.f32.mrf.mxu0
      %v2727 = vadd.f32 %v2668, %v2726
      %2728 = vmatmul.bf16.gmra.mxu0 %v1802
      %v2729 = vpop.f32.mrf.mxu0
      %v2730 = vadd.f32 %v2671, %v2729
      %v2731 = vpop.f32.mrf.mxu0
      %v2732 = vadd.f32 %v2673, %v2731
      %2733 = vmatmul.bf16.gmra.mxu0 %v1804
      %v2734 = vpop.f32.mrf.mxu0
      %v2735 = vadd.f32 %v2676, %v2734
      %v2736 = vpop.f32.mrf.mxu0
      %v2737 = vadd.f32 %v2678, %v2736
      %2738 = vmatmul.bf16.gmra.mxu0 %v1806
      %v2739 = vpop.f32.mrf.mxu0
      %v2740 = vadd.f32 %v2681, %v2739
      %v2741 = vpop.f32.mrf.mxu0
      %v2742 = vadd.f32 %v2683, %v2741
      %2743 = vmatmul.bf16.gmra.mxu0 %v1808
      %v2744 = vpop.f32.mrf.mxu0
      %v2745 = vadd.f32 %v2686, %v2744
      %v2746 = vpop.f32.mrf.mxu0
      %v2747 = vadd.f32 %v2688, %v2746
      %2748 = vmatmul.bf16.gmra.mxu0 %v1810
      %v2749 = vpop.f32.mrf.mxu0
      %v2750 = vadd.f32 %v2691, %v2749
      %v2751 = vpop.f32.mrf.mxu0
      %v2752 = vadd.f32 %v2693, %v2751
      %2753 = vmatmul.bf16.gmra.mxu0 %v1812
      %v2754 = vpop.f32.mrf.mxu0
      %v2755 = vadd.f32 %v2696, %v2754
      %v2756 = vpop.f32.mrf.mxu0
      %v2757 = vadd.f32 %v2698, %v2756
      %2758 = vmatmul.bf16.gmra.mxu0 %v1814
      %v2759 = vpop.f32.mrf.mxu0
      %v2760 = vadd.f32 %v2701, %v2759
      %v2761 = vpop.f32.mrf.mxu0
      %v2762 = vadd.f32 %v2703, %v2761
      %2763 = vdwg.mxu0
      %2764 = vmatpush.bf16.msra.mxu0 %v2610
      %2765 = vmatpush.bf16.msra.mxu0 %v2609
      %2766 = vmatpush.bf16.msra.mxu0 %v2608
      %2767 = vmatpush.bf16.msra.mxu0 %v2607
      %2768 = vmatpush.bf16.msra.mxu0 %v2606
      %2769 = vmatpush.bf16.msra.mxu0 %v2605
      %2770 = vmatpush.bf16.msra.mxu0 %v2604
      %2771 = vmatpush.bf16.msra.mxu0 %v2603
      %2772 = vmatmul.bf16.gmra.mxu0 %v1846
      %v2773 = vpop.f32.mrf.mxu0
      %v2774 = vadd.f32 %v2715, %v2773
      %v2775 = vpop.f32.mrf.mxu0
      %v2776 = vadd.f32 %v2717, %v2775
      %2777 = vmatmul.bf16.gmra.mxu0 %v1848
      %v2778 = vpop.f32.mrf.mxu0
      %v2779 = vadd.f32 %v2720, %v2778
      %v2780 = vpop.f32.mrf.mxu0
      %v2781 = vadd.f32 %v2722, %v2780
      %2782 = vmatmul.bf16.gmra.mxu0 %v1850
      %v2783 = vpop.f32.mrf.mxu0
      %v2784 = vadd.f32 %v2725, %v2783
      %v2785 = vpop.f32.mrf.mxu0
      %v2786 = vadd.f32 %v2727, %v2785
      %2787 = vmatmul.bf16.gmra.mxu0 %v1852
      %v2788 = vpop.f32.mrf.mxu0
      %v2789 = vadd.f32 %v2730, %v2788
      %v2790 = vpop.f32.mrf.mxu0
      %v2791 = vadd.f32 %v2732, %v2790
      %2792 = vmatmul.bf16.gmra.mxu0 %v1854
      %v2793 = vpop.f32.mrf.mxu0
      %v2794 = vadd.f32 %v2735, %v2793
      %v2795 = vpop.f32.mrf.mxu0
      %v2796 = vadd.f32 %v2737, %v2795
      %2797 = vmatmul.bf16.gmra.mxu0 %v1856
      %v2798 = vpop.f32.mrf.mxu0
      %v2799 = vadd.f32 %v2740, %v2798
      %v2800 = vpop.f32.mrf.mxu0
      %v2801 = vadd.f32 %v2742, %v2800
      %2802 = vmatmul.bf16.gmra.mxu0 %v1858
      %v2803 = vpop.f32.mrf.mxu0
      %v2804 = vadd.f32 %v2745, %v2803
      %v2805 = vpop.f32.mrf.mxu0
      %v2806 = vadd.f32 %v2747, %v2805
      %2807 = vmatmul.bf16.gmra.mxu0 %v1860
      %v2808 = vpop.f32.mrf.mxu0
      %v2809 = vadd.f32 %v2750, %v2808
      %v2810 = vpop.f32.mrf.mxu0
      %v2811 = vadd.f32 %v2752, %v2810
      %2812 = vmatmul.bf16.gmra.mxu0 %v1862
      %v2813 = vpop.f32.mrf.mxu0
      %v2814 = vadd.f32 %v2755, %v2813
      %v2815 = vpop.f32.mrf.mxu0
      %v2816 = vadd.f32 %v2757, %v2815
      %2817 = vmatmul.bf16.gmra.mxu0 %v1864
      %v2818 = vpop.f32.mrf.mxu0
      %v2819 = vadd.f32 %v2760, %v2818
      %v2820 = vpop.f32.mrf.mxu0
      %v2821 = vadd.f32 %v2762, %v2820
      %2822 = vdwg.mxu0
      %2823 = vmatpush.bf16.msra.mxu0 0
      %2824 = vmatpush.bf16.msra.mxu0 0
      %2825 = vmatpush.bf16.msra.mxu0 0
      %2826 = vmatpush.bf16.msra.mxu0 0
      %2827 = vmatpush.bf16.msra.mxu0 %v2614
      %2828 = vmatpush.bf16.msra.mxu0 %v2613
      %2829 = vmatpush.bf16.msra.mxu0 %v2612
      %2830 = vmatpush.bf16.msra.mxu0 %v2611
      %2831 = vmatmul.bf16.gmra.mxu0 %v2644
      %v2832 = vpop.f32.mrf.mxu0
      %v2833 = vadd.f32 %v2774, %v2832
      %v2834 = vpop.f32.mrf.mxu0
      %v2835 = vadd.f32 %v2776, %v2834
      %2836 = vmatmul.bf16.gmra.mxu0 %v2210
      %v2837 = vpop.f32.mrf.mxu0
      %v2838 = vadd.f32 %v2779, %v2837
      %v2839 = vpop.f32.mrf.mxu0
      %v2840 = vadd.f32 %v2781, %v2839
      %2841 = vmatmul.bf16.gmra.mxu0 %v2213
      %v2842 = vpop.f32.mrf.mxu0
      %v2843 = vadd.f32 %v2784, %v2842
      %v2844 = vpop.f32.mrf.mxu0
      %v2845 = vadd.f32 %v2786, %v2844
      %2846 = vmatmul.bf16.gmra.mxu0 %v2216
      %v2847 = vpop.f32.mrf.mxu0
      %v2848 = vadd.f32 %v2789, %v2847
      %v2849 = vpop.f32.mrf.mxu0
      %v2850 = vadd.f32 %v2791, %v2849
      %2851 = vmatmul.bf16.gmra.mxu0 %v2219
      %v2852 = vpop.f32.mrf.mxu0
      %v2853 = vadd.f32 %v2794, %v2852
      %v2854 = vpop.f32.mrf.mxu0
      %v2855 = vadd.f32 %v2796, %v2854
      %2856 = vmatmul.bf16.gmra.mxu0 %v2222
      %v2857 = vpop.f32.mrf.mxu0
      %v2858 = vadd.f32 %v2799, %v2857
      %v2859 = vpop.f32.mrf.mxu0
      %v2860 = vadd.f32 %v2801, %v2859
      %2861 = vmatmul.bf16.gmra.mxu0 %v2225
      %v2862 = vpop.f32.mrf.mxu0
      %v2863 = vadd.f32 %v2804, %v2862
      %v2864 = vpop.f32.mrf.mxu0
      %v2865 = vadd.f32 %v2806, %v2864
      %2866 = vmatmul.bf16.gmra.mxu0 %v2228
      %v2867 = vpop.f32.mrf.mxu0
      %v2868 = vadd.f32 %v2809, %v2867
      %v2869 = vpop.f32.mrf.mxu0
      %v2870 = vadd.f32 %v2811, %v2869
      %2871 = vmatmul.bf16.gmra.mxu0 %v2231
      %v2872 = vpop.f32.mrf.mxu0
      %v2873 = vadd.f32 %v2814, %v2872
      %v2874 = vpop.f32.mrf.mxu0
      %v2875 = vadd.f32 %v2816, %v2874
      %2876 = vmatmul.bf16.gmra.mxu0 %v2234
      %v2877 = vpop.f32.mrf.mxu0
      %v2878 = vadd.f32 %v2819, %v2877
      %v2879 = vpop.f32.mrf.mxu0
      %v2880 = vadd.f32 %v2821, %v2879
      %2881 = vdwg.mxu0
      %s2882 = scalar_lea.vmem %s3, 448
      %v2883 = vld [vmem:[%s2882] sm:$0xf]
      %v2884 = vld [vmem:[%s2882 + $0x4] sm:$0xf]
      %v2885 = vld [vmem:[%s2882 + $0x8] sm:$0xf]
      %v2886 = vld [vmem:[%s2882 + $0xc] sm:$0xf]
      %v2887 = vld [vmem:[%s2882 + $0x10] sm:$0xf]
      %v2888 = vld [vmem:[%s2882 + $0x14] sm:$0xf]
      %v2889 = vld [vmem:[%s2882 + $0x18] sm:$0xf]
      %v2890 = vld [vmem:[%s2882 + $0x1c] sm:$0xf]
      %v2891 = vld [vmem:[%s2882 + $0x20] sm:$0xf]
      %v2892 = vld [vmem:[%s2882 + $0x24] sm:$0xf]
      %v2893 = vld [vmem:[%s2882 + $0x28] sm:$0xf]
      %v2894 = vld [vmem:[%s2882 + $0x2c] sm:$0xf]
      %v2895 = vld [vmem:[%s2882 + $0x30] sm:$0xf]
      %v2896 = vld [vmem:[%s2882 + $0x34] sm:$0xf]
      %v2897 = vld [vmem:[%s2882 + $0x38] sm:$0xf]
      %v2898 = vld [vmem:[%s2882 + $0x3c] sm:$0xf]
      %v2899 = vld [vmem:[%s2882 + $0x40] sm:$0xf]
      %v2900 = vld [vmem:[%s2882 + $0x44] sm:$0xf]
      %v2901 = vld [vmem:[%s2882 + $0x48] sm:$0xf]
      %v2902 = vld [vmem:[%s2882 + $0x4c] sm:$0xf]
      %v2903 = vld [vmem:[%s2882 + $0x50] sm:$0xf]
      %v2904 = vld [vmem:[%s2882 + $0x54] sm:$0xf]
      %v2905 = vld [vmem:[%s2882 + $0x58] sm:$0xf]
      %v2906 = vld [vmem:[%s2882 + $0x5c] sm:$0xf]
      %v2907 = vld [vmem:[%s2882 + $0x60] sm:$0xf]
      %v2908 = vld [vmem:[%s2882 + $0x64] sm:$0xf]
      %v2909 = vld [vmem:[%s2882 + $0x68] sm:$0xf]
      %v2910 = vld [vmem:[%s2882 + $0x6c] sm:$0xf]
      %v2911 = vld [vmem:[%s2882 + $0x70] sm:$0xf]
      %v2912 = vld [vmem:[%s2882 + $0x74] sm:$0xf]
      %v2913 = vld [vmem:[%s2882 + $0x78] sm:$0xf]
      %v2914 = vld [vmem:[%s2882 + $0x7c] sm:$0xf]
      %v2915 = vld [vmem:[%s2882 + $0x80] sm:$0xf]
      %v2916 = vld [vmem:[%s2882 + $0x84] sm:$0xf]
      %v2917 = vld [vmem:[%s2882 + $0x88] sm:$0xf]
      %v2918 = vld [vmem:[%s2882 + $0x8c] sm:$0xf]
      %v2919 = vld [vmem:[%s2882 + $0x90] sm:$0xf]
      %v2920 = vld [vmem:[%s2882 + $0x94] sm:$0xf]
      %v2921 = vld [vmem:[%s2882 + $0x98] sm:$0xf]
      %v2922 = vld [vmem:[%s2882 + $0x9c] sm:$0xf]
      %v2923 = vld [vmem:[%s2882 + $0xa0] sm:$0xf]
      %v2924 = vld [vmem:[%s2882 + $0xa4] sm:$0xf]
      %v2925 = vld [vmem:[%s2882 + $0xa8] sm:$0xf]
      %v2926 = vld [vmem:[%s2882 + $0xac] sm:$0xf]
      %v2927 = vld [vmem:[%s2882 + $0xb0] sm:$0xf]
      %v2928 = vld [vmem:[%s2882 + $0xb4] sm:$0xf]
      %v2929 = vld [vmem:[%s2882 + $0xb8] sm:$0xf]
      %v2930 = vld [vmem:[%s2882 + $0xbc] sm:$0xf]
      %v2931 = vld [vmem:[%s2882 + $0xc0] sm:$0xf]
      %v2932 = vld [vmem:[%s2882 + $0xc4] sm:$0xf]
      %v2933 = vld [vmem:[%s2882 + $0xc8] sm:$0xf]
      %v2934 = vld [vmem:[%s2882 + $0xcc] sm:$0xf]
      %v2935 = vld [vmem:[%s2882 + $0xd0] sm:$0xf]
      %v2936 = vld [vmem:[%s2882 + $0xd4] sm:$0xf]
      %v2937 = vld [vmem:[%s2882 + $0xd8] sm:$0xf]
      %v2938 = vld [vmem:[%s2882 + $0xdc] sm:$0xf]
      %v2995 = vunpack.c.l.b16 %v2883
      %v2996 = vunpack.c.l.b16 %v2884
      %v2997 = vunpack.c.l.b16 %v2885
      %v2998 = vunpack.c.l.b16 %v2886
      %v2999 = vunpack.c.l.b16 %v2887
      %v3000 = vunpack.c.l.b16 %v2888
      %v3001 = vunpack.c.l.b16 %v2889
      %v3002 = vunpack.c.l.b16 %v2890
      %v3003 = vunpack.c.l.b16 %v2891
      %v3004 = vunpack.c.l.b16 %v2892
      %v3005 = vunpack.c.l.b16 %v2893
      %v3006 = vunpack.c.l.b16 %v2894
      %v3007 = vunpack.c.l.b16 %v2895
      %v3008 = vunpack.c.l.b16 %v2896
      %v3009 = vunpack.c.l.b16 %v2897
      %v3010 = vunpack.c.l.b16 %v2898
      %v3011 = vunpack.c.l.b16 %v2899
      %v3012 = vunpack.c.l.b16 %v2900
      %v3013 = vunpack.c.l.b16 %v2901
      %v3014 = vunpack.c.l.b16 %v2902
      %v3015 = vunpack.c.l.b16 %v2903
      %v3016 = vunpack.c.l.b16 %v2904
      %v3017 = vunpack.c.l.b16 %v2905
      %v3018 = vunpack.c.l.b16 %v2906
      %v3019 = vunpack.c.l.b16 %v2907
      %v3020 = vunpack.c.l.b16 %v2908
      %v3021 = vunpack.c.l.b16 %v2909
      %v3022 = vunpack.c.l.b16 %v2910
      %v3023 = vunpack.c.l.b16 %v2911
      %v3024 = vunpack.c.l.b16 %v2912
      %v3025 = vunpack.c.l.b16 %v2913
      %v3026 = vunpack.c.l.b16 %v2914
      %v3027 = vunpack.c.l.b16 %v2915
      %v3028 = vunpack.c.l.b16 %v2916
      %v3029 = vunpack.c.l.b16 %v2917
      %v3030 = vunpack.c.l.b16 %v2918
      %v3031 = vunpack.c.l.b16 %v2919
      %v3032 = vunpack.c.l.b16 %v2920
      %v3033 = vunpack.c.l.b16 %v2921
      %v3034 = vunpack.c.l.b16 %v2922
      %v3035 = vunpack.c.l.b16 %v2923
      %v3036 = vunpack.c.l.b16 %v2924
      %v3037 = vunpack.c.l.b16 %v2925
      %v3038 = vunpack.c.l.b16 %v2926
      %v3039 = vunpack.c.l.b16 %v2927
      %v3040 = vunpack.c.l.b16 %v2928
      %v3041 = vunpack.c.l.b16 %v2929
      %v3042 = vunpack.c.l.b16 %v2930
      %v3043 = vunpack.c.l.b16 %v2931
      %v3044 = vunpack.c.l.b16 %v2932
      %v3045 = vunpack.c.l.b16 %v2933
      %v3046 = vunpack.c.l.b16 %v2934
      %v3047 = vunpack.c.l.b16 %v2935
      %v3048 = vunpack.c.l.b16 %v2936
      %v3049 = vunpack.c.l.b16 %v2937
      %v3050 = vunpack.c.l.b16 %v2938
      %v3051 = vpack.c.b16 %v2996, %v2995
      %v3052 = vpack.c.b16 %v2998, %v2997
      %v3053 = vpack.c.b16 %v3000, %v2999
      %v3054 = vpack.c.b16 %v3002, %v3001
      %v3055 = vpack.c.b16 %v3004, %v3003
      %v3056 = vpack.c.b16 %v3006, %v3005
      %v3057 = vpack.c.b16 %v3008, %v3007
      %v3058 = vpack.c.b16 %v3010, %v3009
      %v3059 = vpack.c.b16 %v3012, %v3011
      %v3060 = vpack.c.b16 %v3014, %v3013
      %v3061 = vpack.c.b16 %v3016, %v3015
      %v3062 = vpack.c.b16 %v3018, %v3017
      %v3063 = vpack.c.b16 %v3020, %v3019
      %v3064 = vpack.c.b16 %v3022, %v3021
      %v3065 = vpack.c.b16 %v3024, %v3023
      %v3066 = vpack.c.b16 %v3026, %v3025
      %v3067 = vpack.c.b16 %v3028, %v3027
      %v3068 = vpack.c.b16 %v3030, %v3029
      %v3069 = vpack.c.b16 %v3032, %v3031
      %v3070 = vpack.c.b16 %v3034, %v3033
      %v3071 = vpack.c.b16 %v3036, %v3035
      %v3072 = vpack.c.b16 %v3038, %v3037
      %v3073 = vpack.c.b16 %v3040, %v3039
      %v3074 = vpack.c.b16 %v3042, %v3041
      %v3075 = vpack.c.b16 %v3044, %v3043
      %v3076 = vpack.c.b16 %v3046, %v3045
      %v3077 = vpack.c.b16 %v3048, %v3047
      %v3078 = vpack.c.b16 %v3050, %v3049
      %v3108 = vsel %vm859, %v1919, 0
      %3110 = vmatpush.bf16.msra.mxu0 %v3058
      %3111 = vmatpush.bf16.msra.mxu0 %v3057
      %3112 = vmatpush.bf16.msra.mxu0 %v3056
      %3113 = vmatpush.bf16.msra.mxu0 %v3055
      %3114 = vmatpush.bf16.msra.mxu0 %v3054
      %3115 = vmatpush.bf16.msra.mxu0 %v3053
      %3116 = vmatpush.bf16.msra.mxu0 %v3052
      %3117 = vmatpush.bf16.msra.mxu0 %v3051
      %3118 = vmatmul.bf16.gmra.mxu0 %v1729
      %v3119 = vpop.f32.mrf.mxu0
      %v3120 = vadd.f32 0.0, %v3119
      %v3121 = vpop.f32.mrf.mxu0
      %v3122 = vadd.f32 0.0, %v3121
      %3123 = vmatmul.bf16.gmra.mxu0 %v1732
      %v3124 = vpop.f32.mrf.mxu0
      %v3125 = vadd.f32 0.0, %v3124
      %v3126 = vpop.f32.mrf.mxu0
      %v3127 = vadd.f32 0.0, %v3126
      %3128 = vmatmul.bf16.gmra.mxu0 %v1735
      %v3129 = vpop.f32.mrf.mxu0
      %v3130 = vadd.f32 0.0, %v3129
      %v3131 = vpop.f32.mrf.mxu0
      %v3132 = vadd.f32 0.0, %v3131
      %3133 = vmatmul.bf16.gmra.mxu0 %v1738
      %v3134 = vpop.f32.mrf.mxu0
      %v3135 = vadd.f32 0.0, %v3134
      %v3136 = vpop.f32.mrf.mxu0
      %v3137 = vadd.f32 0.0, %v3136
      %3138 = vmatmul.bf16.gmra.mxu0 %v1741
      %v3139 = vpop.f32.mrf.mxu0
      %v3140 = vadd.f32 0.0, %v3139
      %v3141 = vpop.f32.mrf.mxu0
      %v3142 = vadd.f32 0.0, %v3141
      %3143 = vmatmul.bf16.gmra.mxu0 %v1744
      %v3144 = vpop.f32.mrf.mxu0
      %v3145 = vadd.f32 0.0, %v3144
      %v3146 = vpop.f32.mrf.mxu0
      %v3147 = vadd.f32 0.0, %v3146
      %3148 = vmatmul.bf16.gmra.mxu0 %v1747
      %v3149 = vpop.f32.mrf.mxu0
      %v3150 = vadd.f32 0.0, %v3149
      %v3151 = vpop.f32.mrf.mxu0
      %v3152 = vadd.f32 0.0, %v3151
      %3153 = vmatmul.bf16.gmra.mxu0 %v1750
      %v3154 = vpop.f32.mrf.mxu0
      %v3155 = vadd.f32 0.0, %v3154
      %v3156 = vpop.f32.mrf.mxu0
      %v3157 = vadd.f32 0.0, %v3156
      %3158 = vmatmul.bf16.gmra.mxu0 %v1753
      %v3159 = vpop.f32.mrf.mxu0
      %v3160 = vadd.f32 0.0, %v3159
      %v3161 = vpop.f32.mrf.mxu0
      %v3162 = vadd.f32 0.0, %v3161
      %3163 = vmatmul.bf16.gmra.mxu0 %v1756
      %v3164 = vpop.f32.mrf.mxu0
      %v3165 = vadd.f32 0.0, %v3164
      %v3166 = vpop.f32.mrf.mxu0
      %v3167 = vadd.f32 0.0, %v3166
      %3168 = vdwg.mxu0
      %3169 = vmatpush.bf16.msra.mxu0 %v3066
      %3170 = vmatpush.bf16.msra.mxu0 %v3065
      %3171 = vmatpush.bf16.msra.mxu0 %v3064
      %3172 = vmatpush.bf16.msra.mxu0 %v3063
      %3173 = vmatpush.bf16.msra.mxu0 %v3062
      %3174 = vmatpush.bf16.msra.mxu0 %v3061
      %3175 = vmatpush.bf16.msra.mxu0 %v3060
      %3176 = vmatpush.bf16.msra.mxu0 %v3059
      %3177 = vmatmul.bf16.gmra.mxu0 %v1800
      %v3178 = vpop.f32.mrf.mxu0
      %v3179 = vadd.f32 %v3120, %v3178
      %v3180 = vpop.f32.mrf.mxu0
      %v3181 = vadd.f32 %v3122, %v3180
      %3182 = vmatmul.bf16.gmra.mxu0 %v1802
      %v3183 = vpop.f32.mrf.mxu0
      %v3184 = vadd.f32 %v3125, %v3183
      %v3185 = vpop.f32.mrf.mxu0
      %v3186 = vadd.f32 %v3127, %v3185
      %3187 = vmatmul.bf16.gmra.mxu0 %v1804
      %v3188 = vpop.f32.mrf.mxu0
      %v3189 = vadd.f32 %v3130, %v3188
      %v3190 = vpop.f32.mrf.mxu0
      %v3191 = vadd.f32 %v3132, %v3190
      %3192 = vmatmul.bf16.gmra.mxu0 %v1806
      %v3193 = vpop.f32.mrf.mxu0
      %v3194 = vadd.f32 %v3135, %v3193
      %v3195 = vpop.f32.mrf.mxu0
      %v3196 = vadd.f32 %v3137, %v3195
      %3197 = vmatmul.bf16.gmra.mxu0 %v1808
      %v3198 = vpop.f32.mrf.mxu0
      %v3199 = vadd.f32 %v3140, %v3198
      %v3200 = vpop.f32.mrf.mxu0
      %v3201 = vadd.f32 %v3142, %v3200
      %3202 = vmatmul.bf16.gmra.mxu0 %v1810
      %v3203 = vpop.f32.mrf.mxu0
      %v3204 = vadd.f32 %v3145, %v3203
      %v3205 = vpop.f32.mrf.mxu0
      %v3206 = vadd.f32 %v3147, %v3205
      %3207 = vmatmul.bf16.gmra.mxu0 %v1812
      %v3208 = vpop.f32.mrf.mxu0
      %v3209 = vadd.f32 %v3150, %v3208
      %v3210 = vpop.f32.mrf.mxu0
      %v3211 = vadd.f32 %v3152, %v3210
      %3212 = vmatmul.bf16.gmra.mxu0 %v1814
      %v3213 = vpop.f32.mrf.mxu0
      %v3214 = vadd.f32 %v3155, %v3213
      %v3215 = vpop.f32.mrf.mxu0
      %v3216 = vadd.f32 %v3157, %v3215
      %3217 = vmatmul.bf16.gmra.mxu0 %v1816
      %v3218 = vpop.f32.mrf.mxu0
      %v3219 = vadd.f32 %v3160, %v3218
      %v3220 = vpop.f32.mrf.mxu0
      %v3221 = vadd.f32 %v3162, %v3220
      %3222 = vmatmul.bf16.gmra.mxu0 %v1818
      %v3223 = vpop.f32.mrf.mxu0
      %v3224 = vadd.f32 %v3165, %v3223
      %v3225 = vpop.f32.mrf.mxu0
      %v3226 = vadd.f32 %v3167, %v3225
      %3227 = vdwg.mxu0
      %3228 = vmatpush.bf16.msra.mxu0 %v3074
      %3229 = vmatpush.bf16.msra.mxu0 %v3073
      %3230 = vmatpush.bf16.msra.mxu0 %v3072
      %3231 = vmatpush.bf16.msra.mxu0 %v3071
      %3232 = vmatpush.bf16.msra.mxu0 %v3070
      %3233 = vmatpush.bf16.msra.mxu0 %v3069
      %3234 = vmatpush.bf16.msra.mxu0 %v3068
      %3235 = vmatpush.bf16.msra.mxu0 %v3067
      %3236 = vmatmul.bf16.gmra.mxu0 %v1850
      %v3237 = vpop.f32.mrf.mxu0
      %v3238 = vadd.f32 %v3179, %v3237
      %v3239 = vpop.f32.mrf.mxu0
      %v3240 = vadd.f32 %v3181, %v3239
      %3241 = vmatmul.bf16.gmra.mxu0 %v1852
      %v3242 = vpop.f32.mrf.mxu0
      %v3243 = vadd.f32 %v3184, %v3242
      %v3244 = vpop.f32.mrf.mxu0
      %v3245 = vadd.f32 %v3186, %v3244
      %3246 = vmatmul.bf16.gmra.mxu0 %v1854
      %v3247 = vpop.f32.mrf.mxu0
      %v3248 = vadd.f32 %v3189, %v3247
      %v3249 = vpop.f32.mrf.mxu0
      %v3250 = vadd.f32 %v3191, %v3249
      %3251 = vmatmul.bf16.gmra.mxu0 %v1856
      %v3252 = vpop.f32.mrf.mxu0
      %v3253 = vadd.f32 %v3194, %v3252
      %v3254 = vpop.f32.mrf.mxu0
      %v3255 = vadd.f32 %v3196, %v3254
      %3256 = vmatmul.bf16.gmra.mxu0 %v1858
      %v3257 = vpop.f32.mrf.mxu0
      %v3258 = vadd.f32 %v3199, %v3257
      %v3259 = vpop.f32.mrf.mxu0
      %v3260 = vadd.f32 %v3201, %v3259
      %3261 = vmatmul.bf16.gmra.mxu0 %v1860
      %v3262 = vpop.f32.mrf.mxu0
      %v3263 = vadd.f32 %v3204, %v3262
      %v3264 = vpop.f32.mrf.mxu0
      %v3265 = vadd.f32 %v3206, %v3264
      %3266 = vmatmul.bf16.gmra.mxu0 %v1862
      %v3267 = vpop.f32.mrf.mxu0
      %v3268 = vadd.f32 %v3209, %v3267
      %v3269 = vpop.f32.mrf.mxu0
      %v3270 = vadd.f32 %v3211, %v3269
      %3271 = vmatmul.bf16.gmra.mxu0 %v1864
      %v3272 = vpop.f32.mrf.mxu0
      %v3273 = vadd.f32 %v3214, %v3272
      %v3274 = vpop.f32.mrf.mxu0
      %v3275 = vadd.f32 %v3216, %v3274
      %3276 = vmatmul.bf16.gmra.mxu0 %v1866
      %v3277 = vpop.f32.mrf.mxu0
      %v3278 = vadd.f32 %v3219, %v3277
      %v3279 = vpop.f32.mrf.mxu0
      %v3280 = vadd.f32 %v3221, %v3279
      %3281 = vmatmul.bf16.gmra.mxu0 %v1868
      %v3282 = vpop.f32.mrf.mxu0
      %v3283 = vadd.f32 %v3224, %v3282
      %v3284 = vpop.f32.mrf.mxu0
      %v3285 = vadd.f32 %v3226, %v3284
      %3286 = vdwg.mxu0
      %3287 = vmatpush.bf16.msra.mxu0 0
      %3288 = vmatpush.bf16.msra.mxu0 0
      %3289 = vmatpush.bf16.msra.mxu0 0
      %3290 = vmatpush.bf16.msra.mxu0 0
      %3291 = vmatpush.bf16.msra.mxu0 %v3078
      %3292 = vmatpush.bf16.msra.mxu0 %v3077
      %3293 = vmatpush.bf16.msra.mxu0 %v3076
      %3294 = vmatpush.bf16.msra.mxu0 %v3075
      %3295 = vmatmul.bf16.gmra.mxu0 %v2213
      %v3296 = vpop.f32.mrf.mxu0
      %v3297 = vadd.f32 %v3238, %v3296
      %v3298 = vpop.f32.mrf.mxu0
      %v3299 = vadd.f32 %v3240, %v3298
      %3300 = vmatmul.bf16.gmra.mxu0 %v2216
      %v3301 = vpop.f32.mrf.mxu0
      %v3302 = vadd.f32 %v3243, %v3301
      %v3303 = vpop.f32.mrf.mxu0
      %v3304 = vadd.f32 %v3245, %v3303
      %3305 = vmatmul.bf16.gmra.mxu0 %v2219
      %v3306 = vpop.f32.mrf.mxu0
      %v3307 = vadd.f32 %v3248, %v3306
      %v3308 = vpop.f32.mrf.mxu0
      %v3309 = vadd.f32 %v3250, %v3308
      %3310 = vmatmul.bf16.gmra.mxu0 %v2222
      %v3311 = vpop.f32.mrf.mxu0
      %v3312 = vadd.f32 %v3253, %v3311
      %v3313 = vpop.f32.mrf.mxu0
      %v3314 = vadd.f32 %v3255, %v3313
      %3315 = vmatmul.bf16.gmra.mxu0 %v2225
      %v3316 = vpop.f32.mrf.mxu0
      %v3317 = vadd.f32 %v3258, %v3316
      %v3318 = vpop.f32.mrf.mxu0
      %v3319 = vadd.f32 %v3260, %v3318
      %3320 = vmatmul.bf16.gmra.mxu0 %v2228
      %v3321 = vpop.f32.mrf.mxu0
      %v3322 = vadd.f32 %v3263, %v3321
      %v3323 = vpop.f32.mrf.mxu0
      %v3324 = vadd.f32 %v3265, %v3323
      %3325 = vmatmul.bf16.gmra.mxu0 %v2231
      %v3326 = vpop.f32.mrf.mxu0
      %v3327 = vadd.f32 %v3268, %v3326
      %v3328 = vpop.f32.mrf.mxu0
      %v3329 = vadd.f32 %v3270, %v3328
      %3330 = vmatmul.bf16.gmra.mxu0 %v2234
      %v3331 = vpop.f32.mrf.mxu0
      %v3332 = vadd.f32 %v3273, %v3331
      %v3333 = vpop.f32.mrf.mxu0
      %v3334 = vadd.f32 %v3275, %v3333
      %3335 = vmatmul.bf16.gmra.mxu0 %v2237
      %v3336 = vpop.f32.mrf.mxu0
      %v3337 = vadd.f32 %v3278, %v3336
      %v3338 = vpop.f32.mrf.mxu0
      %v3339 = vadd.f32 %v3280, %v3338
      %3340 = vmatmul.bf16.gmra.mxu0 %v3108
      %v3341 = vpop.f32.mrf.mxu0
      %v3342 = vadd.f32 %v3283, %v3341
      %v3343 = vpop.f32.mrf.mxu0
      %v3344 = vadd.f32 %v3285, %v3343
      %3345 = vdwg.mxu0
      %v3346 = vadd.f32 %v2833, %v3297
      %v3347 = vadd.f32 %v2835, %v3299
      %v3348 = vadd.f32 %v2838, %v3302
      %v3349 = vadd.f32 %v2840, %v3304
      %v3350 = vadd.f32 %v2843, %v3307
      %v3351 = vadd.f32 %v2845, %v3309
      %v3352 = vadd.f32 %v2848, %v3312
      %v3353 = vadd.f32 %v2850, %v3314
      %v3354 = vadd.f32 %v2853, %v3317
      %v3355 = vadd.f32 %v2855, %v3319
      %v3356 = vadd.f32 %v2858, %v3322
      %v3357 = vadd.f32 %v2860, %v3324
      %v3358 = vadd.f32 %v2863, %v3327
      %v3359 = vadd.f32 %v2865, %v3329
      %v3360 = vadd.f32 %v2868, %v3332
      %v3361 = vadd.f32 %v2870, %v3334
      %v3362 = vadd.f32 %v2873, %v3337
      %v3363 = vadd.f32 %v2875, %v3339
      %v3364 = vadd.f32 %v2878, %v3342
      %v3365 = vadd.f32 %v2880, %v3344
      %s3366 = scalar_lea.vmem %s3, 672
      %v3367 = vld [vmem:[%s3366] sm:$0xf]
      %v3368 = vld [vmem:[%s3366 + $0x4] sm:$0xf]
      %v3369 = vld [vmem:[%s3366 + $0x8] sm:$0xf]
      %v3370 = vld [vmem:[%s3366 + $0xc] sm:$0xf]
      %v3371 = vld [vmem:[%s3366 + $0x10] sm:$0xf]
      %v3372 = vld [vmem:[%s3366 + $0x14] sm:$0xf]
      %v3373 = vld [vmem:[%s3366 + $0x18] sm:$0xf]
      %v3374 = vld [vmem:[%s3366 + $0x1c] sm:$0xf]
      %v3375 = vld [vmem:[%s3366 + $0x20] sm:$0xf]
      %v3376 = vld [vmem:[%s3366 + $0x24] sm:$0xf]
      %v3377 = vld [vmem:[%s3366 + $0x28] sm:$0xf]
      %v3378 = vld [vmem:[%s3366 + $0x2c] sm:$0xf]
      %v3379 = vld [vmem:[%s3366 + $0x30] sm:$0xf]
      %v3380 = vld [vmem:[%s3366 + $0x34] sm:$0xf]
      %v3381 = vld [vmem:[%s3366 + $0x38] sm:$0xf]
      %v3382 = vld [vmem:[%s3366 + $0x3c] sm:$0xf]
      %v3383 = vld [vmem:[%s3366 + $0x40] sm:$0xf]
      %v3384 = vld [vmem:[%s3366 + $0x44] sm:$0xf]
      %v3385 = vld [vmem:[%s3366 + $0x48] sm:$0xf]
      %v3386 = vld [vmem:[%s3366 + $0x4c] sm:$0xf]
      %v3387 = vld [vmem:[%s3366 + $0x50] sm:$0xf]
      %v3388 = vld [vmem:[%s3366 + $0x54] sm:$0xf]
      %v3389 = vld [vmem:[%s3366 + $0x58] sm:$0xf]
      %v3390 = vld [vmem:[%s3366 + $0x5c] sm:$0xf]
      %v3391 = vld [vmem:[%s3366 + $0x60] sm:$0xf]
      %v3392 = vld [vmem:[%s3366 + $0x64] sm:$0xf]
      %v3393 = vld [vmem:[%s3366 + $0x68] sm:$0xf]
      %v3394 = vld [vmem:[%s3366 + $0x6c] sm:$0xf]
      %v3395 = vld [vmem:[%s3366 + $0x70] sm:$0xf]
      %v3396 = vld [vmem:[%s3366 + $0x74] sm:$0xf]
      %v3397 = vld [vmem:[%s3366 + $0x78] sm:$0xf]
      %v3398 = vld [vmem:[%s3366 + $0x7c] sm:$0xf]
      %v3399 = vld [vmem:[%s3366 + $0x80] sm:$0xf]
      %v3400 = vld [vmem:[%s3366 + $0x84] sm:$0xf]
      %v3401 = vld [vmem:[%s3366 + $0x88] sm:$0xf]
      %v3402 = vld [vmem:[%s3366 + $0x8c] sm:$0xf]
      %v3403 = vld [vmem:[%s3366 + $0x90] sm:$0xf]
      %v3404 = vld [vmem:[%s3366 + $0x94] sm:$0xf]
      %v3405 = vld [vmem:[%s3366 + $0x98] sm:$0xf]
      %v3406 = vld [vmem:[%s3366 + $0x9c] sm:$0xf]
      %v3407 = vld [vmem:[%s3366 + $0xa0] sm:$0xf]
      %v3408 = vld [vmem:[%s3366 + $0xa4] sm:$0xf]
      %v3409 = vld [vmem:[%s3366 + $0xa8] sm:$0xf]
      %v3410 = vld [vmem:[%s3366 + $0xac] sm:$0xf]
      %v3411 = vld [vmem:[%s3366 + $0xb0] sm:$0xf]
      %v3412 = vld [vmem:[%s3366 + $0xb4] sm:$0xf]
      %v3413 = vld [vmem:[%s3366 + $0xb8] sm:$0xf]
      %v3414 = vld [vmem:[%s3366 + $0xbc] sm:$0xf]
      %v3415 = vld [vmem:[%s3366 + $0xc0] sm:$0xf]
      %v3416 = vld [vmem:[%s3366 + $0xc4] sm:$0xf]
      %v3417 = vld [vmem:[%s3366 + $0xc8] sm:$0xf]
      %v3418 = vld [vmem:[%s3366 + $0xcc] sm:$0xf]
      %v3419 = vld [vmem:[%s3366 + $0xd0] sm:$0xf]
      %v3420 = vld [vmem:[%s3366 + $0xd4] sm:$0xf]
      %v3421 = vld [vmem:[%s3366 + $0xd8] sm:$0xf]
      %v3422 = vld [vmem:[%s3366 + $0xdc] sm:$0xf]
      %v3479 = vunpack.c.l.b16 %v3367
      %v3480 = vunpack.c.l.b16 %v3368
      %v3481 = vunpack.c.l.b16 %v3369
      %v3482 = vunpack.c.l.b16 %v3370
      %v3483 = vunpack.c.l.b16 %v3371
      %v3484 = vunpack.c.l.b16 %v3372
      %v3485 = vunpack.c.l.b16 %v3373
      %v3486 = vunpack.c.l.b16 %v3374
      %v3487 = vunpack.c.l.b16 %v3375
      %v3488 = vunpack.c.l.b16 %v3376
      %v3489 = vunpack.c.l.b16 %v3377
      %v3490 = vunpack.c.l.b16 %v3378
      %v3491 = vunpack.c.l.b16 %v3379
      %v3492 = vunpack.c.l.b16 %v3380
      %v3493 = vunpack.c.l.b16 %v3381
      %v3494 = vunpack.c.l.b16 %v3382
      %v3495 = vunpack.c.l.b16 %v3383
      %v3496 = vunpack.c.l.b16 %v3384
      %v3497 = vunpack.c.l.b16 %v3385
      %v3498 = vunpack.c.l.b16 %v3386
      %v3499 = vunpack.c.l.b16 %v3387
      %v3500 = vunpack.c.l.b16 %v3388
      %v3501 = vunpack.c.l.b16 %v3389
      %v3502 = vunpack.c.l.b16 %v3390
      %v3503 = vunpack.c.l.b16 %v3391
      %v3504 = vunpack.c.l.b16 %v3392
      %v3505 = vunpack.c.l.b16 %v3393
      %v3506 = vunpack.c.l.b16 %v3394
      %v3507 = vunpack.c.l.b16 %v3395
      %v3508 = vunpack.c.l.b16 %v3396
      %v3509 = vunpack.c.l.b16 %v3397
      %v3510 = vunpack.c.l.b16 %v3398
      %v3511 = vunpack.c.l.b16 %v3399
      %v3512 = vunpack.c.l.b16 %v3400
      %v3513 = vunpack.c.l.b16 %v3401
      %v3514 = vunpack.c.l.b16 %v3402
      %v3515 = vunpack.c.l.b16 %v3403
      %v3516 = vunpack.c.l.b16 %v3404
      %v3517 = vunpack.c.l.b16 %v3405
      %v3518 = vunpack.c.l.b16 %v3406
      %v3519 = vunpack.c.l.b16 %v3407
      %v3520 = vunpack.c.l.b16 %v3408
      %v3521 = vunpack.c.l.b16 %v3409
      %v3522 = vunpack.c.l.b16 %v3410
      %v3523 = vunpack.c.l.b16 %v3411
      %v3524 = vunpack.c.l.b16 %v3412
      %v3525 = vunpack.c.l.b16 %v3413
      %v3526 = vunpack.c.l.b16 %v3414
      %v3527 = vunpack.c.l.b16 %v3415
      %v3528 = vunpack.c.l.b16 %v3416
      %v3529 = vunpack.c.l.b16 %v3417
      %v3530 = vunpack.c.l.b16 %v3418
      %v3531 = vunpack.c.l.b16 %v3419
      %v3532 = vunpack.c.l.b16 %v3420
      %v3533 = vunpack.c.l.b16 %v3421
      %v3534 = vunpack.c.l.b16 %v3422
      %v3535 = vpack.c.b16 %v3480, %v3479
      %v3536 = vpack.c.b16 %v3482, %v3481
      %v3537 = vpack.c.b16 %v3484, %v3483
      %v3538 = vpack.c.b16 %v3486, %v3485
      %v3539 = vpack.c.b16 %v3488, %v3487
      %v3540 = vpack.c.b16 %v3490, %v3489
      %v3541 = vpack.c.b16 %v3492, %v3491
      %v3542 = vpack.c.b16 %v3494, %v3493
      %v3543 = vpack.c.b16 %v3496, %v3495
      %v3544 = vpack.c.b16 %v3498, %v3497
      %v3545 = vpack.c.b16 %v3500, %v3499
      %v3546 = vpack.c.b16 %v3502, %v3501
      %v3547 = vpack.c.b16 %v3504, %v3503
      %v3548 = vpack.c.b16 %v3506, %v3505
      %v3549 = vpack.c.b16 %v3508, %v3507
      %v3550 = vpack.c.b16 %v3510, %v3509
      %v3551 = vpack.c.b16 %v3512, %v3511
      %v3552 = vpack.c.b16 %v3514, %v3513
      %v3553 = vpack.c.b16 %v3516, %v3515
      %v3554 = vpack.c.b16 %v3518, %v3517
      %v3555 = vpack.c.b16 %v3520, %v3519
      %v3556 = vpack.c.b16 %v3522, %v3521
      %v3557 = vpack.c.b16 %v3524, %v3523
      %v3558 = vpack.c.b16 %v3526, %v3525
      %v3559 = vpack.c.b16 %v3528, %v3527
      %v3560 = vpack.c.b16 %v3530, %v3529
      %v3561 = vpack.c.b16 %v3532, %v3531
      %v3562 = vpack.c.b16 %v3534, %v3533
      %v3592 = vsel %vm859, %v1921, 0
      %3594 = vmatpush.bf16.msra.mxu0 %v3542
      %3595 = vmatpush.bf16.msra.mxu0 %v3541
      %3596 = vmatpush.bf16.msra.mxu0 %v3540
      %3597 = vmatpush.bf16.msra.mxu0 %v3539
      %3598 = vmatpush.bf16.msra.mxu0 %v3538
      %3599 = vmatpush.bf16.msra.mxu0 %v3537
      %3600 = vmatpush.bf16.msra.mxu0 %v3536
      %3601 = vmatpush.bf16.msra.mxu0 %v3535
      %3602 = vmatmul.bf16.gmra.mxu0 %v1732
      %v3603 = vpop.f32.mrf.mxu0
      %v3604 = vadd.f32 0.0, %v3603
      %v3605 = vpop.f32.mrf.mxu0
      %v3606 = vadd.f32 0.0, %v3605
      %3607 = vmatmul.bf16.gmra.mxu0 %v1735
      %v3608 = vpop.f32.mrf.mxu0
      %v3609 = vadd.f32 0.0, %v3608
      %v3610 = vpop.f32.mrf.mxu0
      %v3611 = vadd.f32 0.0, %v3610
      %3612 = vmatmul.bf16.gmra.mxu0 %v1738
      %v3613 = vpop.f32.mrf.mxu0
      %v3614 = vadd.f32 0.0, %v3613
      %v3615 = vpop.f32.mrf.mxu0
      %v3616 = vadd.f32 0.0, %v3615
      %3617 = vmatmul.bf16.gmra.mxu0 %v1741
      %v3618 = vpop.f32.mrf.mxu0
      %v3619 = vadd.f32 0.0, %v3618
      %v3620 = vpop.f32.mrf.mxu0
      %v3621 = vadd.f32 0.0, %v3620
      %3622 = vmatmul.bf16.gmra.mxu0 %v1744
      %v3623 = vpop.f32.mrf.mxu0
      %v3624 = vadd.f32 0.0, %v3623
      %v3625 = vpop.f32.mrf.mxu0
      %v3626 = vadd.f32 0.0, %v3625
      %3627 = vmatmul.bf16.gmra.mxu0 %v1747
      %v3628 = vpop.f32.mrf.mxu0
      %v3629 = vadd.f32 0.0, %v3628
      %v3630 = vpop.f32.mrf.mxu0
      %v3631 = vadd.f32 0.0, %v3630
      %3632 = vmatmul.bf16.gmra.mxu0 %v1750
      %v3633 = vpop.f32.mrf.mxu0
      %v3634 = vadd.f32 0.0, %v3633
      %v3635 = vpop.f32.mrf.mxu0
      %v3636 = vadd.f32 0.0, %v3635
      %3637 = vmatmul.bf16.gmra.mxu0 %v1753
      %v3638 = vpop.f32.mrf.mxu0
      %v3639 = vadd.f32 0.0, %v3638
      %v3640 = vpop.f32.mrf.mxu0
      %v3641 = vadd.f32 0.0, %v3640
      %3642 = vmatmul.bf16.gmra.mxu0 %v1756
      %v3643 = vpop.f32.mrf.mxu0
      %v3644 = vadd.f32 0.0, %v3643
      %v3645 = vpop.f32.mrf.mxu0
      %v3646 = vadd.f32 0.0, %v3645
      %3647 = vmatmul.bf16.gmra.mxu0 %v1759
      %v3648 = vpop.f32.mrf.mxu0
      %v3649 = vadd.f32 0.0, %v3648
      %v3650 = vpop.f32.mrf.mxu0
      %v3651 = vadd.f32 0.0, %v3650
      %3652 = vdwg.mxu0
      %3653 = vmatpush.bf16.msra.mxu0 %v3550
      %3654 = vmatpush.bf16.msra.mxu0 %v3549
      %3655 = vmatpush.bf16.msra.mxu0 %v3548
      %3656 = vmatpush.bf16.msra.mxu0 %v3547
      %3657 = vmatpush.bf16.msra.mxu0 %v3546
      %3658 = vmatpush.bf16.msra.mxu0 %v3545
      %3659 = vmatpush.bf16.msra.mxu0 %v3544
      %3660 = vmatpush.bf16.msra.mxu0 %v3543
      %3661 = vmatmul.bf16.gmra.mxu0 %v1802
      %v3662 = vpop.f32.mrf.mxu0
      %v3663 = vadd.f32 %v3604, %v3662
      %v3664 = vpop.f32.mrf.mxu0
      %v3665 = vadd.f32 %v3606, %v3664
      %3666 = vmatmul.bf16.gmra.mxu0 %v1804
      %v3667 = vpop.f32.mrf.mxu0
      %v3668 = vadd.f32 %v3609, %v3667
      %v3669 = vpop.f32.mrf.mxu0
      %v3670 = vadd.f32 %v3611, %v3669
      %3671 = vmatmul.bf16.gmra.mxu0 %v1806
      %v3672 = vpop.f32.mrf.mxu0
      %v3673 = vadd.f32 %v3614, %v3672
      %v3674 = vpop.f32.mrf.mxu0
      %v3675 = vadd.f32 %v3616, %v3674
      %3676 = vmatmul.bf16.gmra.mxu0 %v1808
      %v3677 = vpop.f32.mrf.mxu0
      %v3678 = vadd.f32 %v3619, %v3677
      %v3679 = vpop.f32.mrf.mxu0
      %v3680 = vadd.f32 %v3621, %v3679
      %3681 = vmatmul.bf16.gmra.mxu0 %v1810
      %v3682 = vpop.f32.mrf.mxu0
      %v3683 = vadd.f32 %v3624, %v3682
      %v3684 = vpop.f32.mrf.mxu0
      %v3685 = vadd.f32 %v3626, %v3684
      %3686 = vmatmul.bf16.gmra.mxu0 %v1812
      %v3687 = vpop.f32.mrf.mxu0
      %v3688 = vadd.f32 %v3629, %v3687
      %v3689 = vpop.f32.mrf.mxu0
      %v3690 = vadd.f32 %v3631, %v3689
      %3691 = vmatmul.bf16.gmra.mxu0 %v1814
      %v3692 = vpop.f32.mrf.mxu0
      %v3693 = vadd.f32 %v3634, %v3692
      %v3694 = vpop.f32.mrf.mxu0
      %v3695 = vadd.f32 %v3636, %v3694
      %3696 = vmatmul.bf16.gmra.mxu0 %v1816
      %v3697 = vpop.f32.mrf.mxu0
      %v3698 = vadd.f32 %v3639, %v3697
      %v3699 = vpop.f32.mrf.mxu0
      %v3700 = vadd.f32 %v3641, %v3699
      %3701 = vmatmul.bf16.gmra.mxu0 %v1818
      %v3702 = vpop.f32.mrf.mxu0
      %v3703 = vadd.f32 %v3644, %v3702
      %v3704 = vpop.f32.mrf.mxu0
      %v3705 = vadd.f32 %v3646, %v3704
      %3706 = vmatmul.bf16.gmra.mxu0 %v1820
      %v3707 = vpop.f32.mrf.mxu0
      %v3708 = vadd.f32 %v3649, %v3707
      %v3709 = vpop.f32.mrf.mxu0
      %v3710 = vadd.f32 %v3651, %v3709
      %3711 = vdwg.mxu0
      %3712 = vmatpush.bf16.msra.mxu0 %v3558
      %3713 = vmatpush.bf16.msra.mxu0 %v3557
      %3714 = vmatpush.bf16.msra.mxu0 %v3556
      %3715 = vmatpush.bf16.msra.mxu0 %v3555
      %3716 = vmatpush.bf16.msra.mxu0 %v3554
      %3717 = vmatpush.bf16.msra.mxu0 %v3553
      %3718 = vmatpush.bf16.msra.mxu0 %v3552
      %3719 = vmatpush.bf16.msra.mxu0 %v3551
      %3720 = vmatmul.bf16.gmra.mxu0 %v1852
      %v3721 = vpop.f32.mrf.mxu0
      %v3722 = vadd.f32 %v3663, %v3721
      %v3723 = vpop.f32.mrf.mxu0
      %v3724 = vadd.f32 %v3665, %v3723
      %3725 = vmatmul.bf16.gmra.mxu0 %v1854
      %v3726 = vpop.f32.mrf.mxu0
      %v3727 = vadd.f32 %v3668, %v3726
      %v3728 = vpop.f32.mrf.mxu0
      %v3729 = vadd.f32 %v3670, %v3728
      %3730 = vmatmul.bf16.gmra.mxu0 %v1856
      %v3731 = vpop.f32.mrf.mxu0
      %v3732 = vadd.f32 %v3673, %v3731
      %v3733 = vpop.f32.mrf.mxu0
      %v3734 = vadd.f32 %v3675, %v3733
      %3735 = vmatmul.bf16.gmra.mxu0 %v1858
      %v3736 = vpop.f32.mrf.mxu0
      %v3737 = vadd.f32 %v3678, %v3736
      %v3738 = vpop.f32.mrf.mxu0
      %v3739 = vadd.f32 %v3680, %v3738
      %3740 = vmatmul.bf16.gmra.mxu0 %v1860
      %v3741 = vpop.f32.mrf.mxu0
      %v3742 = vadd.f32 %v3683, %v3741
      %v3743 = vpop.f32.mrf.mxu0
      %v3744 = vadd.f32 %v3685, %v3743
      %3745 = vmatmul.bf16.gmra.mxu0 %v1862
      %v3746 = vpop.f32.mrf.mxu0
      %v3747 = vadd.f32 %v3688, %v3746
      %v3748 = vpop.f32.mrf.mxu0
      %v3749 = vadd.f32 %v3690, %v3748
      %3750 = vmatmul.bf16.gmra.mxu0 %v1864
      %v3751 = vpop.f32.mrf.mxu0
      %v3752 = vadd.f32 %v3693, %v3751
      %v3753 = vpop.f32.mrf.mxu0
      %v3754 = vadd.f32 %v3695, %v3753
      %3755 = vmatmul.bf16.gmra.mxu0 %v1866
      %v3756 = vpop.f32.mrf.mxu0
      %v3757 = vadd.f32 %v3698, %v3756
      %v3758 = vpop.f32.mrf.mxu0
      %v3759 = vadd.f32 %v3700, %v3758
      %3760 = vmatmul.bf16.gmra.mxu0 %v1868
      %v3761 = vpop.f32.mrf.mxu0
      %v3762 = vadd.f32 %v3703, %v3761
      %v3763 = vpop.f32.mrf.mxu0
      %v3764 = vadd.f32 %v3705, %v3763
      %3765 = vmatmul.bf16.gmra.mxu0 %v1870
      %v3766 = vpop.f32.mrf.mxu0
      %v3767 = vadd.f32 %v3708, %v3766
      %v3768 = vpop.f32.mrf.mxu0
      %v3769 = vadd.f32 %v3710, %v3768
      %3770 = vdwg.mxu0
      %3771 = vmatpush.bf16.msra.mxu0 0
      %3772 = vmatpush.bf16.msra.mxu0 0
      %3773 = vmatpush.bf16.msra.mxu0 0
      %3774 = vmatpush.bf16.msra.mxu0 0
      %3775 = vmatpush.bf16.msra.mxu0 %v3562
      %3776 = vmatpush.bf16.msra.mxu0 %v3561
      %3777 = vmatpush.bf16.msra.mxu0 %v3560
      %3778 = vmatpush.bf16.msra.mxu0 %v3559
      %3779 = vmatmul.bf16.gmra.mxu0 %v2216
      %v3780 = vpop.f32.mrf.mxu0
      %v3781 = vadd.f32 %v3722, %v3780
      %v3782 = vpop.f32.mrf.mxu0
      %v3783 = vadd.f32 %v3724, %v3782
      %3784 = vmatmul.bf16.gmra.mxu0 %v2219
      %v3785 = vpop.f32.mrf.mxu0
      %v3786 = vadd.f32 %v3727, %v3785
      %v3787 = vpop.f32.mrf.mxu0
      %v3788 = vadd.f32 %v3729, %v3787
      %3789 = vmatmul.bf16.gmra.mxu0 %v2222
      %v3790 = vpop.f32.mrf.mxu0
      %v3791 = vadd.f32 %v3732, %v3790
      %v3792 = vpop.f32.mrf.mxu0
      %v3793 = vadd.f32 %v3734, %v3792
      %3794 = vmatmul.bf16.gmra.mxu0 %v2225
      %v3795 = vpop.f32.mrf.mxu0
      %v3796 = vadd.f32 %v3737, %v3795
      %v3797 = vpop.f32.mrf.mxu0
      %v3798 = vadd.f32 %v3739, %v3797
      %3799 = vmatmul.bf16.gmra.mxu0 %v2228
      %v3800 = vpop.f32.mrf.mxu0
      %v3801 = vadd.f32 %v3742, %v3800
      %v3802 = vpop.f32.mrf.mxu0
      %v3803 = vadd.f32 %v3744, %v3802
      %3804 = vmatmul.bf16.gmra.mxu0 %v2231
      %v3805 = vpop.f32.mrf.mxu0
      %v3806 = vadd.f32 %v3747, %v3805
      %v3807 = vpop.f32.mrf.mxu0
      %v3808 = vadd.f32 %v3749, %v3807
      %3809 = vmatmul.bf16.gmra.mxu0 %v2234
      %v3810 = vpop.f32.mrf.mxu0
      %v3811 = vadd.f32 %v3752, %v3810
      %v3812 = vpop.f32.mrf.mxu0
      %v3813 = vadd.f32 %v3754, %v3812
      %3814 = vmatmul.bf16.gmra.mxu0 %v2237
      %v3815 = vpop.f32.mrf.mxu0
      %v3816 = vadd.f32 %v3757, %v3815
      %v3817 = vpop.f32.mrf.mxu0
      %v3818 = vadd.f32 %v3759, %v3817
      %3819 = vmatmul.bf16.gmra.mxu0 %v3108
      %v3820 = vpop.f32.mrf.mxu0
      %v3821 = vadd.f32 %v3762, %v3820
      %v3822 = vpop.f32.mrf.mxu0
      %v3823 = vadd.f32 %v3764, %v3822
      %3824 = vmatmul.bf16.gmra.mxu0 %v3592
      %v3825 = vpop.f32.mrf.mxu0
      %v3826 = vadd.f32 %v3767, %v3825
      %v3827 = vpop.f32.mrf.mxu0
      %v3828 = vadd.f32 %v3769, %v3827
      %3829 = vdwg.mxu0
      %v3830 = vadd.f32 %v3346, %v3781
      %v3831 = vadd.f32 %v3347, %v3783
      %v3832 = vadd.f32 %v3348, %v3786
      %v3833 = vadd.f32 %v3349, %v3788
      %v3834 = vadd.f32 %v3350, %v3791
      %v3835 = vadd.f32 %v3351, %v3793
      %v3836 = vadd.f32 %v3352, %v3796
      %v3837 = vadd.f32 %v3353, %v3798
      %v3838 = vadd.f32 %v3354, %v3801
      %v3839 = vadd.f32 %v3355, %v3803
      %v3840 = vadd.f32 %v3356, %v3806
      %v3841 = vadd.f32 %v3357, %v3808
      %v3842 = vadd.f32 %v3358, %v3811
      %v3843 = vadd.f32 %v3359, %v3813
      %v3844 = vadd.f32 %v3360, %v3816
      %v3845 = vadd.f32 %v3361, %v3818
      %v3846 = vadd.f32 %v3362, %v3821
      %v3847 = vadd.f32 %v3363, %v3823
      %v3848 = vadd.f32 %v3364, %v3826
      %v3849 = vadd.f32 %v3365, %v3828
      %s3850 = scalar_lea.vmem %s3, 896
      %v3851 = vld [vmem:[%s3850] sm:$0xf]
      %v3852 = vld [vmem:[%s3850 + $0x4] sm:$0xf]
      %v3853 = vld [vmem:[%s3850 + $0x8] sm:$0xf]
      %v3854 = vld [vmem:[%s3850 + $0xc] sm:$0xf]
      %v3855 = vld [vmem:[%s3850 + $0x10] sm:$0xf]
      %v3856 = vld [vmem:[%s3850 + $0x14] sm:$0xf]
      %v3857 = vld [vmem:[%s3850 + $0x18] sm:$0xf]
      %v3858 = vld [vmem:[%s3850 + $0x1c] sm:$0xf]
      %v3859 = vld [vmem:[%s3850 + $0x20] sm:$0xf]
      %v3860 = vld [vmem:[%s3850 + $0x24] sm:$0xf]
      %v3861 = vld [vmem:[%s3850 + $0x28] sm:$0xf]
      %v3862 = vld [vmem:[%s3850 + $0x2c] sm:$0xf]
      %v3863 = vld [vmem:[%s3850 + $0x30] sm:$0xf]
      %v3864 = vld [vmem:[%s3850 + $0x34] sm:$0xf]
      %v3865 = vld [vmem:[%s3850 + $0x38] sm:$0xf]
      %v3866 = vld [vmem:[%s3850 + $0x3c] sm:$0xf]
      %v3867 = vld [vmem:[%s3850 + $0x40] sm:$0xf]
      %v3868 = vld [vmem:[%s3850 + $0x44] sm:$0xf]
      %v3869 = vld [vmem:[%s3850 + $0x48] sm:$0xf]
      %v3870 = vld [vmem:[%s3850 + $0x4c] sm:$0xf]
      %v3871 = vld [vmem:[%s3850 + $0x50] sm:$0xf]
      %v3872 = vld [vmem:[%s3850 + $0x54] sm:$0xf]
      %v3873 = vld [vmem:[%s3850 + $0x58] sm:$0xf]
      %v3874 = vld [vmem:[%s3850 + $0x5c] sm:$0xf]
      %v3875 = vld [vmem:[%s3850 + $0x60] sm:$0xf]
      %v3876 = vld [vmem:[%s3850 + $0x64] sm:$0xf]
      %v3877 = vld [vmem:[%s3850 + $0x68] sm:$0xf]
      %v3878 = vld [vmem:[%s3850 + $0x6c] sm:$0xf]
      %v3879 = vld [vmem:[%s3850 + $0x70] sm:$0xf]
      %v3880 = vld [vmem:[%s3850 + $0x74] sm:$0xf]
      %v3881 = vld [vmem:[%s3850 + $0x78] sm:$0xf]
      %v3882 = vld [vmem:[%s3850 + $0x7c] sm:$0xf]
      %v3883 = vld [vmem:[%s3850 + $0x80] sm:$0xf]
      %v3884 = vld [vmem:[%s3850 + $0x84] sm:$0xf]
      %v3885 = vld [vmem:[%s3850 + $0x88] sm:$0xf]
      %v3886 = vld [vmem:[%s3850 + $0x8c] sm:$0xf]
      %v3887 = vld [vmem:[%s3850 + $0x90] sm:$0xf]
      %v3888 = vld [vmem:[%s3850 + $0x94] sm:$0xf]
      %v3889 = vld [vmem:[%s3850 + $0x98] sm:$0xf]
      %v3890 = vld [vmem:[%s3850 + $0x9c] sm:$0xf]
      %v3891 = vld [vmem:[%s3850 + $0xa0] sm:$0xf]
      %v3892 = vld [vmem:[%s3850 + $0xa4] sm:$0xf]
      %v3893 = vld [vmem:[%s3850 + $0xa8] sm:$0xf]
      %v3894 = vld [vmem:[%s3850 + $0xac] sm:$0xf]
      %v3895 = vld [vmem:[%s3850 + $0xb0] sm:$0xf]
      %v3896 = vld [vmem:[%s3850 + $0xb4] sm:$0xf]
      %v3897 = vld [vmem:[%s3850 + $0xb8] sm:$0xf]
      %v3898 = vld [vmem:[%s3850 + $0xbc] sm:$0xf]
      %v3899 = vld [vmem:[%s3850 + $0xc0] sm:$0xf]
      %v3900 = vld [vmem:[%s3850 + $0xc4] sm:$0xf]
      %v3901 = vld [vmem:[%s3850 + $0xc8] sm:$0xf]
      %v3902 = vld [vmem:[%s3850 + $0xcc] sm:$0xf]
      %v3903 = vld [vmem:[%s3850 + $0xd0] sm:$0xf]
      %v3904 = vld [vmem:[%s3850 + $0xd4] sm:$0xf]
      %v3905 = vld [vmem:[%s3850 + $0xd8] sm:$0xf]
      %v3906 = vld [vmem:[%s3850 + $0xdc] sm:$0xf]
      %v3963 = vunpack.c.l.b16 %v3851
      %v3964 = vunpack.c.l.b16 %v3852
      %v3965 = vunpack.c.l.b16 %v3853
      %v3966 = vunpack.c.l.b16 %v3854
      %v3967 = vunpack.c.l.b16 %v3855
      %v3968 = vunpack.c.l.b16 %v3856
      %v3969 = vunpack.c.l.b16 %v3857
      %v3970 = vunpack.c.l.b16 %v3858
      %v3971 = vunpack.c.l.b16 %v3859
      %v3972 = vunpack.c.l.b16 %v3860
      %v3973 = vunpack.c.l.b16 %v3861
      %v3974 = vunpack.c.l.b16 %v3862
      %v3975 = vunpack.c.l.b16 %v3863
      %v3976 = vunpack.c.l.b16 %v3864
      %v3977 = vunpack.c.l.b16 %v3865
      %v3978 = vunpack.c.l.b16 %v3866
      %v3979 = vunpack.c.l.b16 %v3867
      %v3980 = vunpack.c.l.b16 %v3868
      %v3981 = vunpack.c.l.b16 %v3869
      %v3982 = vunpack.c.l.b16 %v3870
      %v3983 = vunpack.c.l.b16 %v3871
      %v3984 = vunpack.c.l.b16 %v3872
      %v3985 = vunpack.c.l.b16 %v3873
      %v3986 = vunpack.c.l.b16 %v3874
      %v3987 = vunpack.c.l.b16 %v3875
      %v3988 = vunpack.c.l.b16 %v3876
      %v3989 = vunpack.c.l.b16 %v3877
      %v3990 = vunpack.c.l.b16 %v3878
      %v3991 = vunpack.c.l.b16 %v3879
      %v3992 = vunpack.c.l.b16 %v3880
      %v3993 = vunpack.c.l.b16 %v3881
      %v3994 = vunpack.c.l.b16 %v3882
      %v3995 = vunpack.c.l.b16 %v3883
      %v3996 = vunpack.c.l.b16 %v3884
      %v3997 = vunpack.c.l.b16 %v3885
      %v3998 = vunpack.c.l.b16 %v3886
      %v3999 = vunpack.c.l.b16 %v3887
      %v4000 = vunpack.c.l.b16 %v3888
      %v4001 = vunpack.c.l.b16 %v3889
      %v4002 = vunpack.c.l.b16 %v3890
      %v4003 = vunpack.c.l.b16 %v3891
      %v4004 = vunpack.c.l.b16 %v3892
      %v4005 = vunpack.c.l.b16 %v3893
      %v4006 = vunpack.c.l.b16 %v3894
      %v4007 = vunpack.c.l.b16 %v3895
      %v4008 = vunpack.c.l.b16 %v3896
      %v4009 = vunpack.c.l.b16 %v3897
      %v4010 = vunpack.c.l.b16 %v3898
      %v4011 = vunpack.c.l.b16 %v3899
      %v4012 = vunpack.c.l.b16 %v3900
      %v4013 = vunpack.c.l.b16 %v3901
      %v4014 = vunpack.c.l.b16 %v3902
      %v4015 = vunpack.c.l.b16 %v3903
      %v4016 = vunpack.c.l.b16 %v3904
      %v4017 = vunpack.c.l.b16 %v3905
      %v4018 = vunpack.c.l.b16 %v3906
      %v4019 = vpack.c.b16 %v3964, %v3963
      %v4020 = vpack.c.b16 %v3966, %v3965
      %v4021 = vpack.c.b16 %v3968, %v3967
      %v4022 = vpack.c.b16 %v3970, %v3969
      %v4023 = vpack.c.b16 %v3972, %v3971
      %v4024 = vpack.c.b16 %v3974, %v3973
      %v4025 = vpack.c.b16 %v3976, %v3975
      %v4026 = vpack.c.b16 %v3978, %v3977
      %v4027 = vpack.c.b16 %v3980, %v3979
      %v4028 = vpack.c.b16 %v3982, %v3981
      %v4029 = vpack.c.b16 %v3984, %v3983
      %v4030 = vpack.c.b16 %v3986, %v3985
      %v4031 = vpack.c.b16 %v3988, %v3987
      %v4032 = vpack.c.b16 %v3990, %v3989
      %v4033 = vpack.c.b16 %v3992, %v3991
      %v4034 = vpack.c.b16 %v3994, %v3993
      %v4035 = vpack.c.b16 %v3996, %v3995
      %v4036 = vpack.c.b16 %v3998, %v3997
      %v4037 = vpack.c.b16 %v4000, %v3999
      %v4038 = vpack.c.b16 %v4002, %v4001
      %v4039 = vpack.c.b16 %v4004, %v4003
      %v4040 = vpack.c.b16 %v4006, %v4005
      %v4041 = vpack.c.b16 %v4008, %v4007
      %v4042 = vpack.c.b16 %v4010, %v4009
      %v4043 = vpack.c.b16 %v4012, %v4011
      %v4044 = vpack.c.b16 %v4014, %v4013
      %v4045 = vpack.c.b16 %v4016, %v4015
      %v4046 = vpack.c.b16 %v4018, %v4017
      %v4076 = vsel %vm859, %v1923, 0
      %4078 = vmatpush.bf16.msra.mxu0 %v4026
      %4079 = vmatpush.bf16.msra.mxu0 %v4025
      %4080 = vmatpush.bf16.msra.mxu0 %v4024
      %4081 = vmatpush.bf16.msra.mxu0 %v4023
      %4082 = vmatpush.bf16.msra.mxu0 %v4022
      %4083 = vmatpush.bf16.msra.mxu0 %v4021
      %4084 = vmatpush.bf16.msra.mxu0 %v4020
      %4085 = vmatpush.bf16.msra.mxu0 %v4019
      %4086 = vmatmul.bf16.gmra.mxu0 %v1735
      %v4087 = vpop.f32.mrf.mxu0
      %v4088 = vadd.f32 0.0, %v4087
      %v4089 = vpop.f32.mrf.mxu0
      %v4090 = vadd.f32 0.0, %v4089
      %4091 = vmatmul.bf16.gmra.mxu0 %v1738
      %v4092 = vpop.f32.mrf.mxu0
      %v4093 = vadd.f32 0.0, %v4092
      %v4094 = vpop.f32.mrf.mxu0
      %v4095 = vadd.f32 0.0, %v4094
      %4096 = vmatmul.bf16.gmra.mxu0 %v1741
      %v4097 = vpop.f32.mrf.mxu0
      %v4098 = vadd.f32 0.0, %v4097
      %v4099 = vpop.f32.mrf.mxu0
      %v4100 = vadd.f32 0.0, %v4099
      %4101 = vmatmul.bf16.gmra.mxu0 %v1744
      %v4102 = vpop.f32.mrf.mxu0
      %v4103 = vadd.f32 0.0, %v4102
      %v4104 = vpop.f32.mrf.mxu0
      %v4105 = vadd.f32 0.0, %v4104
      %4106 = vmatmul.bf16.gmra.mxu0 %v1747
      %v4107 = vpop.f32.mrf.mxu0
      %v4108 = vadd.f32 0.0, %v4107
      %v4109 = vpop.f32.mrf.mxu0
      %v4110 = vadd.f32 0.0, %v4109
      %4111 = vmatmul.bf16.gmra.mxu0 %v1750
      %v4112 = vpop.f32.mrf.mxu0
      %v4113 = vadd.f32 0.0, %v4112
      %v4114 = vpop.f32.mrf.mxu0
      %v4115 = vadd.f32 0.0, %v4114
      %4116 = vmatmul.bf16.gmra.mxu0 %v1753
      %v4117 = vpop.f32.mrf.mxu0
      %v4118 = vadd.f32 0.0, %v4117
      %v4119 = vpop.f32.mrf.mxu0
      %v4120 = vadd.f32 0.0, %v4119
      %4121 = vmatmul.bf16.gmra.mxu0 %v1756
      %v4122 = vpop.f32.mrf.mxu0
      %v4123 = vadd.f32 0.0, %v4122
      %v4124 = vpop.f32.mrf.mxu0
      %v4125 = vadd.f32 0.0, %v4124
      %4126 = vmatmul.bf16.gmra.mxu0 %v1759
      %v4127 = vpop.f32.mrf.mxu0
      %v4128 = vadd.f32 0.0, %v4127
      %v4129 = vpop.f32.mrf.mxu0
      %v4130 = vadd.f32 0.0, %v4129
      %4131 = vmatmul.bf16.gmra.mxu0 %v1762
      %v4132 = vpop.f32.mrf.mxu0
      %v4133 = vadd.f32 0.0, %v4132
      %v4134 = vpop.f32.mrf.mxu0
      %v4135 = vadd.f32 0.0, %v4134
      %4136 = vdwg.mxu0
      %4137 = vmatpush.bf16.msra.mxu0 %v4034
      %4138 = vmatpush.bf16.msra.mxu0 %v4033
      %4139 = vmatpush.bf16.msra.mxu0 %v4032
      %4140 = vmatpush.bf16.msra.mxu0 %v4031
      %4141 = vmatpush.bf16.msra.mxu0 %v4030
      %4142 = vmatpush.bf16.msra.mxu0 %v4029
      %4143 = vmatpush.bf16.msra.mxu0 %v4028
      %4144 = vmatpush.bf16.msra.mxu0 %v4027
      %4145 = vmatmul.bf16.gmra.mxu0 %v1804
      %v4146 = vpop.f32.mrf.mxu0
      %v4147 = vadd.f32 %v4088, %v4146
      %v4148 = vpop.f32.mrf.mxu0
      %v4149 = vadd.f32 %v4090, %v4148
      %4150 = vmatmul.bf16.gmra.mxu0 %v1806
      %v4151 = vpop.f32.mrf.mxu0
      %v4152 = vadd.f32 %v4093, %v4151
      %v4153 = vpop.f32.mrf.mxu0
      %v4154 = vadd.f32 %v4095, %v4153
      %4155 = vmatmul.bf16.gmra.mxu0 %v1808
      %v4156 = vpop.f32.mrf.mxu0
      %v4157 = vadd.f32 %v4098, %v4156
      %v4158 = vpop.f32.mrf.mxu0
      %v4159 = vadd.f32 %v4100, %v4158
      %4160 = vmatmul.bf16.gmra.mxu0 %v1810
      %v4161 = vpop.f32.mrf.mxu0
      %v4162 = vadd.f32 %v4103, %v4161
      %v4163 = vpop.f32.mrf.mxu0
      %v4164 = vadd.f32 %v4105, %v4163
      %4165 = vmatmul.bf16.gmra.mxu0 %v1812
      %v4166 = vpop.f32.mrf.mxu0
      %v4167 = vadd.f32 %v4108, %v4166
      %v4168 = vpop.f32.mrf.mxu0
      %v4169 = vadd.f32 %v4110, %v4168
      %4170 = vmatmul.bf16.gmra.mxu0 %v1814
      %v4171 = vpop.f32.mrf.mxu0
      %v4172 = vadd.f32 %v4113, %v4171
      %v4173 = vpop.f32.mrf.mxu0
      %v4174 = vadd.f32 %v4115, %v4173
      %4175 = vmatmul.bf16.gmra.mxu0 %v1816
      %v4176 = vpop.f32.mrf.mxu0
      %v4177 = vadd.f32 %v4118, %v4176
      %v4178 = vpop.f32.mrf.mxu0
      %v4179 = vadd.f32 %v4120, %v4178
      %4180 = vmatmul.bf16.gmra.mxu0 %v1818
      %v4181 = vpop.f32.mrf.mxu0
      %v4182 = vadd.f32 %v4123, %v4181
      %v4183 = vpop.f32.mrf.mxu0
      %v4184 = vadd.f32 %v4125, %v4183
      %4185 = vmatmul.bf16.gmra.mxu0 %v1820
      %v4186 = vpop.f32.mrf.mxu0
      %v4187 = vadd.f32 %v4128, %v4186
      %v4188 = vpop.f32.mrf.mxu0
      %v4189 = vadd.f32 %v4130, %v4188
      %4190 = vmatmul.bf16.gmra.mxu0 %v1822
      %v4191 = vpop.f32.mrf.mxu0
      %v4192 = vadd.f32 %v4133, %v4191
      %v4193 = vpop.f32.mrf.mxu0
      %v4194 = vadd.f32 %v4135, %v4193
      %4195 = vdwg.mxu0
      %4196 = vmatpush.bf16.msra.mxu0 %v4042
      %4197 = vmatpush.bf16.msra.mxu0 %v4041
      %4198 = vmatpush.bf16.msra.mxu0 %v4040
      %4199 = vmatpush.bf16.msra.mxu0 %v4039
      %4200 = vmatpush.bf16.msra.mxu0 %v4038
      %4201 = vmatpush.bf16.msra.mxu0 %v4037
      %4202 = vmatpush.bf16.msra.mxu0 %v4036
      %4203 = vmatpush.bf16.msra.mxu0 %v4035
      %4204 = vmatmul.bf16.gmra.mxu0 %v1854
      %v4205 = vpop.f32.mrf.mxu0
      %v4206 = vadd.f32 %v4147, %v4205
      %v4207 = vpop.f32.mrf.mxu0
      %v4208 = vadd.f32 %v4149, %v4207
      %4209 = vmatmul.bf16.gmra.mxu0 %v1856
      %v4210 = vpop.f32.mrf.mxu0
      %v4211 = vadd.f32 %v4152, %v4210
      %v4212 = vpop.f32.mrf.mxu0
      %v4213 = vadd.f32 %v4154, %v4212
      %4214 = vmatmul.bf16.gmra.mxu0 %v1858
      %v4215 = vpop.f32.mrf.mxu0
      %v4216 = vadd.f32 %v4157, %v4215
      %v4217 = vpop.f32.mrf.mxu0
      %v4218 = vadd.f32 %v4159, %v4217
      %4219 = vmatmul.bf16.gmra.mxu0 %v1860
      %v4220 = vpop.f32.mrf.mxu0
      %v4221 = vadd.f32 %v4162, %v4220
      %v4222 = vpop.f32.mrf.mxu0
      %v4223 = vadd.f32 %v4164, %v4222
      %4224 = vmatmul.bf16.gmra.mxu0 %v1862
      %v4225 = vpop.f32.mrf.mxu0
      %v4226 = vadd.f32 %v4167, %v4225
      %v4227 = vpop.f32.mrf.mxu0
      %v4228 = vadd.f32 %v4169, %v4227
      %4229 = vmatmul.bf16.gmra.mxu0 %v1864
      %v4230 = vpop.f32.mrf.mxu0
      %v4231 = vadd.f32 %v4172, %v4230
      %v4232 = vpop.f32.mrf.mxu0
      %v4233 = vadd.f32 %v4174, %v4232
      %4234 = vmatmul.bf16.gmra.mxu0 %v1866
      %v4235 = vpop.f32.mrf.mxu0
      %v4236 = vadd.f32 %v4177, %v4235
      %v4237 = vpop.f32.mrf.mxu0
      %v4238 = vadd.f32 %v4179, %v4237
      %4239 = vmatmul.bf16.gmra.mxu0 %v1868
      %v4240 = vpop.f32.mrf.mxu0
      %v4241 = vadd.f32 %v4182, %v4240
      %v4242 = vpop.f32.mrf.mxu0
      %v4243 = vadd.f32 %v4184, %v4242
      %4244 = vmatmul.bf16.gmra.mxu0 %v1870
      %v4245 = vpop.f32.mrf.mxu0
      %v4246 = vadd.f32 %v4187, %v4245
      %v4247 = vpop.f32.mrf.mxu0
      %v4248 = vadd.f32 %v4189, %v4247
      %4249 = vmatmul.bf16.gmra.mxu0 %v1872
      %v4250 = vpop.f32.mrf.mxu0
      %v4251 = vadd.f32 %v4192, %v4250
      %v4252 = vpop.f32.mrf.mxu0
      %v4253 = vadd.f32 %v4194, %v4252
      %4254 = vdwg.mxu0
      %4255 = vmatpush.bf16.msra.mxu0 0
      %4256 = vmatpush.bf16.msra.mxu0 0
      %4257 = vmatpush.bf16.msra.mxu0 0
      %4258 = vmatpush.bf16.msra.mxu0 0
      %4259 = vmatpush.bf16.msra.mxu0 %v4046
      %4260 = vmatpush.bf16.msra.mxu0 %v4045
      %4261 = vmatpush.bf16.msra.mxu0 %v4044
      %4262 = vmatpush.bf16.msra.mxu0 %v4043
      %4263 = vmatmul.bf16.gmra.mxu0 %v2219
      %v4264 = vpop.f32.mrf.mxu0
      %v4265 = vadd.f32 %v4206, %v4264
      %v4266 = vpop.f32.mrf.mxu0
      %v4267 = vadd.f32 %v4208, %v4266
      %4268 = vmatmul.bf16.gmra.mxu0 %v2222
      %v4269 = vpop.f32.mrf.mxu0
      %v4270 = vadd.f32 %v4211, %v4269
      %v4271 = vpop.f32.mrf.mxu0
      %v4272 = vadd.f32 %v4213, %v4271
      %4273 = vmatmul.bf16.gmra.mxu0 %v2225
      %v4274 = vpop.f32.mrf.mxu0
      %v4275 = vadd.f32 %v4216, %v4274
      %v4276 = vpop.f32.mrf.mxu0
      %v4277 = vadd.f32 %v4218, %v4276
      %4278 = vmatmul.bf16.gmra.mxu0 %v2228
      %v4279 = vpop.f32.mrf.mxu0
      %v4280 = vadd.f32 %v4221, %v4279
      %v4281 = vpop.f32.mrf.mxu0
      %v4282 = vadd.f32 %v4223, %v4281
      %4283 = vmatmul.bf16.gmra.mxu0 %v2231
      %v4284 = vpop.f32.mrf.mxu0
      %v4285 = vadd.f32 %v4226, %v4284
      %v4286 = vpop.f32.mrf.mxu0
      %v4287 = vadd.f32 %v4228, %v4286
      %4288 = vmatmul.bf16.gmra.mxu0 %v2234
      %v4289 = vpop.f32.mrf.mxu0
      %v4290 = vadd.f32 %v4231, %v4289
      %v4291 = vpop.f32.mrf.mxu0
      %v4292 = vadd.f32 %v4233, %v4291
      %4293 = vmatmul.bf16.gmra.mxu0 %v2237
      %v4294 = vpop.f32.mrf.mxu0
      %v4295 = vadd.f32 %v4236, %v4294
      %v4296 = vpop.f32.mrf.mxu0
      %v4297 = vadd.f32 %v4238, %v4296
      %4298 = vmatmul.bf16.gmra.mxu0 %v3108
      %v4299 = vpop.f32.mrf.mxu0
      %v4300 = vadd.f32 %v4241, %v4299
      %v4301 = vpop.f32.mrf.mxu0
      %v4302 = vadd.f32 %v4243, %v4301
      %4303 = vmatmul.bf16.gmra.mxu0 %v3592
      %v4304 = vpop.f32.mrf.mxu0
      %v4305 = vadd.f32 %v4246, %v4304
      %v4306 = vpop.f32.mrf.mxu0
      %v4307 = vadd.f32 %v4248, %v4306
      %4308 = vmatmul.bf16.gmra.mxu0 %v4076
      %v4309 = vpop.f32.mrf.mxu0
      %v4310 = vadd.f32 %v4251, %v4309
      %v4311 = vpop.f32.mrf.mxu0
      %v4312 = vadd.f32 %v4253, %v4311
      %4313 = vdwg.mxu0
      %v4314 = vadd.f32 %v3830, %v4265
      %v4315 = vadd.f32 %v3831, %v4267
      %v4316 = vadd.f32 %v3832, %v4270
      %v4317 = vadd.f32 %v3833, %v4272
      %v4318 = vadd.f32 %v3834, %v4275
      %v4319 = vadd.f32 %v3835, %v4277
      %v4320 = vadd.f32 %v3836, %v4280
      %v4321 = vadd.f32 %v3837, %v4282
      %v4322 = vadd.f32 %v3838, %v4285
      %v4323 = vadd.f32 %v3839, %v4287
      %v4324 = vadd.f32 %v3840, %v4290
      %v4325 = vadd.f32 %v3841, %v4292
      %v4326 = vadd.f32 %v3842, %v4295
      %v4327 = vadd.f32 %v3843, %v4297
      %v4328 = vadd.f32 %v3844, %v4300
      %v4329 = vadd.f32 %v3845, %v4302
      %v4330 = vadd.f32 %v3846, %v4305
      %v4331 = vadd.f32 %v3847, %v4307
      %v4332 = vadd.f32 %v3848, %v4310
      %v4333 = vadd.f32 %v3849, %v4312
      %s4334 = scalar_lea.vmem %s3, 1120
      %v4335 = vld [vmem:[%s4334] sm:$0xf]
      %v4336 = vld [vmem:[%s4334 + $0x4] sm:$0xf]
      %v4337 = vld [vmem:[%s4334 + $0x8] sm:$0xf]
      %v4338 = vld [vmem:[%s4334 + $0xc] sm:$0xf]
      %v4339 = vld [vmem:[%s4334 + $0x10] sm:$0xf]
      %v4340 = vld [vmem:[%s4334 + $0x14] sm:$0xf]
      %v4341 = vld [vmem:[%s4334 + $0x18] sm:$0xf]
      %v4342 = vld [vmem:[%s4334 + $0x1c] sm:$0xf]
      %v4343 = vld [vmem:[%s4334 + $0x20] sm:$0xf]
      %v4344 = vld [vmem:[%s4334 + $0x24] sm:$0xf]
      %v4345 = vld [vmem:[%s4334 + $0x28] sm:$0xf]
      %v4346 = vld [vmem:[%s4334 + $0x2c] sm:$0xf]
      %v4347 = vld [vmem:[%s4334 + $0x30] sm:$0xf]
      %v4348 = vld [vmem:[%s4334 + $0x34] sm:$0xf]
      %v4349 = vld [vmem:[%s4334 + $0x38] sm:$0xf]
      %v4350 = vld [vmem:[%s4334 + $0x3c] sm:$0xf]
      %v4351 = vld [vmem:[%s4334 + $0x40] sm:$0xf]
      %v4352 = vld [vmem:[%s4334 + $0x44] sm:$0xf]
      %v4353 = vld [vmem:[%s4334 + $0x48] sm:$0xf]
      %v4354 = vld [vmem:[%s4334 + $0x4c] sm:$0xf]
      %v4355 = vld [vmem:[%s4334 + $0x50] sm:$0xf]
      %v4356 = vld [vmem:[%s4334 + $0x54] sm:$0xf]
      %v4357 = vld [vmem:[%s4334 + $0x58] sm:$0xf]
      %v4358 = vld [vmem:[%s4334 + $0x5c] sm:$0xf]
      %v4359 = vld [vmem:[%s4334 + $0x60] sm:$0xf]
      %v4360 = vld [vmem:[%s4334 + $0x64] sm:$0xf]
      %v4361 = vld [vmem:[%s4334 + $0x68] sm:$0xf]
      %v4362 = vld [vmem:[%s4334 + $0x6c] sm:$0xf]
      %v4363 = vld [vmem:[%s4334 + $0x70] sm:$0xf]
      %v4364 = vld [vmem:[%s4334 + $0x74] sm:$0xf]
      %v4365 = vld [vmem:[%s4334 + $0x78] sm:$0xf]
      %v4366 = vld [vmem:[%s4334 + $0x7c] sm:$0xf]
      %v4367 = vld [vmem:[%s4334 + $0x80] sm:$0xf]
      %v4368 = vld [vmem:[%s4334 + $0x84] sm:$0xf]
      %v4369 = vld [vmem:[%s4334 + $0x88] sm:$0xf]
      %v4370 = vld [vmem:[%s4334 + $0x8c] sm:$0xf]
      %v4371 = vld [vmem:[%s4334 + $0x90] sm:$0xf]
      %v4372 = vld [vmem:[%s4334 + $0x94] sm:$0xf]
      %v4373 = vld [vmem:[%s4334 + $0x98] sm:$0xf]
      %v4374 = vld [vmem:[%s4334 + $0x9c] sm:$0xf]
      %v4375 = vld [vmem:[%s4334 + $0xa0] sm:$0xf]
      %v4376 = vld [vmem:[%s4334 + $0xa4] sm:$0xf]
      %v4377 = vld [vmem:[%s4334 + $0xa8] sm:$0xf]
      %v4378 = vld [vmem:[%s4334 + $0xac] sm:$0xf]
      %v4379 = vld [vmem:[%s4334 + $0xb0] sm:$0xf]
      %v4380 = vld [vmem:[%s4334 + $0xb4] sm:$0xf]
      %v4381 = vld [vmem:[%s4334 + $0xb8] sm:$0xf]
      %v4382 = vld [vmem:[%s4334 + $0xbc] sm:$0xf]
      %v4383 = vld [vmem:[%s4334 + $0xc0] sm:$0xf]
      %v4384 = vld [vmem:[%s4334 + $0xc4] sm:$0xf]
      %v4385 = vld [vmem:[%s4334 + $0xc8] sm:$0xf]
      %v4386 = vld [vmem:[%s4334 + $0xcc] sm:$0xf]
      %v4387 = vld [vmem:[%s4334 + $0xd0] sm:$0xf]
      %v4388 = vld [vmem:[%s4334 + $0xd4] sm:$0xf]
      %v4389 = vld [vmem:[%s4334 + $0xd8] sm:$0xf]
      %v4390 = vld [vmem:[%s4334 + $0xdc] sm:$0xf]
      %v4447 = vunpack.c.l.b16 %v4335
      %v4448 = vunpack.c.l.b16 %v4336
      %v4449 = vunpack.c.l.b16 %v4337
      %v4450 = vunpack.c.l.b16 %v4338
      %v4451 = vunpack.c.l.b16 %v4339
      %v4452 = vunpack.c.l.b16 %v4340
      %v4453 = vunpack.c.l.b16 %v4341
      %v4454 = vunpack.c.l.b16 %v4342
      %v4455 = vunpack.c.l.b16 %v4343
      %v4456 = vunpack.c.l.b16 %v4344
      %v4457 = vunpack.c.l.b16 %v4345
      %v4458 = vunpack.c.l.b16 %v4346
      %v4459 = vunpack.c.l.b16 %v4347
      %v4460 = vunpack.c.l.b16 %v4348
      %v4461 = vunpack.c.l.b16 %v4349
      %v4462 = vunpack.c.l.b16 %v4350
      %v4463 = vunpack.c.l.b16 %v4351
      %v4464 = vunpack.c.l.b16 %v4352
      %v4465 = vunpack.c.l.b16 %v4353
      %v4466 = vunpack.c.l.b16 %v4354
      %v4467 = vunpack.c.l.b16 %v4355
      %v4468 = vunpack.c.l.b16 %v4356
      %v4469 = vunpack.c.l.b16 %v4357
      %v4470 = vunpack.c.l.b16 %v4358
      %v4471 = vunpack.c.l.b16 %v4359
      %v4472 = vunpack.c.l.b16 %v4360
      %v4473 = vunpack.c.l.b16 %v4361
      %v4474 = vunpack.c.l.b16 %v4362
      %v4475 = vunpack.c.l.b16 %v4363
      %v4476 = vunpack.c.l.b16 %v4364
      %v4477 = vunpack.c.l.b16 %v4365
      %v4478 = vunpack.c.l.b16 %v4366
      %v4479 = vunpack.c.l.b16 %v4367
      %v4480 = vunpack.c.l.b16 %v4368
      %v4481 = vunpack.c.l.b16 %v4369
      %v4482 = vunpack.c.l.b16 %v4370
      %v4483 = vunpack.c.l.b16 %v4371
      %v4484 = vunpack.c.l.b16 %v4372
      %v4485 = vunpack.c.l.b16 %v4373
      %v4486 = vunpack.c.l.b16 %v4374
      %v4487 = vunpack.c.l.b16 %v4375
      %v4488 = vunpack.c.l.b16 %v4376
      %v4489 = vunpack.c.l.b16 %v4377
      %v4490 = vunpack.c.l.b16 %v4378
      %v4491 = vunpack.c.l.b16 %v4379
      %v4492 = vunpack.c.l.b16 %v4380
      %v4493 = vunpack.c.l.b16 %v4381
      %v4494 = vunpack.c.l.b16 %v4382
      %v4495 = vunpack.c.l.b16 %v4383
      %v4496 = vunpack.c.l.b16 %v4384
      %v4497 = vunpack.c.l.b16 %v4385
      %v4498 = vunpack.c.l.b16 %v4386
      %v4499 = vunpack.c.l.b16 %v4387
      %v4500 = vunpack.c.l.b16 %v4388
      %v4501 = vunpack.c.l.b16 %v4389
      %v4502 = vunpack.c.l.b16 %v4390
      %v4503 = vpack.c.b16 %v4448, %v4447
      %v4504 = vpack.c.b16 %v4450, %v4449
      %v4505 = vpack.c.b16 %v4452, %v4451
      %v4506 = vpack.c.b16 %v4454, %v4453
      %v4507 = vpack.c.b16 %v4456, %v4455
      %v4508 = vpack.c.b16 %v4458, %v4457
      %v4509 = vpack.c.b16 %v4460, %v4459
      %v4510 = vpack.c.b16 %v4462, %v4461
      %v4511 = vpack.c.b16 %v4464, %v4463
      %v4512 = vpack.c.b16 %v4466, %v4465
      %v4513 = vpack.c.b16 %v4468, %v4467
      %v4514 = vpack.c.b16 %v4470, %v4469
      %v4515 = vpack.c.b16 %v4472, %v4471
      %v4516 = vpack.c.b16 %v4474, %v4473
      %v4517 = vpack.c.b16 %v4476, %v4475
      %v4518 = vpack.c.b16 %v4478, %v4477
      %v4519 = vpack.c.b16 %v4480, %v4479
      %v4520 = vpack.c.b16 %v4482, %v4481
      %v4521 = vpack.c.b16 %v4484, %v4483
      %v4522 = vpack.c.b16 %v4486, %v4485
      %v4523 = vpack.c.b16 %v4488, %v4487
      %v4524 = vpack.c.b16 %v4490, %v4489
      %v4525 = vpack.c.b16 %v4492, %v4491
      %v4526 = vpack.c.b16 %v4494, %v4493
      %v4527 = vpack.c.b16 %v4496, %v4495
      %v4528 = vpack.c.b16 %v4498, %v4497
      %v4529 = vpack.c.b16 %v4500, %v4499
      %v4530 = vpack.c.b16 %v4502, %v4501
      %v4560 = vsel %vm859, %v1925, 0
      %4562 = vmatpush.bf16.msra.mxu0 %v4510
      %4563 = vmatpush.bf16.msra.mxu0 %v4509
      %4564 = vmatpush.bf16.msra.mxu0 %v4508
      %4565 = vmatpush.bf16.msra.mxu0 %v4507
      %4566 = vmatpush.bf16.msra.mxu0 %v4506
      %4567 = vmatpush.bf16.msra.mxu0 %v4505
      %4568 = vmatpush.bf16.msra.mxu0 %v4504
      %4569 = vmatpush.bf16.msra.mxu0 %v4503
      %4570 = vmatmul.bf16.gmra.mxu0 %v1738
      %v4571 = vpop.f32.mrf.mxu0
      %v4572 = vadd.f32 0.0, %v4571
      %v4573 = vpop.f32.mrf.mxu0
      %v4574 = vadd.f32 0.0, %v4573
      %4575 = vmatmul.bf16.gmra.mxu0 %v1741
      %v4576 = vpop.f32.mrf.mxu0
      %v4577 = vadd.f32 0.0, %v4576
      %v4578 = vpop.f32.mrf.mxu0
      %v4579 = vadd.f32 0.0, %v4578
      %4580 = vmatmul.bf16.gmra.mxu0 %v1744
      %v4581 = vpop.f32.mrf.mxu0
      %v4582 = vadd.f32 0.0, %v4581
      %v4583 = vpop.f32.mrf.mxu0
      %v4584 = vadd.f32 0.0, %v4583
      %4585 = vmatmul.bf16.gmra.mxu0 %v1747
      %v4586 = vpop.f32.mrf.mxu0
      %v4587 = vadd.f32 0.0, %v4586
      %v4588 = vpop.f32.mrf.mxu0
      %v4589 = vadd.f32 0.0, %v4588
      %4590 = vmatmul.bf16.gmra.mxu0 %v1750
      %v4591 = vpop.f32.mrf.mxu0
      %v4592 = vadd.f32 0.0, %v4591
      %v4593 = vpop.f32.mrf.mxu0
      %v4594 = vadd.f32 0.0, %v4593
      %4595 = vmatmul.bf16.gmra.mxu0 %v1753
      %v4596 = vpop.f32.mrf.mxu0
      %v4597 = vadd.f32 0.0, %v4596
      %v4598 = vpop.f32.mrf.mxu0
      %v4599 = vadd.f32 0.0, %v4598
      %4600 = vmatmul.bf16.gmra.mxu0 %v1756
      %v4601 = vpop.f32.mrf.mxu0
      %v4602 = vadd.f32 0.0, %v4601
      %v4603 = vpop.f32.mrf.mxu0
      %v4604 = vadd.f32 0.0, %v4603
      %4605 = vmatmul.bf16.gmra.mxu0 %v1759
      %v4606 = vpop.f32.mrf.mxu0
      %v4607 = vadd.f32 0.0, %v4606
      %v4608 = vpop.f32.mrf.mxu0
      %v4609 = vadd.f32 0.0, %v4608
      %4610 = vmatmul.bf16.gmra.mxu0 %v1762
      %v4611 = vpop.f32.mrf.mxu0
      %v4612 = vadd.f32 0.0, %v4611
      %v4613 = vpop.f32.mrf.mxu0
      %v4614 = vadd.f32 0.0, %v4613
      %4615 = vmatmul.bf16.gmra.mxu0 %v1765
      %v4616 = vpop.f32.mrf.mxu0
      %v4617 = vadd.f32 0.0, %v4616
      %v4618 = vpop.f32.mrf.mxu0
      %v4619 = vadd.f32 0.0, %v4618
      %4620 = vdwg.mxu0
      %4621 = vmatpush.bf16.msra.mxu0 %v4518
      %4622 = vmatpush.bf16.msra.mxu0 %v4517
      %4623 = vmatpush.bf16.msra.mxu0 %v4516
      %4624 = vmatpush.bf16.msra.mxu0 %v4515
      %4625 = vmatpush.bf16.msra.mxu0 %v4514
      %4626 = vmatpush.bf16.msra.mxu0 %v4513
      %4627 = vmatpush.bf16.msra.mxu0 %v4512
      %4628 = vmatpush.bf16.msra.mxu0 %v4511
      %4629 = vmatmul.bf16.gmra.mxu0 %v1806
      %v4630 = vpop.f32.mrf.mxu0
      %v4631 = vadd.f32 %v4572, %v4630
      %v4632 = vpop.f32.mrf.mxu0
      %v4633 = vadd.f32 %v4574, %v4632
      %4634 = vmatmul.bf16.gmra.mxu0 %v1808
      %v4635 = vpop.f32.mrf.mxu0
      %v4636 = vadd.f32 %v4577, %v4635
      %v4637 = vpop.f32.mrf.mxu0
      %v4638 = vadd.f32 %v4579, %v4637
      %4639 = vmatmul.bf16.gmra.mxu0 %v1810
      %v4640 = vpop.f32.mrf.mxu0
      %v4641 = vadd.f32 %v4582, %v4640
      %v4642 = vpop.f32.mrf.mxu0
      %v4643 = vadd.f32 %v4584, %v4642
      %4644 = vmatmul.bf16.gmra.mxu0 %v1812
      %v4645 = vpop.f32.mrf.mxu0
      %v4646 = vadd.f32 %v4587, %v4645
      %v4647 = vpop.f32.mrf.mxu0
      %v4648 = vadd.f32 %v4589, %v4647
      %4649 = vmatmul.bf16.gmra.mxu0 %v1814
      %v4650 = vpop.f32.mrf.mxu0
      %v4651 = vadd.f32 %v4592, %v4650
      %v4652 = vpop.f32.mrf.mxu0
      %v4653 = vadd.f32 %v4594, %v4652
      %4654 = vmatmul.bf16.gmra.mxu0 %v1816
      %v4655 = vpop.f32.mrf.mxu0
      %v4656 = vadd.f32 %v4597, %v4655
      %v4657 = vpop.f32.mrf.mxu0
      %v4658 = vadd.f32 %v4599, %v4657
      %4659 = vmatmul.bf16.gmra.mxu0 %v1818
      %v4660 = vpop.f32.mrf.mxu0
      %v4661 = vadd.f32 %v4602, %v4660
      %v4662 = vpop.f32.mrf.mxu0
      %v4663 = vadd.f32 %v4604, %v4662
      %4664 = vmatmul.bf16.gmra.mxu0 %v1820
      %v4665 = vpop.f32.mrf.mxu0
      %v4666 = vadd.f32 %v4607, %v4665
      %v4667 = vpop.f32.mrf.mxu0
      %v4668 = vadd.f32 %v4609, %v4667
      %4669 = vmatmul.bf16.gmra.mxu0 %v1822
      %v4670 = vpop.f32.mrf.mxu0
      %v4671 = vadd.f32 %v4612, %v4670
      %v4672 = vpop.f32.mrf.mxu0
      %v4673 = vadd.f32 %v4614, %v4672
      %4674 = vmatmul.bf16.gmra.mxu0 %v1824
      %v4675 = vpop.f32.mrf.mxu0
      %v4676 = vadd.f32 %v4617, %v4675
      %v4677 = vpop.f32.mrf.mxu0
      %v4678 = vadd.f32 %v4619, %v4677
      %4679 = vdwg.mxu0
      %4680 = vmatpush.bf16.msra.mxu0 %v4526
      %4681 = vmatpush.bf16.msra.mxu0 %v4525
      %4682 = vmatpush.bf16.msra.mxu0 %v4524
      %4683 = vmatpush.bf16.msra.mxu0 %v4523
      %4684 = vmatpush.bf16.msra.mxu0 %v4522
      %4685 = vmatpush.bf16.msra.mxu0 %v4521
      %4686 = vmatpush.bf16.msra.mxu0 %v4520
      %4687 = vmatpush.bf16.msra.mxu0 %v4519
      %4688 = vmatmul.bf16.gmra.mxu0 %v1856
      %v4689 = vpop.f32.mrf.mxu0
      %v4690 = vadd.f32 %v4631, %v4689
      %v4691 = vpop.f32.mrf.mxu0
      %v4692 = vadd.f32 %v4633, %v4691
      %4693 = vmatmul.bf16.gmra.mxu0 %v1858
      %v4694 = vpop.f32.mrf.mxu0
      %v4695 = vadd.f32 %v4636, %v4694
      %v4696 = vpop.f32.mrf.mxu0
      %v4697 = vadd.f32 %v4638, %v4696
      %4698 = vmatmul.bf16.gmra.mxu0 %v1860
      %v4699 = vpop.f32.mrf.mxu0
      %v4700 = vadd.f32 %v4641, %v4699
      %v4701 = vpop.f32.mrf.mxu0
      %v4702 = vadd.f32 %v4643, %v4701
      %4703 = vmatmul.bf16.gmra.mxu0 %v1862
      %v4704 = vpop.f32.mrf.mxu0
      %v4705 = vadd.f32 %v4646, %v4704
      %v4706 = vpop.f32.mrf.mxu0
      %v4707 = vadd.f32 %v4648, %v4706
      %4708 = vmatmul.bf16.gmra.mxu0 %v1864
      %v4709 = vpop.f32.mrf.mxu0
      %v4710 = vadd.f32 %v4651, %v4709
      %v4711 = vpop.f32.mrf.mxu0
      %v4712 = vadd.f32 %v4653, %v4711
      %4713 = vmatmul.bf16.gmra.mxu0 %v1866
      %v4714 = vpop.f32.mrf.mxu0
      %v4715 = vadd.f32 %v4656, %v4714
      %v4716 = vpop.f32.mrf.mxu0
      %v4717 = vadd.f32 %v4658, %v4716
      %4718 = vmatmul.bf16.gmra.mxu0 %v1868
      %v4719 = vpop.f32.mrf.mxu0
      %v4720 = vadd.f32 %v4661, %v4719
      %v4721 = vpop.f32.mrf.mxu0
      %v4722 = vadd.f32 %v4663, %v4721
      %4723 = vmatmul.bf16.gmra.mxu0 %v1870
      %v4724 = vpop.f32.mrf.mxu0
      %v4725 = vadd.f32 %v4666, %v4724
      %v4726 = vpop.f32.mrf.mxu0
      %v4727 = vadd.f32 %v4668, %v4726
      %4728 = vmatmul.bf16.gmra.mxu0 %v1872
      %v4729 = vpop.f32.mrf.mxu0
      %v4730 = vadd.f32 %v4671, %v4729
      %v4731 = vpop.f32.mrf.mxu0
      %v4732 = vadd.f32 %v4673, %v4731
      %4733 = vmatmul.bf16.gmra.mxu0 %v1874
      %v4734 = vpop.f32.mrf.mxu0
      %v4735 = vadd.f32 %v4676, %v4734
      %v4736 = vpop.f32.mrf.mxu0
      %v4737 = vadd.f32 %v4678, %v4736
      %4738 = vdwg.mxu0
      %4739 = vmatpush.bf16.msra.mxu0 0
      %4740 = vmatpush.bf16.msra.mxu0 0
      %4741 = vmatpush.bf16.msra.mxu0 0
      %4742 = vmatpush.bf16.msra.mxu0 0
      %4743 = vmatpush.bf16.msra.mxu0 %v4530
      %4744 = vmatpush.bf16.msra.mxu0 %v4529
      %4745 = vmatpush.bf16.msra.mxu0 %v4528
      %4746 = vmatpush.bf16.msra.mxu0 %v4527
      %4747 = vmatmul.bf16.gmra.mxu0 %v2222
      %v4748 = vpop.f32.mrf.mxu0
      %v4749 = vadd.f32 %v4690, %v4748
      %v4750 = vpop.f32.mrf.mxu0
      %v4751 = vadd.f32 %v4692, %v4750
      %4752 = vmatmul.bf16.gmra.mxu0 %v2225
      %v4753 = vpop.f32.mrf.mxu0
      %v4754 = vadd.f32 %v4695, %v4753
      %v4755 = vpop.f32.mrf.mxu0
      %v4756 = vadd.f32 %v4697, %v4755
      %4757 = vmatmul.bf16.gmra.mxu0 %v2228
      %v4758 = vpop.f32.mrf.mxu0
      %v4759 = vadd.f32 %v4700, %v4758
      %v4760 = vpop.f32.mrf.mxu0
      %v4761 = vadd.f32 %v4702, %v4760
      %4762 = vmatmul.bf16.gmra.mxu0 %v2231
      %v4763 = vpop.f32.mrf.mxu0
      %v4764 = vadd.f32 %v4705, %v4763
      %v4765 = vpop.f32.mrf.mxu0
      %v4766 = vadd.f32 %v4707, %v4765
      %4767 = vmatmul.bf16.gmra.mxu0 %v2234
      %v4768 = vpop.f32.mrf.mxu0
      %v4769 = vadd.f32 %v4710, %v4768
      %v4770 = vpop.f32.mrf.mxu0
      %v4771 = vadd.f32 %v4712, %v4770
      %4772 = vmatmul.bf16.gmra.mxu0 %v2237
      %v4773 = vpop.f32.mrf.mxu0
      %v4774 = vadd.f32 %v4715, %v4773
      %v4775 = vpop.f32.mrf.mxu0
      %v4776 = vadd.f32 %v4717, %v4775
      %4777 = vmatmul.bf16.gmra.mxu0 %v3108
      %v4778 = vpop.f32.mrf.mxu0
      %v4779 = vadd.f32 %v4720, %v4778
      %v4780 = vpop.f32.mrf.mxu0
      %v4781 = vadd.f32 %v4722, %v4780
      %4782 = vmatmul.bf16.gmra.mxu0 %v3592
      %v4783 = vpop.f32.mrf.mxu0
      %v4784 = vadd.f32 %v4725, %v4783
      %v4785 = vpop.f32.mrf.mxu0
      %v4786 = vadd.f32 %v4727, %v4785
      %4787 = vmatmul.bf16.gmra.mxu0 %v4076
      %v4788 = vpop.f32.mrf.mxu0
      %v4789 = vadd.f32 %v4730, %v4788
      %v4790 = vpop.f32.mrf.mxu0
      %v4791 = vadd.f32 %v4732, %v4790
      %4792 = vmatmul.bf16.gmra.mxu0 %v4560
      %v4793 = vpop.f32.mrf.mxu0
      %v4794 = vadd.f32 %v4735, %v4793
      %v4795 = vpop.f32.mrf.mxu0
      %v4796 = vadd.f32 %v4737, %v4795
      %4797 = vdwg.mxu0
      %v4798 = vadd.f32 %v4314, %v4749
      %v4799 = vadd.f32 %v4315, %v4751
      %v4800 = vadd.f32 %v4316, %v4754
      %v4801 = vadd.f32 %v4317, %v4756
      %v4802 = vadd.f32 %v4318, %v4759
      %v4803 = vadd.f32 %v4319, %v4761
      %v4804 = vadd.f32 %v4320, %v4764
      %v4805 = vadd.f32 %v4321, %v4766
      %v4806 = vadd.f32 %v4322, %v4769
      %v4807 = vadd.f32 %v4323, %v4771
      %v4808 = vadd.f32 %v4324, %v4774
      %v4809 = vadd.f32 %v4325, %v4776
      %v4810 = vadd.f32 %v4326, %v4779
      %v4811 = vadd.f32 %v4327, %v4781
      %v4812 = vadd.f32 %v4328, %v4784
      %v4813 = vadd.f32 %v4329, %v4786
      %v4814 = vadd.f32 %v4330, %v4789
      %v4815 = vadd.f32 %v4331, %v4791
      %v4816 = vadd.f32 %v4332, %v4794
      %v4817 = vadd.f32 %v4333, %v4796
      %s4818 = scalar_lea.vmem %s3, 1344
      %v4819 = vld [vmem:[%s4818] sm:$0xf]
      %v4820 = vld [vmem:[%s4818 + $0x4] sm:$0xf]
      %v4821 = vld [vmem:[%s4818 + $0x8] sm:$0xf]
      %v4822 = vld [vmem:[%s4818 + $0xc] sm:$0xf]
      %v4823 = vld [vmem:[%s4818 + $0x10] sm:$0xf]
      %v4824 = vld [vmem:[%s4818 + $0x14] sm:$0xf]
      %v4825 = vld [vmem:[%s4818 + $0x18] sm:$0xf]
      %v4826 = vld [vmem:[%s4818 + $0x1c] sm:$0xf]
      %v4827 = vld [vmem:[%s4818 + $0x20] sm:$0xf]
      %v4828 = vld [vmem:[%s4818 + $0x24] sm:$0xf]
      %v4829 = vld [vmem:[%s4818 + $0x28] sm:$0xf]
      %v4830 = vld [vmem:[%s4818 + $0x2c] sm:$0xf]
      %v4831 = vld [vmem:[%s4818 + $0x30] sm:$0xf]
      %v4832 = vld [vmem:[%s4818 + $0x34] sm:$0xf]
      %v4833 = vld [vmem:[%s4818 + $0x38] sm:$0xf]
      %v4834 = vld [vmem:[%s4818 + $0x3c] sm:$0xf]
      %v4835 = vld [vmem:[%s4818 + $0x40] sm:$0xf]
      %v4836 = vld [vmem:[%s4818 + $0x44] sm:$0xf]
      %v4837 = vld [vmem:[%s4818 + $0x48] sm:$0xf]
      %v4838 = vld [vmem:[%s4818 + $0x4c] sm:$0xf]
      %v4839 = vld [vmem:[%s4818 + $0x50] sm:$0xf]
      %v4840 = vld [vmem:[%s4818 + $0x54] sm:$0xf]
      %v4841 = vld [vmem:[%s4818 + $0x58] sm:$0xf]
      %v4842 = vld [vmem:[%s4818 + $0x5c] sm:$0xf]
      %v4843 = vld [vmem:[%s4818 + $0x60] sm:$0xf]
      %v4844 = vld [vmem:[%s4818 + $0x64] sm:$0xf]
      %v4845 = vld [vmem:[%s4818 + $0x68] sm:$0xf]
      %v4846 = vld [vmem:[%s4818 + $0x6c] sm:$0xf]
      %v4847 = vld [vmem:[%s4818 + $0x70] sm:$0xf]
      %v4848 = vld [vmem:[%s4818 + $0x74] sm:$0xf]
      %v4849 = vld [vmem:[%s4818 + $0x78] sm:$0xf]
      %v4850 = vld [vmem:[%s4818 + $0x7c] sm:$0xf]
      %v4851 = vld [vmem:[%s4818 + $0x80] sm:$0xf]
      %v4852 = vld [vmem:[%s4818 + $0x84] sm:$0xf]
      %v4853 = vld [vmem:[%s4818 + $0x88] sm:$0xf]
      %v4854 = vld [vmem:[%s4818 + $0x8c] sm:$0xf]
      %v4855 = vld [vmem:[%s4818 + $0x90] sm:$0xf]
      %v4856 = vld [vmem:[%s4818 + $0x94] sm:$0xf]
      %v4857 = vld [vmem:[%s4818 + $0x98] sm:$0xf]
      %v4858 = vld [vmem:[%s4818 + $0x9c] sm:$0xf]
      %v4859 = vld [vmem:[%s4818 + $0xa0] sm:$0xf]
      %v4860 = vld [vmem:[%s4818 + $0xa4] sm:$0xf]
      %v4861 = vld [vmem:[%s4818 + $0xa8] sm:$0xf]
      %v4862 = vld [vmem:[%s4818 + $0xac] sm:$0xf]
      %v4863 = vld [vmem:[%s4818 + $0xb0] sm:$0xf]
      %v4864 = vld [vmem:[%s4818 + $0xb4] sm:$0xf]
      %v4865 = vld [vmem:[%s4818 + $0xb8] sm:$0xf]
      %v4866 = vld [vmem:[%s4818 + $0xbc] sm:$0xf]
      %v4867 = vld [vmem:[%s4818 + $0xc0] sm:$0xf]
      %v4868 = vld [vmem:[%s4818 + $0xc4] sm:$0xf]
      %v4869 = vld [vmem:[%s4818 + $0xc8] sm:$0xf]
      %v4870 = vld [vmem:[%s4818 + $0xcc] sm:$0xf]
      %v4871 = vld [vmem:[%s4818 + $0xd0] sm:$0xf]
      %v4872 = vld [vmem:[%s4818 + $0xd4] sm:$0xf]
      %v4873 = vld [vmem:[%s4818 + $0xd8] sm:$0xf]
      %v4874 = vld [vmem:[%s4818 + $0xdc] sm:$0xf]
      %v4931 = vunpack.c.l.b16 %v4819
      %v4932 = vunpack.c.l.b16 %v4820
      %v4933 = vunpack.c.l.b16 %v4821
      %v4934 = vunpack.c.l.b16 %v4822
      %v4935 = vunpack.c.l.b16 %v4823
      %v4936 = vunpack.c.l.b16 %v4824
      %v4937 = vunpack.c.l.b16 %v4825
      %v4938 = vunpack.c.l.b16 %v4826
      %v4939 = vunpack.c.l.b16 %v4827
      %v4940 = vunpack.c.l.b16 %v4828
      %v4941 = vunpack.c.l.b16 %v4829
      %v4942 = vunpack.c.l.b16 %v4830
      %v4943 = vunpack.c.l.b16 %v4831
      %v4944 = vunpack.c.l.b16 %v4832
      %v4945 = vunpack.c.l.b16 %v4833
      %v4946 = vunpack.c.l.b16 %v4834
      %v4947 = vunpack.c.l.b16 %v4835
      %v4948 = vunpack.c.l.b16 %v4836
      %v4949 = vunpack.c.l.b16 %v4837
      %v4950 = vunpack.c.l.b16 %v4838
      %v4951 = vunpack.c.l.b16 %v4839
      %v4952 = vunpack.c.l.b16 %v4840
      %v4953 = vunpack.c.l.b16 %v4841
      %v4954 = vunpack.c.l.b16 %v4842
      %v4955 = vunpack.c.l.b16 %v4843
      %v4956 = vunpack.c.l.b16 %v4844
      %v4957 = vunpack.c.l.b16 %v4845
      %v4958 = vunpack.c.l.b16 %v4846
      %v4959 = vunpack.c.l.b16 %v4847
      %v4960 = vunpack.c.l.b16 %v4848
      %v4961 = vunpack.c.l.b16 %v4849
      %v4962 = vunpack.c.l.b16 %v4850
      %v4963 = vunpack.c.l.b16 %v4851
      %v4964 = vunpack.c.l.b16 %v4852
      %v4965 = vunpack.c.l.b16 %v4853
      %v4966 = vunpack.c.l.b16 %v4854
      %v4967 = vunpack.c.l.b16 %v4855
      %v4968 = vunpack.c.l.b16 %v4856
      %v4969 = vunpack.c.l.b16 %v4857
      %v4970 = vunpack.c.l.b16 %v4858
      %v4971 = vunpack.c.l.b16 %v4859
      %v4972 = vunpack.c.l.b16 %v4860
      %v4973 = vunpack.c.l.b16 %v4861
      %v4974 = vunpack.c.l.b16 %v4862
      %v4975 = vunpack.c.l.b16 %v4863
      %v4976 = vunpack.c.l.b16 %v4864
      %v4977 = vunpack.c.l.b16 %v4865
      %v4978 = vunpack.c.l.b16 %v4866
      %v4979 = vunpack.c.l.b16 %v4867
      %v4980 = vunpack.c.l.b16 %v4868
      %v4981 = vunpack.c.l.b16 %v4869
      %v4982 = vunpack.c.l.b16 %v4870
      %v4983 = vunpack.c.l.b16 %v4871
      %v4984 = vunpack.c.l.b16 %v4872
      %v4985 = vunpack.c.l.b16 %v4873
      %v4986 = vunpack.c.l.b16 %v4874
      %v4987 = vpack.c.b16 %v4932, %v4931
      %v4988 = vpack.c.b16 %v4934, %v4933
      %v4989 = vpack.c.b16 %v4936, %v4935
      %v4990 = vpack.c.b16 %v4938, %v4937
      %v4991 = vpack.c.b16 %v4940, %v4939
      %v4992 = vpack.c.b16 %v4942, %v4941
      %v4993 = vpack.c.b16 %v4944, %v4943
      %v4994 = vpack.c.b16 %v4946, %v4945
      %v4995 = vpack.c.b16 %v4948, %v4947
      %v4996 = vpack.c.b16 %v4950, %v4949
      %v4997 = vpack.c.b16 %v4952, %v4951
      %v4998 = vpack.c.b16 %v4954, %v4953
      %v4999 = vpack.c.b16 %v4956, %v4955
      %v5000 = vpack.c.b16 %v4958, %v4957
      %v5001 = vpack.c.b16 %v4960, %v4959
      %v5002 = vpack.c.b16 %v4962, %v4961
      %v5003 = vpack.c.b16 %v4964, %v4963
      %v5004 = vpack.c.b16 %v4966, %v4965
      %v5005 = vpack.c.b16 %v4968, %v4967
      %v5006 = vpack.c.b16 %v4970, %v4969
      %v5007 = vpack.c.b16 %v4972, %v4971
      %v5008 = vpack.c.b16 %v4974, %v4973
      %v5009 = vpack.c.b16 %v4976, %v4975
      %v5010 = vpack.c.b16 %v4978, %v4977
      %v5011 = vpack.c.b16 %v4980, %v4979
      %v5012 = vpack.c.b16 %v4982, %v4981
      %v5013 = vpack.c.b16 %v4984, %v4983
      %v5014 = vpack.c.b16 %v4986, %v4985
      %v5044 = vsel %vm859, %v1927, 0
      %5046 = vmatpush.bf16.msra.mxu0 %v4994
      %5047 = vmatpush.bf16.msra.mxu0 %v4993
      %5048 = vmatpush.bf16.msra.mxu0 %v4992
      %5049 = vmatpush.bf16.msra.mxu0 %v4991
      %5050 = vmatpush.bf16.msra.mxu0 %v4990
      %5051 = vmatpush.bf16.msra.mxu0 %v4989
      %5052 = vmatpush.bf16.msra.mxu0 %v4988
      %5053 = vmatpush.bf16.msra.mxu0 %v4987
      %5054 = vmatmul.bf16.gmra.mxu0 %v1741
      %v5055 = vpop.f32.mrf.mxu0
      %v5056 = vadd.f32 0.0, %v5055
      %v5057 = vpop.f32.mrf.mxu0
      %v5058 = vadd.f32 0.0, %v5057
      %5059 = vmatmul.bf16.gmra.mxu0 %v1744
      %v5060 = vpop.f32.mrf.mxu0
      %v5061 = vadd.f32 0.0, %v5060
      %v5062 = vpop.f32.mrf.mxu0
      %v5063 = vadd.f32 0.0, %v5062
      %5064 = vmatmul.bf16.gmra.mxu0 %v1747
      %v5065 = vpop.f32.mrf.mxu0
      %v5066 = vadd.f32 0.0, %v5065
      %v5067 = vpop.f32.mrf.mxu0
      %v5068 = vadd.f32 0.0, %v5067
      %5069 = vmatmul.bf16.gmra.mxu0 %v1750
      %v5070 = vpop.f32.mrf.mxu0
      %v5071 = vadd.f32 0.0, %v5070
      %v5072 = vpop.f32.mrf.mxu0
      %v5073 = vadd.f32 0.0, %v5072
      %5074 = vmatmul.bf16.gmra.mxu0 %v1753
      %v5075 = vpop.f32.mrf.mxu0
      %v5076 = vadd.f32 0.0, %v5075
      %v5077 = vpop.f32.mrf.mxu0
      %v5078 = vadd.f32 0.0, %v5077
      %5079 = vmatmul.bf16.gmra.mxu0 %v1756
      %v5080 = vpop.f32.mrf.mxu0
      %v5081 = vadd.f32 0.0, %v5080
      %v5082 = vpop.f32.mrf.mxu0
      %v5083 = vadd.f32 0.0, %v5082
      %5084 = vmatmul.bf16.gmra.mxu0 %v1759
      %v5085 = vpop.f32.mrf.mxu0
      %v5086 = vadd.f32 0.0, %v5085
      %v5087 = vpop.f32.mrf.mxu0
      %v5088 = vadd.f32 0.0, %v5087
      %5089 = vmatmul.bf16.gmra.mxu0 %v1762
      %v5090 = vpop.f32.mrf.mxu0
      %v5091 = vadd.f32 0.0, %v5090
      %v5092 = vpop.f32.mrf.mxu0
      %v5093 = vadd.f32 0.0, %v5092
      %5094 = vmatmul.bf16.gmra.mxu0 %v1765
      %v5095 = vpop.f32.mrf.mxu0
      %v5096 = vadd.f32 0.0, %v5095
      %v5097 = vpop.f32.mrf.mxu0
      %v5098 = vadd.f32 0.0, %v5097
      %5099 = vmatmul.bf16.gmra.mxu0 %v1768
      %v5100 = vpop.f32.mrf.mxu0
      %v5101 = vadd.f32 0.0, %v5100
      %v5102 = vpop.f32.mrf.mxu0
      %v5103 = vadd.f32 0.0, %v5102
      %5104 = vdwg.mxu0
      %5105 = vmatpush.bf16.msra.mxu0 %v5002
      %5106 = vmatpush.bf16.msra.mxu0 %v5001
      %5107 = vmatpush.bf16.msra.mxu0 %v5000
      %5108 = vmatpush.bf16.msra.mxu0 %v4999
      %5109 = vmatpush.bf16.msra.mxu0 %v4998
      %5110 = vmatpush.bf16.msra.mxu0 %v4997
      %5111 = vmatpush.bf16.msra.mxu0 %v4996
      %5112 = vmatpush.bf16.msra.mxu0 %v4995
      %5113 = vmatmul.bf16.gmra.mxu0 %v1808
      %v5114 = vpop.f32.mrf.mxu0
      %v5115 = vadd.f32 %v5056, %v5114
      %v5116 = vpop.f32.mrf.mxu0
      %v5117 = vadd.f32 %v5058, %v5116
      %5118 = vmatmul.bf16.gmra.mxu0 %v1810
      %v5119 = vpop.f32.mrf.mxu0
      %v5120 = vadd.f32 %v5061, %v5119
      %v5121 = vpop.f32.mrf.mxu0
      %v5122 = vadd.f32 %v5063, %v5121
      %5123 = vmatmul.bf16.gmra.mxu0 %v1812
      %v5124 = vpop.f32.mrf.mxu0
      %v5125 = vadd.f32 %v5066, %v5124
      %v5126 = vpop.f32.mrf.mxu0
      %v5127 = vadd.f32 %v5068, %v5126
      %5128 = vmatmul.bf16.gmra.mxu0 %v1814
      %v5129 = vpop.f32.mrf.mxu0
      %v5130 = vadd.f32 %v5071, %v5129
      %v5131 = vpop.f32.mrf.mxu0
      %v5132 = vadd.f32 %v5073, %v5131
      %5133 = vmatmul.bf16.gmra.mxu0 %v1816
      %v5134 = vpop.f32.mrf.mxu0
      %v5135 = vadd.f32 %v5076, %v5134
      %v5136 = vpop.f32.mrf.mxu0
      %v5137 = vadd.f32 %v5078, %v5136
      %5138 = vmatmul.bf16.gmra.mxu0 %v1818
      %v5139 = vpop.f32.mrf.mxu0
      %v5140 = vadd.f32 %v5081, %v5139
      %v5141 = vpop.f32.mrf.mxu0
      %v5142 = vadd.f32 %v5083, %v5141
      %5143 = vmatmul.bf16.gmra.mxu0 %v1820
      %v5144 = vpop.f32.mrf.mxu0
      %v5145 = vadd.f32 %v5086, %v5144
      %v5146 = vpop.f32.mrf.mxu0
      %v5147 = vadd.f32 %v5088, %v5146
      %5148 = vmatmul.bf16.gmra.mxu0 %v1822
      %v5149 = vpop.f32.mrf.mxu0
      %v5150 = vadd.f32 %v5091, %v5149
      %v5151 = vpop.f32.mrf.mxu0
      %v5152 = vadd.f32 %v5093, %v5151
      %5153 = vmatmul.bf16.gmra.mxu0 %v1824
      %v5154 = vpop.f32.mrf.mxu0
      %v5155 = vadd.f32 %v5096, %v5154
      %v5156 = vpop.f32.mrf.mxu0
      %v5157 = vadd.f32 %v5098, %v5156
      %5158 = vmatmul.bf16.gmra.mxu0 %v1826
      %v5159 = vpop.f32.mrf.mxu0
      %v5160 = vadd.f32 %v5101, %v5159
      %v5161 = vpop.f32.mrf.mxu0
      %v5162 = vadd.f32 %v5103, %v5161
      %5163 = vdwg.mxu0
      %5164 = vmatpush.bf16.msra.mxu0 %v5010
      %5165 = vmatpush.bf16.msra.mxu0 %v5009
      %5166 = vmatpush.bf16.msra.mxu0 %v5008
      %5167 = vmatpush.bf16.msra.mxu0 %v5007
      %5168 = vmatpush.bf16.msra.mxu0 %v5006
      %5169 = vmatpush.bf16.msra.mxu0 %v5005
      %5170 = vmatpush.bf16.msra.mxu0 %v5004
      %5171 = vmatpush.bf16.msra.mxu0 %v5003
      %5172 = vmatmul.bf16.gmra.mxu0 %v1858
      %v5173 = vpop.f32.mrf.mxu0
      %v5174 = vadd.f32 %v5115, %v5173
      %v5175 = vpop.f32.mrf.mxu0
      %v5176 = vadd.f32 %v5117, %v5175
      %5177 = vmatmul.bf16.gmra.mxu0 %v1860
      %v5178 = vpop.f32.mrf.mxu0
      %v5179 = vadd.f32 %v5120, %v5178
      %v5180 = vpop.f32.mrf.mxu0
      %v5181 = vadd.f32 %v5122, %v5180
      %5182 = vmatmul.bf16.gmra.mxu0 %v1862
      %v5183 = vpop.f32.mrf.mxu0
      %v5184 = vadd.f32 %v5125, %v5183
      %v5185 = vpop.f32.mrf.mxu0
      %v5186 = vadd.f32 %v5127, %v5185
      %5187 = vmatmul.bf16.gmra.mxu0 %v1864
      %v5188 = vpop.f32.mrf.mxu0
      %v5189 = vadd.f32 %v5130, %v5188
      %v5190 = vpop.f32.mrf.mxu0
      %v5191 = vadd.f32 %v5132, %v5190
      %5192 = vmatmul.bf16.gmra.mxu0 %v1866
      %v5193 = vpop.f32.mrf.mxu0
      %v5194 = vadd.f32 %v5135, %v5193
      %v5195 = vpop.f32.mrf.mxu0
      %v5196 = vadd.f32 %v5137, %v5195
      %5197 = vmatmul.bf16.gmra.mxu0 %v1868
      %v5198 = vpop.f32.mrf.mxu0
      %v5199 = vadd.f32 %v5140, %v5198
      %v5200 = vpop.f32.mrf.mxu0
      %v5201 = vadd.f32 %v5142, %v5200
      %5202 = vmatmul.bf16.gmra.mxu0 %v1870
      %v5203 = vpop.f32.mrf.mxu0
      %v5204 = vadd.f32 %v5145, %v5203
      %v5205 = vpop.f32.mrf.mxu0
      %v5206 = vadd.f32 %v5147, %v5205
      %5207 = vmatmul.bf16.gmra.mxu0 %v1872
      %v5208 = vpop.f32.mrf.mxu0
      %v5209 = vadd.f32 %v5150, %v5208
      %v5210 = vpop.f32.mrf.mxu0
      %v5211 = vadd.f32 %v5152, %v5210
      %5212 = vmatmul.bf16.gmra.mxu0 %v1874
      %v5213 = vpop.f32.mrf.mxu0
      %v5214 = vadd.f32 %v5155, %v5213
      %v5215 = vpop.f32.mrf.mxu0
      %v5216 = vadd.f32 %v5157, %v5215
      %5217 = vmatmul.bf16.gmra.mxu0 %v1876
      %v5218 = vpop.f32.mrf.mxu0
      %v5219 = vadd.f32 %v5160, %v5218
      %v5220 = vpop.f32.mrf.mxu0
      %v5221 = vadd.f32 %v5162, %v5220
      %5222 = vdwg.mxu0
      %5223 = vmatpush.bf16.msra.mxu0 0
      %5224 = vmatpush.bf16.msra.mxu0 0
      %5225 = vmatpush.bf16.msra.mxu0 0
      %5226 = vmatpush.bf16.msra.mxu0 0
      %5227 = vmatpush.bf16.msra.mxu0 %v5014
      %5228 = vmatpush.bf16.msra.mxu0 %v5013
      %5229 = vmatpush.bf16.msra.mxu0 %v5012
      %5230 = vmatpush.bf16.msra.mxu0 %v5011
      %5231 = vmatmul.bf16.gmra.mxu0 %v2225
      %v5232 = vpop.f32.mrf.mxu0
      %v5233 = vadd.f32 %v5174, %v5232
      %v5234 = vpop.f32.mrf.mxu0
      %v5235 = vadd.f32 %v5176, %v5234
      %5236 = vmatmul.bf16.gmra.mxu0 %v2228
      %v5237 = vpop.f32.mrf.mxu0
      %v5238 = vadd.f32 %v5179, %v5237
      %v5239 = vpop.f32.mrf.mxu0
      %v5240 = vadd.f32 %v5181, %v5239
      %5241 = vmatmul.bf16.gmra.mxu0 %v2231
      %v5242 = vpop.f32.mrf.mxu0
      %v5243 = vadd.f32 %v5184, %v5242
      %v5244 = vpop.f32.mrf.mxu0
      %v5245 = vadd.f32 %v5186, %v5244
      %5246 = vmatmul.bf16.gmra.mxu0 %v2234
      %v5247 = vpop.f32.mrf.mxu0
      %v5248 = vadd.f32 %v5189, %v5247
      %v5249 = vpop.f32.mrf.mxu0
      %v5250 = vadd.f32 %v5191, %v5249
      %5251 = vmatmul.bf16.gmra.mxu0 %v2237
      %v5252 = vpop.f32.mrf.mxu0
      %v5253 = vadd.f32 %v5194, %v5252
      %v5254 = vpop.f32.mrf.mxu0
      %v5255 = vadd.f32 %v5196, %v5254
      %5256 = vmatmul.bf16.gmra.mxu0 %v3108
      %v5257 = vpop.f32.mrf.mxu0
      %v5258 = vadd.f32 %v5199, %v5257
      %v5259 = vpop.f32.mrf.mxu0
      %v5260 = vadd.f32 %v5201, %v5259
      %5261 = vmatmul.bf16.gmra.mxu0 %v3592
      %v5262 = vpop.f32.mrf.mxu0
      %v5263 = vadd.f32 %v5204, %v5262
      %v5264 = vpop.f32.mrf.mxu0
      %v5265 = vadd.f32 %v5206, %v5264
      %5266 = vmatmul.bf16.gmra.mxu0 %v4076
      %v5267 = vpop.f32.mrf.mxu0
      %v5268 = vadd.f32 %v5209, %v5267
      %v5269 = vpop.f32.mrf.mxu0
      %v5270 = vadd.f32 %v5211, %v5269
      %5271 = vmatmul.bf16.gmra.mxu0 %v4560
      %v5272 = vpop.f32.mrf.mxu0
      %v5273 = vadd.f32 %v5214, %v5272
      %v5274 = vpop.f32.mrf.mxu0
      %v5275 = vadd.f32 %v5216, %v5274
      %5276 = vmatmul.bf16.gmra.mxu0 %v5044
      %v5277 = vpop.f32.mrf.mxu0
      %v5278 = vadd.f32 %v5219, %v5277
      %v5279 = vpop.f32.mrf.mxu0
      %v5280 = vadd.f32 %v5221, %v5279
      %5281 = vdwg.mxu0
      %v5282 = vadd.f32 %v4798, %v5233
      %v5283 = vadd.f32 %v4799, %v5235
      %v5284 = vadd.f32 %v4800, %v5238
      %v5285 = vadd.f32 %v4801, %v5240
      %v5286 = vadd.f32 %v4802, %v5243
      %v5287 = vadd.f32 %v4803, %v5245
      %v5288 = vadd.f32 %v4804, %v5248
      %v5289 = vadd.f32 %v4805, %v5250
      %v5290 = vadd.f32 %v4806, %v5253
      %v5291 = vadd.f32 %v4807, %v5255
      %v5292 = vadd.f32 %v4808, %v5258
      %v5293 = vadd.f32 %v4809, %v5260
      %v5294 = vadd.f32 %v4810, %v5263
      %v5295 = vadd.f32 %v4811, %v5265
      %v5296 = vadd.f32 %v4812, %v5268
      %v5297 = vadd.f32 %v4813, %v5270
      %v5298 = vadd.f32 %v4814, %v5273
      %v5299 = vadd.f32 %v4815, %v5275
      %v5300 = vadd.f32 %v4816, %v5278
      %v5301 = vadd.f32 %v4817, %v5280
      %v5302 = vld [vmem:[%s4] sm:$0x1]
      %v5304 = vperm.slane %v5302, 0
      %v5306 = vadd.f32 %v5282, %v5304
      %v5307 = vadd.f32 %v5283, %v5304
      %v5308 = vadd.f32 %v5284, %v5304
      %v5309 = vadd.f32 %v5285, %v5304
      %v5310 = vadd.f32 %v5286, %v5304
      %v5311 = vadd.f32 %v5287, %v5304
      %v5312 = vadd.f32 %v5288, %v5304
      %v5313 = vadd.f32 %v5289, %v5304
      %v5314 = vadd.f32 %v5290, %v5304
      %v5315 = vadd.f32 %v5291, %v5304
      %v5316 = vadd.f32 %v5292, %v5304
      %v5317 = vadd.f32 %v5293, %v5304
      %v5318 = vadd.f32 %v5294, %v5304
      %v5319 = vadd.f32 %v5295, %v5304
      %v5320 = vadd.f32 %v5296, %v5304
      %v5321 = vadd.f32 %v5297, %v5304
      %v5322 = vadd.f32 %v5298, %v5304
      %v5323 = vadd.f32 %v5299, %v5304
      %v5324 = vadd.f32 %v5300, %v5304
      %v5325 = vadd.f32 %v5301, %v5304
      %v5326 = vmax.f32 %v5306, 0.0
      %v5327 = vmax.f32 %v5307, 0.0
      %v5328 = vmax.f32 %v5308, 0.0
      %v5329 = vmax.f32 %v5309, 0.0
      %v5330 = vmax.f32 %v5310, 0.0
      %v5331 = vmax.f32 %v5311, 0.0
      %v5332 = vmax.f32 %v5312, 0.0
      %v5333 = vmax.f32 %v5313, 0.0
      %v5334 = vmax.f32 %v5314, 0.0
      %v5335 = vmax.f32 %v5315, 0.0
      %v5336 = vmax.f32 %v5316, 0.0
      %v5337 = vmax.f32 %v5317, 0.0
      %v5338 = vmax.f32 %v5318, 0.0
      %v5339 = vmax.f32 %v5319, 0.0
      %v5340 = vmax.f32 %v5320, 0.0
      %v5341 = vmax.f32 %v5321, 0.0
      %v5342 = vmax.f32 %v5322, 0.0
      %v5343 = vmax.f32 %v5323, 0.0
      %v5344 = vmax.f32 %v5324, 0.0
      %v5345 = vmax.f32 %v5325, 0.0
      %v5346 = vpack.c.bf16 %v5327, %v5326
      %v5347 = vpack.c.bf16 %v5329, %v5328
      %v5348 = vpack.c.bf16 %v5331, %v5330
      %v5349 = vpack.c.bf16 %v5333, %v5332
      %v5350 = vpack.c.bf16 %v5335, %v5334
      %v5351 = vpack.c.bf16 %v5337, %v5336
      %v5352 = vpack.c.bf16 %v5339, %v5338
      %v5353 = vpack.c.bf16 %v5341, %v5340
      %v5354 = vpack.c.bf16 %v5343, %v5342
      %v5355 = vpack.c.bf16 %v5345, %v5344
      %v5356 = vld [vmem:[%s5] sm:$0xf]
      %v5357 = vld [vmem:[%s5 + $0x4] sm:$0xf]
      %v5358 = vld [vmem:[%s5 + $0x8] sm:$0xf]
      %v5359 = vld [vmem:[%s5 + $0xc] sm:$0xf]
      %v5360 = vld [vmem:[%s5 + $0x10] sm:$0xf]
      %v5361 = vld [vmem:[%s5 + $0x14] sm:$0xf]
      %v5362 = vld [vmem:[%s5 + $0x18] sm:$0xf]
      %v5363 = vld [vmem:[%s5 + $0x1c] sm:$0xf]
      %v5364 = vld [vmem:[%s6] sm:$0x1]
      %v5366 = vperm.slane %v5364, 0
      %v5376 = vunpack.c.l.b16 %v5356
      %v5377 = vunpack.c.l.b16 %v5357
      %v5378 = vunpack.c.l.b16 %v5358
      %v5379 = vunpack.c.l.b16 %v5359
      %v5380 = vunpack.c.l.b16 %v5360
      %v5381 = vunpack.c.l.b16 %v5361
      %v5382 = vunpack.c.l.b16 %v5362
      %v5383 = vunpack.c.l.b16 %v5363
      %v5384 = vpack.c.b16 %v5377, %v5376
      %v5385 = vpack.c.b16 %v5379, %v5378
      %v5386 = vpack.c.b16 %v5381, %v5380
      %v5387 = vpack.c.b16 %v5383, %v5382
      %v5393 = vsel %vm859, %v5346, 0
      %v5396 = vsel %vm859, %v5347, 0
      %v5399 = vsel %vm859, %v5348, 0
      %v5402 = vsel %vm859, %v5349, 0
      %v5405 = vsel %vm859, %v5350, 0
      %v5408 = vsel %vm859, %v5351, 0
      %v5411 = vsel %vm859, %v5352, 0
      %v5414 = vsel %vm859, %v5353, 0
      %v5417 = vsel %vm859, %v5354, 0
      %v5420 = vsel %vm859, %v5355, 0
      %5422 = vmatpush.bf16.msra.mxu0 0
      %5423 = vmatpush.bf16.msra.mxu0 0
      %5424 = vmatpush.bf16.msra.mxu0 0
      %5425 = vmatpush.bf16.msra.mxu0 0
      %5426 = vmatpush.bf16.msra.mxu0 %v5387
      %5427 = vmatpush.bf16.msra.mxu0 %v5386
      %5428 = vmatpush.bf16.msra.mxu0 %v5385
      %5429 = vmatpush.bf16.msra.mxu0 %v5384
      %5430 = vmatmul.bf16.gmra.mxu0 %v5393
      %v5431 = vpop.f32.mrf.mxu0
      %v5432 = vadd.f32 %v5366, %v5431
      %v5433 = vpop.f32.mrf.mxu0
      %v5434 = vadd.f32 %v5366, %v5433
      %5435 = vmatmul.bf16.gmra.mxu0 %v5396
      %v5436 = vpop.f32.mrf.mxu0
      %v5437 = vadd.f32 %v5366, %v5436
      %v5438 = vpop.f32.mrf.mxu0
      %v5439 = vadd.f32 %v5366, %v5438
      %5440 = vmatmul.bf16.gmra.mxu0 %v5399
      %v5441 = vpop.f32.mrf.mxu0
      %v5442 = vadd.f32 %v5366, %v5441
      %v5443 = vpop.f32.mrf.mxu0
      %v5444 = vadd.f32 %v5366, %v5443
      %5445 = vmatmul.bf16.gmra.mxu0 %v5402
      %v5446 = vpop.f32.mrf.mxu0
      %v5447 = vadd.f32 %v5366, %v5446
      %v5448 = vpop.f32.mrf.mxu0
      %v5449 = vadd.f32 %v5366, %v5448
      %5450 = vmatmul.bf16.gmra.mxu0 %v5405
      %v5451 = vpop.f32.mrf.mxu0
      %v5452 = vadd.f32 %v5366, %v5451
      %v5453 = vpop.f32.mrf.mxu0
      %v5454 = vadd.f32 %v5366, %v5453
      %5455 = vmatmul.bf16.gmra.mxu0 %v5408
      %v5456 = vpop.f32.mrf.mxu0
      %v5457 = vadd.f32 %v5366, %v5456
      %v5458 = vpop.f32.mrf.mxu0
      %v5459 = vadd.f32 %v5366, %v5458
      %5460 = vmatmul.bf16.gmra.mxu0 %v5411
      %v5461 = vpop.f32.mrf.mxu0
      %v5462 = vadd.f32 %v5366, %v5461
      %v5463 = vpop.f32.mrf.mxu0
      %v5464 = vadd.f32 %v5366, %v5463
      %5465 = vmatmul.bf16.gmra.mxu0 %v5414
      %v5466 = vpop.f32.mrf.mxu0
      %v5467 = vadd.f32 %v5366, %v5466
      %v5468 = vpop.f32.mrf.mxu0
      %v5469 = vadd.f32 %v5366, %v5468
      %5470 = vmatmul.bf16.gmra.mxu0 %v5417
      %v5471 = vpop.f32.mrf.mxu0
      %v5472 = vadd.f32 %v5366, %v5471
      %v5473 = vpop.f32.mrf.mxu0
      %v5474 = vadd.f32 %v5366, %v5473
      %5475 = vmatmul.bf16.gmra.mxu0 %v5420
      %v5476 = vpop.f32.mrf.mxu0
      %v5477 = vadd.f32 %v5366, %v5476
      %v5478 = vpop.f32.mrf.mxu0
      %v5479 = vadd.f32 %v5366, %v5478
      %5480 = vdwg.mxu0
      %5481 = vst [vmem:[%s278] sm:$0xff] %v5432
      %5482 = vst [vmem:[%s278 + $0x8] sm:$0xff] %v5434
      %5483 = vst [vmem:[%s278 + $0x10] sm:$0xff] %v5437
      %5484 = vst [vmem:[%s278 + $0x18] sm:$0xff] %v5439
      %5485 = vst [vmem:[%s278 + $0x20] sm:$0xff] %v5442
      %5486 = vst [vmem:[%s278 + $0x28] sm:$0xff] %v5444
      %5487 = vst [vmem:[%s278 + $0x30] sm:$0xff] %v5447
      %5488 = vst [vmem:[%s278 + $0x38] sm:$0xff] %v5449
      %5489 = vst [vmem:[%s278 + $0x40] sm:$0xff] %v5452
      %5490 = vst [vmem:[%s278 + $0x48] sm:$0xff] %v5454
      %5491 = vst [vmem:[%s278 + $0x50] sm:$0xff] %v5457
      %5492 = vst [vmem:[%s278 + $0x58] sm:$0xff] %v5459
      %5493 = vst [vmem:[%s278 + $0x60] sm:$0xff] %v5462
      %5494 = vst [vmem:[%s278 + $0x68] sm:$0xff] %v5464
      %5495 = vst [vmem:[%s278 + $0x70] sm:$0xff] %v5467
      %5496 = vst [vmem:[%s278 + $0x78] sm:$0xff] %v5469
      %5497 = vst [vmem:[%s278 + $0x80] sm:$0xff] %v5472
      %5498 = vst [vmem:[%s278 + $0x88] sm:$0xff] %v5474
      %5499 = vst [vmem:[%s278 + $0x90] sm:$0xff] %v5477
      %5500 = vst [vmem:[%s278 + $0x98] sm:$0xff] %v5479
      %p5501 = scmp.lt.s32.totalorder %s18, 1
      %s5502 = scalar_select %p5501, %s18, 1
      %s5503 = smul.addr %s5502, 20
      %s5504 = smul.addr %s5503, 8
      %s5505 = scalar_lea.vmem %s7, %s5504
      // Predicated region
      $region49: #{run_model.1} parent=47 // pred_check
        %p5506 = pneg %p188
      $region50: #{run_model.1} parent=47 // pred_check_branch
        %5508 = sbr.rel (%p5506) target = $region52
      $region51: #{run_model.1} parent=47 // pred_region
        _
      $region52: #{run_model.1} parent=47 // pred_fallthru
        _
    $region48: #{run_model.1} parent=5 // pred_fallthru
      _
    %p5509 = scmp.le.s32.totalorder 2, %s13
    // Predicated region
    $region53: #{run_model.1} parent=5 // pred_check
      %p5510 = pneg %p5509
    $region54: #{run_model.1} parent=5 // pred_check_branch
      %5512 = sbr.rel (%p5510) target = $region56
    $region55: #{run_model.1} parent=5 // pred_region
      %s5513 = ssub.s32 %s13, 2
      // Predicated region
      $region57: #{run_model.1} parent=55 // pred_check
        %p5514 = pneg %p194
      $region58: #{run_model.1} parent=55 // pred_check_branch
        %5516 = sbr.rel (%p5514) target = $region60
      $region59: #{run_model.1} parent=55 // pred_region
        %p5517 = scmp.lt.s32.totalorder %s19, 1
        %s5518 = scalar_select %p5517, %s19, 1
        %s5519 = smul.addr %s5518, 20
        %s5520 = smul.addr %s5519, 8
        %s5521 = scalar_lea.vmem %s7, %s5520
      $region60: #{run_model.1} parent=55 // pred_fallthru
        _
    $region56: #{run_model.1} parent=5 // pred_fallthru
      _
  $region6: #{run_model.1} parent=0 // loop_footer
    %s17 = sadd.s32 1, %s13
  $region7: #{run_model.1} parent=0 // loop_footer_branch
    %12 = sbr.rel target = $region3
  $region8: #{run_model.1} parent=0 // loop_exit
    _

</llo_original>
